<compile_context>
chip_gen: v7x
topology: tpu7x:2x2x1
jax: 0.10.0
libtpu: 0.0.40
codegen_flags: <defaults>
</compile_context>

<pallas_src>
import functools

import jax
import jax.numpy as jnp
from jax.experimental import pallas as pl
from jax.experimental.pallas import tpu as pltpu


def _round_up(v, m):
    return ((v + m - 1) // m) * m


# ----------------------------------------------------------------------------
# Fused kernel: conv1(3x3, s) + BN1 + ReLU -> conv2(3x3, 1) + BN2 + skip + ReLU
# ----------------------------------------------------------------------------
def _residual_block_kernel(x_ref, w1_ref, b1_ref, w2_ref, b2_ref, *rest,
                           stride, ho, wo, has_skip_conv):
    if has_skip_conv:
        ws_ref, bs_ref, o_ref, acc_ref, h1p_ref = rest
    else:
        o_ref, acc_ref, h1p_ref = rest
    s = stride
    ksz = 3

    def flat_bf16(patch):
        # (ho, wo, C) -> (ho*wo, C) MXU operand.  Go through f32 so the collapse
        # is a layout-preserving no-op (wo is a multiple of the 8-row sublane
        # tile), then return to bf16 for the matmul operand.
        r, c, d = patch.shape
        return patch.astype(jnp.float32).reshape(r * c, d).astype(jnp.bfloat16)

    # ---- conv1 (3x3, stride s) with BN1 folded into the weights:
    #      nine shifted bf16 matmuls accumulated in a f32 VMEM scratch --------
    for dh in range(ksz):
        for dw in range(ksz):
            ph = (dh % s) * s + (dw % s)              # polyphase plane of x
            r0, c0 = dh // s, dw // s                 # offset inside that plane
            lhs = flat_bf16(x_ref[ph, r0:r0 + ho, c0:c0 + wo, :])
            contrib = jnp.dot(lhs, w1_ref[dh * ksz + dw],
                              preferred_element_type=jnp.float32)
            if dh == 0 and dw == 0:
                acc_ref[...] = contrib
            else:
                acc_ref[...] += contrib

    # ---- BN1 bias + ReLU; h1 stays resident in VMEM (zero-padded for conv2) -
    h1 = jnp.maximum(acc_ref[...] + b1_ref[...], 0.0)
    h1p_ref[...] = jnp.zeros_like(h1p_ref)
    h1p_ref[1:ho + 1, 1:wo + 1, :] = h1.reshape(ho, wo, h1.shape[-1])

    # ---- skip path seeds the conv2 accumulator (no zeros residual stream) ---
    if has_skip_conv:
        ph = (1 % s) * s + (1 % s)
        off = 1 // s
        xs = flat_bf16(x_ref[ph, off:off + ho, off:off + wo, :])
        acc_ref[...] = (jnp.dot(xs, ws_ref[...],
                                preferred_element_type=jnp.float32)
                        + bs_ref[...])
    else:
        xs = x_ref[0, 1:1 + ho, 1:1 + wo, :].astype(jnp.float32)
        acc_ref[...] = xs.reshape(ho * wo, xs.shape[-1])

    # ---- conv2 (3x3, stride 1) with BN2 folded + residual + ReLU ------------
    for dh in range(ksz):
        for dw in range(ksz):
            lhs = h1p_ref[dh:dh + ho, dw:dw + wo, :].reshape(ho * wo, -1)
            acc_ref[...] += jnp.dot(lhs.astype(jnp.bfloat16),
                                    w2_ref[dh * ksz + dw],
                                    preferred_element_type=jnp.float32)
    out = jnp.maximum(acc_ref[...] + b2_ref[...], 0.0)
    o_ref[...] = out.reshape(1, ho, wo, out.shape[-1]).astype(o_ref.dtype)


# ----------------------------------------------------------------------------
# Host-side parameter / input preparation (BN folding, lane padding, polyphase)
# ----------------------------------------------------------------------------
def _fold_bn(w_hwio, conv_bias, bn, eps=1e-5):
    scale = bn["gamma"] / jnp.sqrt(bn["var"] + eps)
    w_f = w_hwio * scale                                   # fold BN scale into W
    b_f = (conv_bias - bn["mean"]) * scale + bn["beta"]
    return w_f, b_f


def _prep_weight(w_f, cp_in, cp_out):
    kh, kw, cin, cout = w_f.shape
    w = jnp.pad(w_f, ((0, 0), (0, 0), (0, cp_in - cin), (0, cp_out - cout)))
    return w.reshape(kh * kw, cp_in, cp_out).astype(jnp.bfloat16)


def _prep_bias(b_f, cp_out):
    return jnp.pad(b_f, (0, cp_out - b_f.shape[0])).reshape(1, cp_out).astype(
        jnp.float32)


def _prep_phases(x_nhwc, stride, cp_in):
    """Zero-pad spatially (+1 halo) and in channels (lane-dense 128), cast to
    bf16 and split into stride*stride polyphase planes so the kernel only needs
    contiguous slices — no 9x im2col materialisation in HBM."""
    n, h, w, c = x_nhwc.shape
    s = stride
    hp_r = _round_up(h + 2, s)
    wp_r = _round_up(w + 2, s)
    xp = jnp.pad(x_nhwc, ((0, 0), (1, hp_r - h - 1), (1, wp_r - w - 1),
                          (0, cp_in - c)))
    phases = [xp[:, p::s, q::s, :] for p in range(s) for q in range(s)]
    xph = jnp.stack(phases, axis=1).astype(jnp.bfloat16)   # (n, s*s, hh, wh, C)
    return xph.reshape(n * s * s, hp_r // s, wp_r // s, cp_in)


# ----------------------------------------------------------------------------
# ResidualBlock forward (Pallas)
# ----------------------------------------------------------------------------
def residual_block_forward(x_nchw, params, stride):
    x = jnp.transpose(x_nchw, (0, 2, 3, 1)).astype(jnp.float32)     # NHWC
    n, h, w, cin = x.shape
    cout = params["w1"].shape[-1]
    s = stride
    ho = (h + 2 - 3) // s + 1
    wo = (w + 2 - 3) // s + 1
    cp_in = _round_up(cin, 128)          # lane-dense channels (128-wide vregs)
    cp_out = _round_up(cout, 128)
    has_skip_conv = "ws" in params
    if not has_skip_conv:
        assert s == 1 and cin == cout, "identity skip requires stride 1, cin==cout"

    xph = _prep_phases(x, s, cp_in)
    hh, wh = xph.shape[1], xph.shape[2]

    w1f, b1f = _fold_bn(params["w1"], params["b1_conv"], params["bn1"])
    w2f, b2f = _fold_bn(params["w2"], params["b2_conv"], params["bn2"])
    operands = [xph,
                _prep_weight(w1f, cp_in, cp_out), _prep_bias(b1f, cp_out),
                _prep_weight(w2f, cp_out, cp_out), _prep_bias(b2f, cp_out)]
    in_specs = [
        # polyphase input planes for image i
        pl.BlockSpec((s * s, hh, wh, cp_in), lambda i: (i, 0, 0, 0)),
        # weights / biases: constant index_map -> stay resident in VMEM
        pl.BlockSpec((9, cp_in, cp_out), lambda i: (0, 0, 0)),
        pl.BlockSpec((1, cp_out), lambda i: (0, 0)),
        pl.BlockSpec((9, cp_out, cp_out), lambda i: (0, 0, 0)),
        pl.BlockSpec((1, cp_out), lambda i: (0, 0)),
    ]
    if has_skip_conv:
        wsf, bsf = _fold_bn(params["ws"], params["bs_conv"], params["bns"])
        operands += [_prep_weight(wsf, cp_in, cp_out).reshape(cp_in, cp_out),
                     _prep_bias(bsf, cp_out)]
        in_specs += [pl.BlockSpec((cp_in, cp_out), lambda i: (0, 0)),
                     pl.BlockSpec((1, cp_out), lambda i: (0, 0))]

    kernel = functools.partial(_residual_block_kernel, stride=s, ho=ho, wo=wo,
                               has_skip_conv=has_skip_conv)
    out = pl.pallas_call(
        kernel,
        out_shape=jax.ShapeDtypeStruct((n, ho, wo, cp_out), jnp.float32),
        grid_spec=pltpu.PrefetchScalarGridSpec(
            num_scalar_prefetch=0,
            grid=(n,),                                   # one image per step
            in_specs=in_specs,
            out_specs=pl.BlockSpec((1, ho, wo, cp_out), lambda i: (i, 0, 0, 0)),
            scratch_shapes=[
                pltpu.VMEM((ho * wo, cp_out), jnp.float32),          # conv acc
                pltpu.VMEM((ho + 2, wo + 2, cp_out), jnp.float32),   # padded h1
            ],
        ),
        compiler_params=pltpu.CompilerParams(
            dimension_semantics=("parallel",)),   # batch images -> both v7x TCs
    )(*operands)

    out = out[..., :cout]                          # drop lane padding
    return jnp.transpose(out, (0, 3, 1, 2))        # back to NCHW


# ----------------------------------------------------------------------------
# Parameter init (distinct keys) and pure-JAX reference (eval-mode BN)
# ----------------------------------------------------------------------------
def init_params(key, in_channels, out_channels, stride):
    ks = jax.random.split(key, 9)

    def conv_w(k, ksize, cin, cout, scale=0.1):
        return scale * jax.random.normal(k, (ksize, ksize, cin, cout), jnp.float32)

    def bn(k, c):
        k0, k1, k2, k3 = jax.random.split(k, 4)
        return dict(gamma=1.0 + 0.1 * jax.random.normal(k0, (c,), jnp.float32),
                    beta=0.1 * jax.random.normal(k1, (c,), jnp.float32),
                    mean=0.1 * jax.random.normal(k2, (c,), jnp.float32),
                    var=0.5 + jax.random.uniform(k3, (c,), jnp.float32))

    p = dict(
        w1=conv_w(ks[0], 3, in_channels, out_channels),
        b1_conv=0.05 * jax.random.normal(ks[1], (out_channels,), jnp.float32),
        bn1=bn(ks[2], out_channels),
        w2=conv_w(ks[3], 3, out_channels, out_channels),
        b2_conv=0.05 * jax.random.normal(ks[4], (out_channels,), jnp.float32),
        bn2=bn(ks[5], out_channels),
    )
    if stride != 1 or in_channels != out_channels:
        p["ws"] = conv_w(ks[6], 1, in_channels, out_channels)
        p["bs_conv"] = 0.05 * jax.random.normal(ks[7], (out_channels,), jnp.float32)
        p["bns"] = bn(ks[8], out_channels)
    return p


def reference_forward(x_nchw, params, stride, eps=1e-5):
    x = jnp.transpose(x_nchw, (0, 2, 3, 1)).astype(jnp.float32)

    def conv(xx, w, s, pad, bias):
        y = jax.lax.conv_general_dilated(
            xx, w, (s, s), [(pad, pad), (pad, pad)],
            dimension_numbers=("NHWC", "HWIO", "NHWC"))
        return y + bias

    def bn(y, p):
        return (y - p["mean"]) / jnp.sqrt(p["var"] + eps) * p["gamma"] + p["beta"]

    if "ws" in params:
        identity = bn(conv(x, params["ws"], stride, 0, params["bs_conv"]),
                      params["bns"])
    else:
        identity = x
    h1 = jax.nn.relu(bn(conv(x, params["w1"], stride, 1, params["b1_conv"]),
                        params["bn1"]))
    out = bn(conv(h1, params["w2"], 1, 1, params["b2_conv"]), params["bn2"])
    out = jax.nn.relu(out + identity)
    return jnp.transpose(out, (0, 3, 1, 2))


if __name__ == "__main__":
    key = jax.random.PRNGKey(0)
    k_x1, k_p1, k_x2, k_p2 = jax.random.split(key, 4)

    # Config A: downsampling block with 1x1-conv skip (stride 2, 4 -> 8 channels).
    batch, cin, cout, spatial, stride = 2, 4, 8, 16, 2
    x1 = jax.random.normal(k_x1, (batch, cin, spatial, spatial), jnp.float32)
    p1 = init_params(k_p1, cin, cout, stride)
    out1 = jax.block_until_ready(residual_block_forward(x1, p1, stride))
    ref1 = jax.block_until_ready(reference_forward(x1, p1, stride))
    assert out1.shape == ref1.shape == (batch, cout, spatial // stride,
                                        spatial // stride), out1.shape
    assert jnp.allclose(out1, ref1, atol=3e-2, rtol=3e-2), \
        float(jnp.max(jnp.abs(out1 - ref1)))

    # Config B: identity-skip block (stride 1, channels preserved).
    cin2 = cout2 = 8
    x2 = jax.random.normal(k_x2, (batch, cin2, spatial, spatial), jnp.float32)
    p2 = init_params(k_p2, cin2, cout2, 1)
    out2 = jax.block_until_ready(residual_block_forward(x2, p2, 1))
    ref2 = jax.block_until_ready(reference_forward(x2, p2, 1))
    assert out2.shape == ref2.shape == (batch, cout2, spatial, spatial), out2.shape
    assert jnp.allclose(out2, ref2, atol=3e-2, rtol=3e-2), \
        float(jnp.max(jnp.abs(out2 - ref2)))

    print("KERNEL_OK")
</pallas_src>

<mosaic_0001>
module attributes {stable_mosaic.version = 11 : i64} {
  func.func @_residual_block_kernel(%arg0: i32, %arg1: memref<4x9x9x128xbf16, #tpu.memory_space<vmem>>, %arg2: memref<9x128x128xbf16, #tpu.memory_space<vmem>>, %arg3: memref<1x128xf32, #tpu.memory_space<vmem>>, %arg4: memref<9x128x128xbf16, #tpu.memory_space<vmem>>, %arg5: memref<1x128xf32, #tpu.memory_space<vmem>>, %arg6: memref<128x128xbf16, #tpu.memory_space<vmem>>, %arg7: memref<1x128xf32, #tpu.memory_space<vmem>>, %arg8: memref<1x8x8x128xf32, #tpu.memory_space<vmem>>, %arg9: memref<64x128xf32, #tpu.memory_space<vmem>>, %arg10: memref<10x10x128xf32, #tpu.memory_space<vmem>>) attributes {dimension_semantics = [#tpu.dimension_semantics<parallel>], iteration_bounds = array<i64: 2>, scalar_prefetch = 0 : i64, scratch_operands = 2 : i64, tpu.core_type = #tpu.core_type<tc>, window_params = [{transform_indices = @transform_0, window_bounds = array<i64: 4, 9, 9, 128>}, {pipeline_mode = #tpu.pipeline_mode<synchronous>, transform_indices = @transform_1, window_bounds = array<i64: 9, 128, 128>}, {pipeline_mode = #tpu.pipeline_mode<synchronous>, transform_indices = @transform_2, window_bounds = array<i64: 1, 128>}, {pipeline_mode = #tpu.pipeline_mode<synchronous>, transform_indices = @transform_3, window_bounds = array<i64: 9, 128, 128>}, {pipeline_mode = #tpu.pipeline_mode<synchronous>, transform_indices = @transform_4, window_bounds = array<i64: 1, 128>}, {pipeline_mode = #tpu.pipeline_mode<synchronous>, transform_indices = @transform_5, window_bounds = array<i64: 128, 128>}, {pipeline_mode = #tpu.pipeline_mode<synchronous>, transform_indices = @transform_6, window_bounds = array<i64: 1, 128>}, {transform_indices = @transform_7, window_bounds = array<i64: 1, 8, 8, 128>}]} {
    %c0 = arith.constant 0 : index
    %c0_0 = arith.constant 0 : index
    %c0_1 = arith.constant 0 : index
    %c0_2 = arith.constant 0 : index
    %0 = vector.load %arg1[%c0, %c0_0, %c0_1, %c0_2] : memref<4x9x9x128xbf16, #tpu.memory_space<vmem>>, vector<1x8x8x128xbf16>
    %1 = vector.shape_cast %0 : vector<1x8x8x128xbf16> to vector<8x8x128xbf16>
    %2 = arith.extf %1 : vector<8x8x128xbf16> to vector<8x8x128xf32>
    %3 = vector.shape_cast %2 : vector<8x8x128xf32> to vector<64x128xf32>
    %4 = arith.truncf %3 : vector<64x128xf32> to vector<64x128xbf16>
    %c0_3 = arith.constant 0 : index
    %c0_4 = arith.constant 0 : index
    %c0_5 = arith.constant 0 : index
    %5 = vector.load %arg2[%c0_3, %c0_4, %c0_5] : memref<9x128x128xbf16, #tpu.memory_space<vmem>>, vector<1x128x128xbf16>
    %6 = vector.shape_cast %5 : vector<1x128x128xbf16> to vector<128x128xbf16>
    %cst = arith.constant dense<0.000000e+00> : vector<64x128xf32>
    %7 = tpu.matmul %4, %6, %cst {dimension_numbers = #tpu.dot_dimension_numbers<[1], [0], [0], [1], [0, 0, 1, 1], [], []>} : vector<64x128xbf16>, vector<128x128xbf16>, vector<64x128xf32> -> vector<64x128xf32>
    %c0_6 = arith.constant 0 : index
    %c0_7 = arith.constant 0 : index
    %8 = vector.load %arg9[%c0_6, %c0_7] : memref<64x128xf32, #tpu.memory_space<vmem>>, vector<64x128xf32>
    tpu.vector_store %arg9[%c0_6, %c0_7], %7 {strides = array<i32>} : memref<64x128xf32, #tpu.memory_space<vmem>>, vector<64x128xf32>,
    %c1 = arith.constant 1 : index
    %c0_8 = arith.constant 0 : index
    %c0_9 = arith.constant 0 : index
    %c0_10 = arith.constant 0 : index
    %9 = vector.load %arg1[%c1, %c0_8, %c0_9, %c0_10] : memref<4x9x9x128xbf16, #tpu.memory_space<vmem>>, vector<1x8x8x128xbf16>
    %10 = vector.shape_cast %9 : vector<1x8x8x128xbf16> to vector<8x8x128xbf16>
    %11 = arith.extf %10 : vector<8x8x128xbf16> to vector<8x8x128xf32>
    %12 = vector.shape_cast %11 : vector<8x8x128xf32> to vector<64x128xf32>
    %13 = arith.truncf %12 : vector<64x128xf32> to vector<64x128xbf16>
    %c1_11 = arith.constant 1 : index
    %c0_12 = arith.constant 0 : index
    %c0_13 = arith.constant 0 : index
    %14 = vector.load %arg2[%c1_11, %c0_12, %c0_13] : memref<9x128x128xbf16, #tpu.memory_space<vmem>>, vector<1x128x128xbf16>
    %15 = vector.shape_cast %14 : vector<1x128x128xbf16> to vector<128x128xbf16>
    %cst_14 = arith.constant dense<0.000000e+00> : vector<64x128xf32>
    %16 = tpu.matmul %13, %15, %cst_14 {dimension_numbers = #tpu.dot_dimension_numbers<[1], [0], [0], [1], [0, 0, 1, 1], [], []>} : vector<64x128xbf16>, vector<128x128xbf16>, vector<64x128xf32> -> vector<64x128xf32>
    %c0_15 = arith.constant 0 : index
    %c0_16 = arith.constant 0 : index
    %17 = vector.load %arg9[%c0_15, %c0_16] : memref<64x128xf32, #tpu.memory_space<vmem>>, vector<64x128xf32>
    %18 = arith.addf %17, %16 : vector<64x128xf32>
    %c0_17 = arith.constant 0 : index
    %c0_18 = arith.constant 0 : index
    %19 = vector.load %arg9[%c0_17, %c0_18] : memref<64x128xf32, #tpu.memory_space<vmem>>, vector<64x128xf32>
    tpu.vector_store %arg9[%c0_17, %c0_18], %18 {strides = array<i32>} : memref<64x128xf32, #tpu.memory_space<vmem>>, vector<64x128xf32>,
    %c0_19 = arith.constant 0 : index
    %c0_20 = arith.constant 0 : index
    %c1_21 = arith.constant 1 : index
    %c0_22 = arith.constant 0 : index
    %20 = vector.load %arg1[%c0_19, %c0_20, %c1_21, %c0_22] : memref<4x9x9x128xbf16, #tpu.memory_space<vmem>>, vector<1x8x8x128xbf16>
    %21 = vector.shape_cast %20 : vector<1x8x8x128xbf16> to vector<8x8x128xbf16>
    %22 = arith.extf %21 : vector<8x8x128xbf16> to vector<8x8x128xf32>
    %23 = vector.shape_cast %22 : vector<8x8x128xf32> to vector<64x128xf32>
    %24 = arith.truncf %23 : vector<64x128xf32> to vector<64x128xbf16>
    %c2 = arith.constant 2 : index
    %c0_23 = arith.constant 0 : index
    %c0_24 = arith.constant 0 : index
    %25 = vector.load %arg2[%c2, %c0_23, %c0_24] : memref<9x128x128xbf16, #tpu.memory_space<vmem>>, vector<1x128x128xbf16>
    %26 = vector.shape_cast %25 : vector<1x128x128xbf16> to vector<128x128xbf16>
    %cst_25 = arith.constant dense<0.000000e+00> : vector<64x128xf32>
    %27 = tpu.matmul %24, %26, %cst_25 {dimension_numbers = #tpu.dot_dimension_numbers<[1], [0], [0], [1], [0, 0, 1, 1], [], []>} : vector<64x128xbf16>, vector<128x128xbf16>, vector<64x128xf32> -> vector<64x128xf32>
    %c0_26 = arith.constant 0 : index
    %c0_27 = arith.constant 0 : index
    %28 = vector.load %arg9[%c0_26, %c0_27] : memref<64x128xf32, #tpu.memory_space<vmem>>, vector<64x128xf32>
    %29 = arith.addf %28, %27 : vector<64x128xf32>
    %c0_28 = arith.constant 0 : index
    %c0_29 = arith.constant 0 : index
    %30 = vector.load %arg9[%c0_28, %c0_29] : memref<64x128xf32, #tpu.memory_space<vmem>>, vector<64x128xf32>
    tpu.vector_store %arg9[%c0_28, %c0_29], %29 {strides = array<i32>} : memref<64x128xf32, #tpu.memory_space<vmem>>, vector<64x128xf32>,
    %c2_30 = arith.constant 2 : index
    %c0_31 = arith.constant 0 : index
    %c0_32 = arith.constant 0 : index
    %c0_33 = arith.constant 0 : index
    %31 = vector.load %arg1[%c2_30, %c0_31, %c0_32, %c0_33] : memref<4x9x9x128xbf16, #tpu.memory_space<vmem>>, vector<1x8x8x128xbf16>
    %32 = vector.shape_cast %31 : vector<1x8x8x128xbf16> to vector<8x8x128xbf16>
    %33 = arith.extf %32 : vector<8x8x128xbf16> to vector<8x8x128xf32>
    %34 = vector.shape_cast %33 : vector<8x8x128xf32> to vector<64x128xf32>
    %35 = arith.truncf %34 : vector<64x128xf32> to vector<64x128xbf16>
    %c3 = arith.constant 3 : index
    %c0_34 = arith.constant 0 : index
    %c0_35 = arith.constant 0 : index
    %36 = vector.load %arg2[%c3, %c0_34, %c0_35] : memref<9x128x128xbf16, #tpu.memory_space<vmem>>, vector<1x128x128xbf16>
    %37 = vector.shape_cast %36 : vector<1x128x128xbf16> to vector<128x128xbf16>
    %cst_36 = arith.constant dense<0.000000e+00> : vector<64x128xf32>
    %38 = tpu.matmul %35, %37, %cst_36 {dimension_numbers = #tpu.dot_dimension_numbers<[1], [0], [0], [1], [0, 0, 1, 1], [], []>} : vector<64x128xbf16>, vector<128x128xbf16>, vector<64x128xf32> -> vector<64x128xf32>
    %c0_37 = arith.constant 0 : index
    %c0_38 = arith.constant 0 : index
    %39 = vector.load %arg9[%c0_37, %c0_38] : memref<64x128xf32, #tpu.memory_space<vmem>>, vector<64x128xf32>
    %40 = arith.addf %39, %38 : vector<64x128xf32>
    %c0_39 = arith.constant 0 : index
    %c0_40 = arith.constant 0 : index
    %41 = vector.load %arg9[%c0_39, %c0_40] : memref<64x128xf32, #tpu.memory_space<vmem>>, vector<64x128xf32>
    tpu.vector_store %arg9[%c0_39, %c0_40], %40 {strides = array<i32>} : memref<64x128xf32, #tpu.memory_space<vmem>>, vector<64x128xf32>,
    %c3_41 = arith.constant 3 : index
    %c0_42 = arith.constant 0 : index
    %c0_43 = arith.constant 0 : index
    %c0_44 = arith.constant 0 : index
    %42 = vector.load %arg1[%c3_41, %c0_42, %c0_43, %c0_44] : memref<4x9x9x128xbf16, #tpu.memory_space<vmem>>, vector<1x8x8x128xbf16>
    %43 = vector.shape_cast %42 : vector<1x8x8x128xbf16> to vector<8x8x128xbf16>
    %44 = arith.extf %43 : vector<8x8x128xbf16> to vector<8x8x128xf32>
    %45 = vector.shape_cast %44 : vector<8x8x128xf32> to vector<64x128xf32>
    %46 = arith.truncf %45 : vector<64x128xf32> to vector<64x128xbf16>
    %c4 = arith.constant 4 : index
    %c0_45 = arith.constant 0 : index
    %c0_46 = arith.constant 0 : index
    %47 = vector.load %arg2[%c4, %c0_45, %c0_46] : memref<9x128x128xbf16, #tpu.memory_space<vmem>>, vector<1x128x128xbf16>
    %48 = vector.shape_cast %47 : vector<1x128x128xbf16> to vector<128x128xbf16>
    %cst_47 = arith.constant dense<0.000000e+00> : vector<64x128xf32>
    %49 = tpu.matmul %46, %48, %cst_47 {dimension_numbers = #tpu.dot_dimension_numbers<[1], [0], [0], [1], [0, 0, 1, 1], [], []>} : vector<64x128xbf16>, vector<128x128xbf16>, vector<64x128xf32> -> vector<64x128xf32>
    %c0_48 = arith.constant 0 : index
    %c0_49 = arith.constant 0 : index
    %50 = vector.load %arg9[%c0_48, %c0_49] : memref<64x128xf32, #tpu.memory_space<vmem>>, vector<64x128xf32>
    %51 = arith.addf %50, %49 : vector<64x128xf32>
    %c0_50 = arith.constant 0 : index
    %c0_51 = arith.constant 0 : index
    %52 = vector.load %arg9[%c0_50, %c0_51] : memref<64x128xf32, #tpu.memory_space<vmem>>, vector<64x128xf32>
    tpu.vector_store %arg9[%c0_50, %c0_51], %51 {strides = array<i32>} : memref<64x128xf32, #tpu.memory_space<vmem>>, vector<64x128xf32>,
    %c2_52 = arith.constant 2 : index
    %c0_53 = arith.constant 0 : index
    %c1_54 = arith.constant 1 : index
    %c0_55 = arith.constant 0 : index
    %53 = vector.load %arg1[%c2_52, %c0_53, %c1_54, %c0_55] : memref<4x9x9x128xbf16, #tpu.memory_space<vmem>>, vector<1x8x8x128xbf16>
    %54 = vector.shape_cast %53 : vector<1x8x8x128xbf16> to vector<8x8x128xbf16>
    %55 = arith.extf %54 : vector<8x8x128xbf16> to vector<8x8x128xf32>
    %56 = vector.shape_cast %55 : vector<8x8x128xf32> to vector<64x128xf32>
    %57 = arith.truncf %56 : vector<64x128xf32> to vector<64x128xbf16>
    %c5 = arith.constant 5 : index
    %c0_56 = arith.constant 0 : index
    %c0_57 = arith.constant 0 : index
    %58 = vector.load %arg2[%c5, %c0_56, %c0_57] : memref<9x128x128xbf16, #tpu.memory_space<vmem>>, vector<1x128x128xbf16>
    %59 = vector.shape_cast %58 : vector<1x128x128xbf16> to vector<128x128xbf16>
    %cst_58 = arith.constant dense<0.000000e+00> : vector<64x128xf32>
    %60 = tpu.matmul %57, %59, %cst_58 {dimension_numbers = #tpu.dot_dimension_numbers<[1], [0], [0], [1], [0, 0, 1, 1], [], []>} : vector<64x128xbf16>, vector<128x128xbf16>, vector<64x128xf32> -> vector<64x128xf32>
    %c0_59 = arith.constant 0 : index
    %c0_60 = arith.constant 0 : index
    %61 = vector.load %arg9[%c0_59, %c0_60] : memref<64x128xf32, #tpu.memory_space<vmem>>, vector<64x128xf32>
    %62 = arith.addf %61, %60 : vector<64x128xf32>
    %c0_61 = arith.constant 0 : index
    %c0_62 = arith.constant 0 : index
    %63 = vector.load %arg9[%c0_61, %c0_62] : memref<64x128xf32, #tpu.memory_space<vmem>>, vector<64x128xf32>
    tpu.vector_store %arg9[%c0_61, %c0_62], %62 {strides = array<i32>} : memref<64x128xf32, #tpu.memory_space<vmem>>, vector<64x128xf32>,
    %c0_63 = arith.constant 0 : index
    %c1_64 = arith.constant 1 : index
    %c0_65 = arith.constant 0 : index
    %c0_66 = arith.constant 0 : index
    %64 = vector.load %arg1[%c0_63, %c1_64, %c0_65, %c0_66] : memref<4x9x9x128xbf16, #tpu.memory_space<vmem>>, vector<1x8x8x128xbf16>
    %65 = vector.shape_cast %64 : vector<1x8x8x128xbf16> to vector<8x8x128xbf16>
    %66 = arith.extf %65 : vector<8x8x128xbf16> to vector<8x8x128xf32>
    %67 = vector.shape_cast %66 : vector<8x8x128xf32> to vector<64x128xf32>
    %68 = arith.truncf %67 : vector<64x128xf32> to vector<64x128xbf16>
    %c6 = arith.constant 6 : index
    %c0_67 = arith.constant 0 : index
    %c0_68 = arith.constant 0 : index
    %69 = vector.load %arg2[%c6, %c0_67, %c0_68] : memref<9x128x128xbf16, #tpu.memory_space<vmem>>, vector<1x128x128xbf16>
    %70 = vector.shape_cast %69 : vector<1x128x128xbf16> to vector<128x128xbf16>
    %cst_69 = arith.constant dense<0.000000e+00> : vector<64x128xf32>
    %71 = tpu.matmul %68, %70, %cst_69 {dimension_numbers = #tpu.dot_dimension_numbers<[1], [0], [0], [1], [0, 0, 1, 1], [], []>} : vector<64x128xbf16>, vector<128x128xbf16>, vector<64x128xf32> -> vector<64x128xf32>
    %c0_70 = arith.constant 0 : index
    %c0_71 = arith.constant 0 : index
    %72 = vector.load %arg9[%c0_70, %c0_71] : memref<64x128xf32, #tpu.memory_space<vmem>>, vector<64x128xf32>
    %73 = arith.addf %72, %71 : vector<64x128xf32>
    %c0_72 = arith.constant 0 : index
    %c0_73 = arith.constant 0 : index
    %74 = vector.load %arg9[%c0_72, %c0_73] : memref<64x128xf32, #tpu.memory_space<vmem>>, vector<64x128xf32>
    tpu.vector_store %arg9[%c0_72, %c0_73], %73 {strides = array<i32>} : memref<64x128xf32, #tpu.memory_space<vmem>>, vector<64x128xf32>,
    %c1_74 = arith.constant 1 : index
    %c1_75 = arith.constant 1 : index
    %c0_76 = arith.constant 0 : index
    %c0_77 = arith.constant 0 : index
    %75 = vector.load %arg1[%c1_74, %c1_75, %c0_76, %c0_77] : memref<4x9x9x128xbf16, #tpu.memory_space<vmem>>, vector<1x8x8x128xbf16>
    %76 = vector.shape_cast %75 : vector<1x8x8x128xbf16> to vector<8x8x128xbf16>
    %77 = arith.extf %76 : vector<8x8x128xbf16> to vector<8x8x128xf32>
    %78 = vector.shape_cast %77 : vector<8x8x128xf32> to vector<64x128xf32>
    %79 = arith.truncf %78 : vector<64x128xf32> to vector<64x128xbf16>
    %c7 = arith.constant 7 : index
    %c0_78 = arith.constant 0 : index
    %c0_79 = arith.constant 0 : index
    %80 = vector.load %arg2[%c7, %c0_78, %c0_79] : memref<9x128x128xbf16, #tpu.memory_space<vmem>>, vector<1x128x128xbf16>
    %81 = vector.shape_cast %80 : vector<1x128x128xbf16> to vector<128x128xbf16>
    %cst_80 = arith.constant dense<0.000000e+00> : vector<64x128xf32>
    %82 = tpu.matmul %79, %81, %cst_80 {dimension_numbers = #tpu.dot_dimension_numbers<[1], [0], [0], [1], [0, 0, 1, 1], [], []>} : vector<64x128xbf16>, vector<128x128xbf16>, vector<64x128xf32> -> vector<64x128xf32>
    %c0_81 = arith.constant 0 : index
    %c0_82 = arith.constant 0 : index
    %83 = vector.load %arg9[%c0_81, %c0_82] : memref<64x128xf32, #tpu.memory_space<vmem>>, vector<64x128xf32>
    %84 = arith.addf %83, %82 : vector<64x128xf32>
    %c0_83 = arith.constant 0 : index
    %c0_84 = arith.constant 0 : index
    %85 = vector.load %arg9[%c0_83, %c0_84] : memref<64x128xf32, #tpu.memory_space<vmem>>, vector<64x128xf32>
    tpu.vector_store %arg9[%c0_83, %c0_84], %84 {strides = array<i32>} : memref<64x128xf32, #tpu.memory_space<vmem>>, vector<64x128xf32>,
    %c0_85 = arith.constant 0 : index
    %c1_86 = arith.constant 1 : index
    %c1_87 = arith.constant 1 : index
    %c0_88 = arith.constant 0 : index
    %86 = vector.load %arg1[%c0_85, %c1_86, %c1_87, %c0_88] : memref<4x9x9x128xbf16, #tpu.memory_space<vmem>>, vector<1x8x8x128xbf16>
    %87 = vector.shape_cast %86 : vector<1x8x8x128xbf16> to vector<8x8x128xbf16>
    %88 = arith.extf %87 : vector<8x8x128xbf16> to vector<8x8x128xf32>
    %89 = vector.shape_cast %88 : vector<8x8x128xf32> to vector<64x128xf32>
    %90 = arith.truncf %89 : vector<64x128xf32> to vector<64x128xbf16>
    %c8 = arith.constant 8 : index
    %c0_89 = arith.constant 0 : index
    %c0_90 = arith.constant 0 : index
    %91 = vector.load %arg2[%c8, %c0_89, %c0_90] : memref<9x128x128xbf16, #tpu.memory_space<vmem>>, vector<1x128x128xbf16>
    %92 = vector.shape_cast %91 : vector<1x128x128xbf16> to vector<128x128xbf16>
    %cst_91 = arith.constant dense<0.000000e+00> : vector<64x128xf32>
    %93 = tpu.matmul %90, %92, %cst_91 {dimension_numbers = #tpu.dot_dimension_numbers<[1], [0], [0], [1], [0, 0, 1, 1], [], []>} : vector<64x128xbf16>, vector<128x128xbf16>, vector<64x128xf32> -> vector<64x128xf32>
    %c0_92 = arith.constant 0 : index
    %c0_93 = arith.constant 0 : index
    %94 = vector.load %arg9[%c0_92, %c0_93] : memref<64x128xf32, #tpu.memory_space<vmem>>, vector<64x128xf32>
    %95 = arith.addf %94, %93 : vector<64x128xf32>
    %c0_94 = arith.constant 0 : index
    %c0_95 = arith.constant 0 : index
    %96 = vector.load %arg9[%c0_94, %c0_95] : memref<64x128xf32, #tpu.memory_space<vmem>>, vector<64x128xf32>
    tpu.vector_store %arg9[%c0_94, %c0_95], %95 {strides = array<i32>} : memref<64x128xf32, #tpu.memory_space<vmem>>, vector<64x128xf32>,
    %c0_96 = arith.constant 0 : index
    %c0_97 = arith.constant 0 : index
    %97 = vector.load %arg9[%c0_96, %c0_97] : memref<64x128xf32, #tpu.memory_space<vmem>>, vector<64x128xf32>
    %c0_98 = arith.constant 0 : index
    %c0_99 = arith.constant 0 : index
    %98 = vector.load %arg3[%c0_98, %c0_99] : memref<1x128xf32, #tpu.memory_space<vmem>>, vector<1x128xf32>
    %99 = vector.broadcast %98 : vector<1x128xf32> to vector<64x128xf32>
    %100 = arith.addf %97, %99 : vector<64x128xf32>
    %cst_100 = arith.constant 0.000000e+00 : f32
    %101 = vector.broadcast %cst_100 : f32 to vector<64x128xf32>
    %102 = arith.maximumf %100, %101 : vector<64x128xf32>
    %cst_101 = arith.constant 0.000000e+00 : f32
    %103 = vector.broadcast %cst_101 : f32 to vector<10x10x128xf32>
    %c0_102 = arith.constant 0 : index
    %c0_103 = arith.constant 0 : index
    %c0_104 = arith.constant 0 : index
    %104 = vector.load %arg10[%c0_102, %c0_103, %c0_104] : memref<10x10x128xf32, #tpu.memory_space<vmem>>, vector<10x10x128xf32>
    tpu.vector_store %arg10[%c0_102, %c0_103, %c0_104], %103 {strides = array<i32>} : memref<10x10x128xf32, #tpu.memory_space<vmem>>, vector<10x10x128xf32>,
    %105 = vector.shape_cast %102 : vector<64x128xf32> to vector<8x8x128xf32>
    %c1_105 = arith.constant 1 : index
    %c1_106 = arith.constant 1 : index
    %c0_107 = arith.constant 0 : index
    %106 = vector.load %arg10[%c1_105, %c1_106, %c0_107] : memref<10x10x128xf32, #tpu.memory_space<vmem>>, vector<8x8x128xf32>
    tpu.vector_store %arg10[%c1_105, %c1_106, %c0_107], %105 {strides = array<i32>} : memref<10x10x128xf32, #tpu.memory_space<vmem>>, vector<8x8x128xf32>,
    %c3_108 = arith.constant 3 : index
    %c0_109 = arith.constant 0 : index
    %c0_110 = arith.constant 0 : index
    %c0_111 = arith.constant 0 : index
    %107 = vector.load %arg1[%c3_108, %c0_109, %c0_110, %c0_111] : memref<4x9x9x128xbf16, #tpu.memory_space<vmem>>, vector<1x8x8x128xbf16>
    %108 = vector.shape_cast %107 : vector<1x8x8x128xbf16> to vector<8x8x128xbf16>
    %109 = arith.extf %108 : vector<8x8x128xbf16> to vector<8x8x128xf32>
    %110 = vector.shape_cast %109 : vector<8x8x128xf32> to vector<64x128xf32>
    %111 = arith.truncf %110 : vector<64x128xf32> to vector<64x128xbf16>
    %c0_112 = arith.constant 0 : index
    %c0_113 = arith.constant 0 : index
    %112 = vector.load %arg6[%c0_112, %c0_113] : memref<128x128xbf16, #tpu.memory_space<vmem>>, vector<128x128xbf16>
    %cst_114 = arith.constant dense<0.000000e+00> : vector<64x128xf32>
    %113 = tpu.matmul %111, %112, %cst_114 {dimension_numbers = #tpu.dot_dimension_numbers<[1], [0], [0], [1], [0, 0, 1, 1], [], []>} : vector<64x128xbf16>, vector<128x128xbf16>, vector<64x128xf32> -> vector<64x128xf32>
    %c0_115 = arith.constant 0 : index
    %c0_116 = arith.constant 0 : index
    %114 = vector.load %arg7[%c0_115, %c0_116] : memref<1x128xf32, #tpu.memory_space<vmem>>, vector<1x128xf32>
    %115 = vector.broadcast %114 : vector<1x128xf32> to vector<64x128xf32>
    %116 = arith.addf %113, %115 : vector<64x128xf32>
    %c0_117 = arith.constant 0 : index
    %c0_118 = arith.constant 0 : index
    %117 = vector.load %arg9[%c0_117, %c0_118] : memref<64x128xf32, #tpu.memory_space<vmem>>, vector<64x128xf32>
    tpu.vector_store %arg9[%c0_117, %c0_118], %116 {strides = array<i32>} : memref<64x128xf32, #tpu.memory_space<vmem>>, vector<64x128xf32>,
    %c0_119 = arith.constant 0 : index
    %c0_120 = arith.constant 0 : index
    %c0_121 = arith.constant 0 : index
    %118 = vector.load %arg10[%c0_119, %c0_120, %c0_121] : memref<10x10x128xf32, #tpu.memory_space<vmem>>, vector<8x8x128xf32>
    %119 = vector.shape_cast %118 : vector<8x8x128xf32> to vector<64x128xf32>
    %c0_122 = arith.constant 0 : index
    %c0_123 = arith.constant 0 : index
    %120 = vector.load %arg9[%c0_122, %c0_123] : memref<64x128xf32, #tpu.memory_space<vmem>>, vector<64x128xf32>
    %121 = arith.truncf %119 : vector<64x128xf32> to vector<64x128xbf16>
    %c0_124 = arith.constant 0 : index
    %c0_125 = arith.constant 0 : index
    %c0_126 = arith.constant 0 : index
    %122 = vector.load %arg4[%c0_124, %c0_125, %c0_126] : memref<9x128x128xbf16, #tpu.memory_space<vmem>>, vector<1x128x128xbf16>
    %123 = vector.shape_cast %122 : vector<1x128x128xbf16> to vector<128x128xbf16>
    %cst_127 = arith.constant dense<0.000000e+00> : vector<64x128xf32>
    %124 = tpu.matmul %121, %123, %cst_127 {dimension_numbers = #tpu.dot_dimension_numbers<[1], [0], [0], [1], [0, 0, 1, 1], [], []>} : vector<64x128xbf16>, vector<128x128xbf16>, vector<64x128xf32> -> vector<64x128xf32>
    %125 = arith.addf %120, %124 : vector<64x128xf32>
    %c0_128 = arith.constant 0 : index
    %c0_129 = arith.constant 0 : index
    %126 = vector.load %arg9[%c0_128, %c0_129] : memref<64x128xf32, #tpu.memory_space<vmem>>, vector<64x128xf32>
    tpu.vector_store %arg9[%c0_128, %c0_129], %125 {strides = array<i32>} : memref<64x128xf32, #tpu.memory_space<vmem>>, vector<64x128xf32>,
    %c0_130 = arith.constant 0 : index
    %c1_131 = arith.constant 1 : index
    %c0_132 = arith.constant 0 : index
    %127 = vector.load %arg10[%c0_130, %c1_131, %c0_132] : memref<10x10x128xf32, #tpu.memory_space<vmem>>, vector<8x8x128xf32>
    %128 = vector.shape_cast %127 : vector<8x8x128xf32> to vector<64x128xf32>
    %c0_133 = arith.constant 0 : index
    %c0_134 = arith.constant 0 : index
    %129 = vector.load %arg9[%c0_133, %c0_134] : memref<64x128xf32, #tpu.memory_space<vmem>>, vector<64x128xf32>
    %130 = arith.truncf %128 : vector<64x128xf32> to vector<64x128xbf16>
    %c1_135 = arith.constant 1 : index
    %c0_136 = arith.constant 0 : index
    %c0_137 = arith.constant 0 : index
    %131 = vector.load %arg4[%c1_135, %c0_136, %c0_137] : memref<9x128x128xbf16, #tpu.memory_space<vmem>>, vector<1x128x128xbf16>
    %132 = vector.shape_cast %131 : vector<1x128x128xbf16> to vector<128x128xbf16>
    %cst_138 = arith.constant dense<0.000000e+00> : vector<64x128xf32>
    %133 = tpu.matmul %130, %132, %cst_138 {dimension_numbers = #tpu.dot_dimension_numbers<[1], [0], [0], [1], [0, 0, 1, 1], [], []>} : vector<64x128xbf16>, vector<128x128xbf16>, vector<64x128xf32> -> vector<64x128xf32>
    %134 = arith.addf %129, %133 : vector<64x128xf32>
    %c0_139 = arith.constant 0 : index
    %c0_140 = arith.constant 0 : index
    %135 = vector.load %arg9[%c0_139, %c0_140] : memref<64x128xf32, #tpu.memory_space<vmem>>, vector<64x128xf32>
    tpu.vector_store %arg9[%c0_139, %c0_140], %134 {strides = array<i32>} : memref<64x128xf32, #tpu.memory_space<vmem>>, vector<64x128xf32>,
    %c0_141 = arith.constant 0 : index
    %c2_142 = arith.constant 2 : index
    %c0_143 = arith.constant 0 : index
    %136 = vector.load %arg10[%c0_141, %c2_142, %c0_143] : memref<10x10x128xf32, #tpu.memory_space<vmem>>, vector<8x8x128xf32>
    %137 = vector.shape_cast %136 : vector<8x8x128xf32> to vector<64x128xf32>
    %c0_144 = arith.constant 0 : index
    %c0_145 = arith.constant 0 : index
    %138 = vector.load %arg9[%c0_144, %c0_145] : memref<64x128xf32, #tpu.memory_space<vmem>>, vector<64x128xf32>
    %139 = arith.truncf %137 : vector<64x128xf32> to vector<64x128xbf16>
    %c2_146 = arith.constant 2 : index
    %c0_147 = arith.constant 0 : index
    %c0_148 = arith.constant 0 : index
    %140 = vector.load %arg4[%c2_146, %c0_147, %c0_148] : memref<9x128x128xbf16, #tpu.memory_space<vmem>>, vector<1x128x128xbf16>
    %141 = vector.shape_cast %140 : vector<1x128x128xbf16> to vector<128x128xbf16>
    %cst_149 = arith.constant dense<0.000000e+00> : vector<64x128xf32>
    %142 = tpu.matmul %139, %141, %cst_149 {dimension_numbers = #tpu.dot_dimension_numbers<[1], [0], [0], [1], [0, 0, 1, 1], [], []>} : vector<64x128xbf16>, vector<128x128xbf16>, vector<64x128xf32> -> vector<64x128xf32>
    %143 = arith.addf %138, %142 : vector<64x128xf32>
    %c0_150 = arith.constant 0 : index
    %c0_151 = arith.constant 0 : index
    %144 = vector.load %arg9[%c0_150, %c0_151] : memref<64x128xf32, #tpu.memory_space<vmem>>, vector<64x128xf32>
    tpu.vector_store %arg9[%c0_150, %c0_151], %143 {strides = array<i32>} : memref<64x128xf32, #tpu.memory_space<vmem>>, vector<64x128xf32>,
    %c1_152 = arith.constant 1 : index
    %c0_153 = arith.constant 0 : index
    %c0_154 = arith.constant 0 : index
    %145 = vector.load %arg10[%c1_152, %c0_153, %c0_154] : memref<10x10x128xf32, #tpu.memory_space<vmem>>, vector<8x8x128xf32>
    %146 = vector.shape_cast %145 : vector<8x8x128xf32> to vector<64x128xf32>
    %c0_155 = arith.constant 0 : index
    %c0_156 = arith.constant 0 : index
    %147 = vector.load %arg9[%c0_155, %c0_156] : memref<64x128xf32, #tpu.memory_space<vmem>>, vector<64x128xf32>
    %148 = arith.truncf %146 : vector<64x128xf32> to vector<64x128xbf16>
    %c3_157 = arith.constant 3 : index
    %c0_158 = arith.constant 0 : index
    %c0_159 = arith.constant 0 : index
    %149 = vector.load %arg4[%c3_157, %c0_158, %c0_159] : memref<9x128x128xbf16, #tpu.memory_space<vmem>>, vector<1x128x128xbf16>
    %150 = vector.shape_cast %149 : vector<1x128x128xbf16> to vector<128x128xbf16>
    %cst_160 = arith.constant dense<0.000000e+00> : vector<64x128xf32>
    %151 = tpu.matmul %148, %150, %cst_160 {dimension_numbers = #tpu.dot_dimension_numbers<[1], [0], [0], [1], [0, 0, 1, 1], [], []>} : vector<64x128xbf16>, vector<128x128xbf16>, vector<64x128xf32> -> vector<64x128xf32>
    %152 = arith.addf %147, %151 : vector<64x128xf32>
    %c0_161 = arith.constant 0 : index
    %c0_162 = arith.constant 0 : index
    %153 = vector.load %arg9[%c0_161, %c0_162] : memref<64x128xf32, #tpu.memory_space<vmem>>, vector<64x128xf32>
    tpu.vector_store %arg9[%c0_161, %c0_162], %152 {strides = array<i32>} : memref<64x128xf32, #tpu.memory_space<vmem>>, vector<64x128xf32>,
    %c1_163 = arith.constant 1 : index
    %c1_164 = arith.constant 1 : index
    %c0_165 = arith.constant 0 : index
    %154 = vector.load %arg10[%c1_163, %c1_164, %c0_165] : memref<10x10x128xf32, #tpu.memory_space<vmem>>, vector<8x8x128xf32>
    %155 = vector.shape_cast %154 : vector<8x8x128xf32> to vector<64x128xf32>
    %c0_166 = arith.constant 0 : index
    %c0_167 = arith.constant 0 : index
    %156 = vector.load %arg9[%c0_166, %c0_167] : memref<64x128xf32, #tpu.memory_space<vmem>>, vector<64x128xf32>
    %157 = arith.truncf %155 : vector<64x128xf32> to vector<64x128xbf16>
    %c4_168 = arith.constant 4 : index
    %c0_169 = arith.constant 0 : index
    %c0_170 = arith.constant 0 : index
    %158 = vector.load %arg4[%c4_168, %c0_169, %c0_170] : memref<9x128x128xbf16, #tpu.memory_space<vmem>>, vector<1x128x128xbf16>
    %159 = vector.shape_cast %158 : vector<1x128x128xbf16> to vector<128x128xbf16>
    %cst_171 = arith.constant dense<0.000000e+00> : vector<64x128xf32>
    %160 = tpu.matmul %157, %159, %cst_171 {dimension_numbers = #tpu.dot_dimension_numbers<[1], [0], [0], [1], [0, 0, 1, 1], [], []>} : vector<64x128xbf16>, vector<128x128xbf16>, vector<64x128xf32> -> vector<64x128xf32>
    %161 = arith.addf %156, %160 : vector<64x128xf32>
    %c0_172 = arith.constant 0 : index
    %c0_173 = arith.constant 0 : index
    %162 = vector.load %arg9[%c0_172, %c0_173] : memref<64x128xf32, #tpu.memory_space<vmem>>, vector<64x128xf32>
    tpu.vector_store %arg9[%c0_172, %c0_173], %161 {strides = array<i32>} : memref<64x128xf32, #tpu.memory_space<vmem>>, vector<64x128xf32>,
    %c1_174 = arith.constant 1 : index
    %c2_175 = arith.constant 2 : index
    %c0_176 = arith.constant 0 : index
    %163 = vector.load %arg10[%c1_174, %c2_175, %c0_176] : memref<10x10x128xf32, #tpu.memory_space<vmem>>, vector<8x8x128xf32>
    %164 = vector.shape_cast %163 : vector<8x8x128xf32> to vector<64x128xf32>
    %c0_177 = arith.constant 0 : index
    %c0_178 = arith.constant 0 : index
    %165 = vector.load %arg9[%c0_177, %c0_178] : memref<64x128xf32, #tpu.memory_space<vmem>>, vector<64x128xf32>
    %166 = arith.truncf %164 : vector<64x128xf32> to vector<64x128xbf16>
    %c5_179 = arith.constant 5 : index
    %c0_180 = arith.constant 0 : index
    %c0_181 = arith.constant 0 : index
    %167 = vector.load %arg4[%c5_179, %c0_180, %c0_181] : memref<9x128x128xbf16, #tpu.memory_space<vmem>>, vector<1x128x128xbf16>
    %168 = vector.shape_cast %167 : vector<1x128x128xbf16> to vector<128x128xbf16>
    %cst_182 = arith.constant dense<0.000000e+00> : vector<64x128xf32>
    %169 = tpu.matmul %166, %168, %cst_182 {dimension_numbers = #tpu.dot_dimension_numbers<[1], [0], [0], [1], [0, 0, 1, 1], [], []>} : vector<64x128xbf16>, vector<128x128xbf16>, vector<64x128xf32> -> vector<64x128xf32>
    %170 = arith.addf %165, %169 : vector<64x128xf32>
    %c0_183 = arith.constant 0 : index
    %c0_184 = arith.constant 0 : index
    %171 = vector.load %arg9[%c0_183, %c0_184] : memref<64x128xf32, #tpu.memory_space<vmem>>, vector<64x128xf32>
    tpu.vector_store %arg9[%c0_183, %c0_184], %170 {strides = array<i32>} : memref<64x128xf32, #tpu.memory_space<vmem>>, vector<64x128xf32>,
    %c2_185 = arith.constant 2 : index
    %c0_186 = arith.constant 0 : index
    %c0_187 = arith.constant 0 : index
    %172 = vector.load %arg10[%c2_185, %c0_186, %c0_187] : memref<10x10x128xf32, #tpu.memory_space<vmem>>, vector<8x8x128xf32>
    %173 = vector.shape_cast %172 : vector<8x8x128xf32> to vector<64x128xf32>
    %c0_188 = arith.constant 0 : index
    %c0_189 = arith.constant 0 : index
    %174 = vector.load %arg9[%c0_188, %c0_189] : memref<64x128xf32, #tpu.memory_space<vmem>>, vector<64x128xf32>
    %175 = arith.truncf %173 : vector<64x128xf32> to vector<64x128xbf16>
    %c6_190 = arith.constant 6 : index
    %c0_191 = arith.constant 0 : index
    %c0_192 = arith.constant 0 : index
    %176 = vector.load %arg4[%c6_190, %c0_191, %c0_192] : memref<9x128x128xbf16, #tpu.memory_space<vmem>>, vector<1x128x128xbf16>
    %177 = vector.shape_cast %176 : vector<1x128x128xbf16> to vector<128x128xbf16>
    %cst_193 = arith.constant dense<0.000000e+00> : vector<64x128xf32>
    %178 = tpu.matmul %175, %177, %cst_193 {dimension_numbers = #tpu.dot_dimension_numbers<[1], [0], [0], [1], [0, 0, 1, 1], [], []>} : vector<64x128xbf16>, vector<128x128xbf16>, vector<64x128xf32> -> vector<64x128xf32>
    %179 = arith.addf %174, %178 : vector<64x128xf32>
    %c0_194 = arith.constant 0 : index
    %c0_195 = arith.constant 0 : index
    %180 = vector.load %arg9[%c0_194, %c0_195] : memref<64x128xf32, #tpu.memory_space<vmem>>, vector<64x128xf32>
    tpu.vector_store %arg9[%c0_194, %c0_195], %179 {strides = array<i32>} : memref<64x128xf32, #tpu.memory_space<vmem>>, vector<64x128xf32>,
    %c2_196 = arith.constant 2 : index
    %c1_197 = arith.constant 1 : index
    %c0_198 = arith.constant 0 : index
    %181 = vector.load %arg10[%c2_196, %c1_197, %c0_198] : memref<10x10x128xf32, #tpu.memory_space<vmem>>, vector<8x8x128xf32>
    %182 = vector.shape_cast %181 : vector<8x8x128xf32> to vector<64x128xf32>
    %c0_199 = arith.constant 0 : index
    %c0_200 = arith.constant 0 : index
    %183 = vector.load %arg9[%c0_199, %c0_200] : memref<64x128xf32, #tpu.memory_space<vmem>>, vector<64x128xf32>
    %184 = arith.truncf %182 : vector<64x128xf32> to vector<64x128xbf16>
    %c7_201 = arith.constant 7 : index
    %c0_202 = arith.constant 0 : index
    %c0_203 = arith.constant 0 : index
    %185 = vector.load %arg4[%c7_201, %c0_202, %c0_203] : memref<9x128x128xbf16, #tpu.memory_space<vmem>>, vector<1x128x128xbf16>
    %186 = vector.shape_cast %185 : vector<1x128x128xbf16> to vector<128x128xbf16>
    %cst_204 = arith.constant dense<0.000000e+00> : vector<64x128xf32>
    %187 = tpu.matmul %184, %186, %cst_204 {dimension_numbers = #tpu.dot_dimension_numbers<[1], [0], [0], [1], [0, 0, 1, 1], [], []>} : vector<64x128xbf16>, vector<128x128xbf16>, vector<64x128xf32> -> vector<64x128xf32>
    %188 = arith.addf %183, %187 : vector<64x128xf32>
    %c0_205 = arith.constant 0 : index
    %c0_206 = arith.constant 0 : index
    %189 = vector.load %arg9[%c0_205, %c0_206] : memref<64x128xf32, #tpu.memory_space<vmem>>, vector<64x128xf32>
    tpu.vector_store %arg9[%c0_205, %c0_206], %188 {strides = array<i32>} : memref<64x128xf32, #tpu.memory_space<vmem>>, vector<64x128xf32>,
    %c2_207 = arith.constant 2 : index
    %c2_208 = arith.constant 2 : index
    %c0_209 = arith.constant 0 : index
    %190 = vector.load %arg10[%c2_207, %c2_208, %c0_209] : memref<10x10x128xf32, #tpu.memory_space<vmem>>, vector<8x8x128xf32>
    %191 = vector.shape_cast %190 : vector<8x8x128xf32> to vector<64x128xf32>
    %c0_210 = arith.constant 0 : index
    %c0_211 = arith.constant 0 : index
    %192 = vector.load %arg9[%c0_210, %c0_211] : memref<64x128xf32, #tpu.memory_space<vmem>>, vector<64x128xf32>
    %193 = arith.truncf %191 : vector<64x128xf32> to vector<64x128xbf16>
    %c8_212 = arith.constant 8 : index
    %c0_213 = arith.constant 0 : index
    %c0_214 = arith.constant 0 : index
    %194 = vector.load %arg4[%c8_212, %c0_213, %c0_214] : memref<9x128x128xbf16, #tpu.memory_space<vmem>>, vector<1x128x128xbf16>
    %195 = vector.shape_cast %194 : vector<1x128x128xbf16> to vector<128x128xbf16>
    %cst_215 = arith.constant dense<0.000000e+00> : vector<64x128xf32>
    %196 = tpu.matmul %193, %195, %cst_215 {dimension_numbers = #tpu.dot_dimension_numbers<[1], [0], [0], [1], [0, 0, 1, 1], [], []>} : vector<64x128xbf16>, vector<128x128xbf16>, vector<64x128xf32> -> vector<64x128xf32>
    %197 = arith.addf %192, %196 : vector<64x128xf32>
    %c0_216 = arith.constant 0 : index
    %c0_217 = arith.constant 0 : index
    %198 = vector.load %arg9[%c0_216, %c0_217] : memref<64x128xf32, #tpu.memory_space<vmem>>, vector<64x128xf32>
    tpu.vector_store %arg9[%c0_216, %c0_217], %197 {strides = array<i32>} : memref<64x128xf32, #tpu.memory_space<vmem>>, vector<64x128xf32>,
    %c0_218 = arith.constant 0 : index
    %c0_219 = arith.constant 0 : index
    %199 = vector.load %arg9[%c0_218, %c0_219] : memref<64x128xf32, #tpu.memory_space<vmem>>, vector<64x128xf32>
    %c0_220 = arith.constant 0 : index
    %c0_221 = arith.constant 0 : index
    %200 = vector.load %arg5[%c0_220, %c0_221] : memref<1x128xf32, #tpu.memory_space<vmem>>, vector<1x128xf32>
    %201 = vector.broadcast %200 : vector<1x128xf32> to vector<64x128xf32>
    %202 = arith.addf %199, %201 : vector<64x128xf32>
    %cst_222 = arith.constant 0.000000e+00 : f32
    %203 = vector.broadcast %cst_222 : f32 to vector<64x128xf32>
    %204 = arith.maximumf %202, %203 : vector<64x128xf32>
    %205 = vector.shape_cast %204 : vector<64x128xf32> to vector<1x8x8x128xf32>
    %c0_223 = arith.constant 0 : index
    %c0_224 = arith.constant 0 : index
    %c0_225 = arith.constant 0 : index
    %c0_226 = arith.constant 0 : index
    %206 = vector.load %arg8[%c0_223, %c0_224, %c0_225, %c0_226] : memref<1x8x8x128xf32, #tpu.memory_space<vmem>>, vector<1x8x8x128xf32>
    tpu.vector_store %arg8[%c0_223, %c0_224, %c0_225, %c0_226], %205 {strides = array<i32>} : memref<1x8x8x128xf32, #tpu.memory_space<vmem>>, vector<1x8x8x128xf32>,
    return
  }
  func.func @transform_0(%arg0: i32) -> (i32, i32, i32, i32) {
    %c0_i32 = arith.constant 0 : i32
    %c0_i32_0 = arith.constant 0 : i32
    %c0_i32_1 = arith.constant 0 : i32
    %c0_i32_2 = arith.constant 0 : i32
    return %arg0, %c0_i32, %c0_i32_0, %c0_i32_1 : i32, i32, i32, i32
  }
  func.func @transform_1(%arg0: i32) -> (i32, i32, i32) {
    %c0_i32 = arith.constant 0 : i32
    %c0_i32_0 = arith.constant 0 : i32
    %c0_i32_1 = arith.constant 0 : i32
    %c0_i32_2 = arith.constant 0 : i32
    return %c0_i32, %c0_i32_0, %c0_i32_1 : i32, i32, i32
  }
  func.func @transform_2(%arg0: i32) -> (i32, i32) {
    %c0_i32 = arith.constant 0 : i32
    %c0_i32_0 = arith.constant 0 : i32
    %c0_i32_1 = arith.constant 0 : i32
    return %c0_i32, %c0_i32_0 : i32, i32
  }
  func.func @transform_3(%arg0: i32) -> (i32, i32, i32) {
    %c0_i32 = arith.constant 0 : i32
    %c0_i32_0 = arith.constant 0 : i32
    %c0_i32_1 = arith.constant 0 : i32
    %c0_i32_2 = arith.constant 0 : i32
    return %c0_i32, %c0_i32_0, %c0_i32_1 : i32, i32, i32
  }
  func.func @transform_4(%arg0: i32) -> (i32, i32) {
    %c0_i32 = arith.constant 0 : i32
    %c0_i32_0 = arith.constant 0 : i32
    %c0_i32_1 = arith.constant 0 : i32
    return %c0_i32, %c0_i32_0 : i32, i32
  }
  func.func @transform_5(%arg0: i32) -> (i32, i32) {
    %c0_i32 = arith.constant 0 : i32
    %c0_i32_0 = arith.constant 0 : i32
    %c0_i32_1 = arith.constant 0 : i32
    return %c0_i32, %c0_i32_0 : i32, i32
  }
  func.func @transform_6(%arg0: i32) -> (i32, i32) {
    %c0_i32 = arith.constant 0 : i32
    %c0_i32_0 = arith.constant 0 : i32
    %c0_i32_1 = arith.constant 0 : i32
    return %c0_i32, %c0_i32_0 : i32, i32
  }
  func.func @transform_7(%arg0: i32) -> (i32, i32, i32, i32) {
    %c0_i32 = arith.constant 0 : i32
    %c0_i32_0 = arith.constant 0 : i32
    %c0_i32_1 = arith.constant 0 : i32
    %c0_i32_2 = arith.constant 0 : i32
    return %arg0, %c0_i32, %c0_i32_0, %c0_i32_1 : i32, i32, i32, i32
  }
}

</mosaic_0001>

<llo_original>
// kernel: tpu_custom_call.1
$region0: #{tpu_custom_call.1}
  #allocation0 [shape = 'u32[]', space=smem, size = 0x4, offset = 0x4, fixed_abs, tag = 'smem constant byte address 0x4 - core index']
  #allocation1 [shape = 'u32[144,128]{1,0:T(1,128)}', space=vmem, size = 0x12000, scoped, tag = 'internal scratch']
  #allocation2 [shape = 'f32[64,128]{1,0:T(8,128)}', space=vmem, size = 0x8000, scoped, tag = 'scratch operand']
  #allocation3 [shape = 'f32[10,10,128]{2,1,0:T(8,128)}', space=vmem, size = 0x14000, scoped, tag = 'scratch operand']
  %s0 = inlined_call_operand.vmem [shape: bf16[8,9,9,128], index: 0, kind: input, shape index: {}]
  %s1 = inlined_call_operand.vmem [shape: bf16[9,128,128], index: 1, kind: input, shape index: {}]
  %s2 = inlined_call_operand.vmem [shape: f32[1,128], index: 2, kind: input, shape index: {}]
  %s3 = inlined_call_operand.hbm [shape: bf16[9,128,128], index: 3, kind: input, shape index: {}]
  %s4 = inlined_call_operand.vmem [shape: f32[1,128], index: 4, kind: input, shape index: {}]
  %s5 = inlined_call_operand.vmem [shape: bf16[128,128], index: 5, kind: input, shape index: {}]
  %s6 = inlined_call_operand.vmem [shape: f32[1,128], index: 6, kind: input, shape index: {}]
  %s7 = inlined_call_operand.hbm [shape: f32[2,8,8,128], index: 7, kind: output, shape index: {}]
  %s8 = sld [smem:[#allocation0]]
  $region65: #{tpu_custom_call.1} parent=0
    _
  %s10 = ssub.s32 1, %s8
  %s11 = scalar_select 0, %s10, %s8
  $region1: #{tpu_custom_call.1} parent=0
    #allocation4 [shape = 'u8[294912]{0}', space=vmem, size = 0x48000, scoped, tag = 'input window, operand 3, single buffered']
    #allocation5 [shape = 's32[2]{0}', space=sflag, size = 0x8, scoped, tag = 'scoped memory for tpu_custom_call.1']
    #allocation6 [shape = 's32[2]{0}', space=sflag, size = 0x8, scoped, tag = 'scoped memory for tpu_custom_call.1']
    #allocation7 [shape = 'u8[65536]{0}', space=vmem, size = 0x10000, scoped, tag = 'output window, operand 0']
    %12 = vsyncpa [#allocation5], 0
    %13 = vsyncpa [#allocation6], 0
    %s14 = scalar_lea.sflag [#allocation6], 1
    %15 = vsyncpa %s14, 0
    loop: start=0, step=1, limit=4
    $region2: #{tpu_custom_call.1} parent=1 // loop_pre_header
      _
    $region3: #{tpu_custom_call.1} parent=1 // loop_header
      %s17 = sphi 0, %s21
      %p18 = scmp.ge.s32.totalorder %s17, 4
      %s27 = sphi 0, %s29
      %s30 = sphi 0, %s27
      %s31 = sphi 0, %s30
      %s47 = sphi 0, %s31
      %s51 = sphi 0, %s51
      %s53 = sphi 0, %s51
      %s54 = sphi 0, %s53
      %s68 = sphi 0, %s54
      %s72 = sphi 0, %s72
      %s74 = sphi 0, %s72
      %s75 = sphi 0, %s74
      %s89 = sphi 0, %s75
      %s93 = sphi 0, %s93
      %s95 = sphi 0, %s93
      %s96 = sphi 0, %s95
      %s110 = sphi 0, %s96
      %s114 = sphi 0, %s114
      %s116 = sphi 0, %s114
      %s117 = sphi 0, %s116
      %s131 = sphi 0, %s117
      %s135 = sphi 0, %s135
      %s137 = sphi 0, %s135
      %s138 = sphi 0, %s137
      %s152 = sphi 0, %s138
      %s156 = sphi 0, %s156
      %s158 = sphi 0, %s156
      %s159 = sphi 0, %s158
      %s173 = sphi 0, %s159
      %s179 = sphi 0, %s181
      %s182 = sphi 0, %s179
      %s183 = sphi 0, %s182
      %s199 = sphi 0, %s183
    $region4: #{tpu_custom_call.1} parent=1 // loop_header_branch
      %20 = sbr.rel (%p18) target = $region8
    $region5: #{tpu_custom_call.1} parent=1 // loop_body
      %s22 = ssub.s32 %s17, 1
      %s23 = ssub.s32 %s17, 2
      %s24 = sadd.s32 %s17, 1
      %s25 = ssub.s32 %s17, %s24
      %p26 = scmp.eq.s32.totalorder %s25, 0
      %s28 = sadd.s32 %s27, 1
      %s29 = scalar_select %p26, %s27, %s28
      %p32 = pneg %p26
      %p33 = scmp.eq.s32.totalorder %s17, 1
      %p34 = por %p32, %p33
      %p35 = scmp.ne.s32.totalorder %s27, %s30
      %p36 = scmp.eq.s32.totalorder %s17, 0
      %p37 = por %p35, %p36
      %p38 = scmp.ne.s32.totalorder %s27, %s30
      %p39 = scmp.eq.s32.totalorder %s22, 1
      %p40 = por %p38, %p39
      %p41 = scmp.ne.s32.totalorder %s30, %s31
      %p42 = scmp.eq.s32.totalorder %s22, 0
      %p43 = por %p41, %p42
      %p44 = scmp.ne.s32.totalorder %s30, %s31
      %p45 = scmp.eq.s32.totalorder %s23, 1
      %p46 = por %p44, %p45
      %p48 = scmp.ne.s32.totalorder %s31, %s47
      %p49 = scmp.eq.s32.totalorder %s23, 0
      %p50 = por %p48, %p49
      %s52 = sadd.s32 %s51, 1
      %p55 = scmp.eq.s32.totalorder %s17, 1
      %p56 = scmp.ne.s32.totalorder %s51, %s53
      %p57 = scmp.eq.s32.totalorder %s17, 0
      %p58 = por %p56, %p57
      %p59 = scmp.ne.s32.totalorder %s51, %s53
      %p60 = scmp.eq.s32.totalorder %s22, 1
      %p61 = por %p59, %p60
      %p62 = scmp.ne.s32.totalorder %s53, %s54
      %p63 = scmp.eq.s32.totalorder %s22, 0
      %p64 = por %p62, %p63
      %p65 = scmp.ne.s32.totalorder %s53, %s54
      %p66 = scmp.eq.s32.totalorder %s23, 1
      %p67 = por %p65, %p66
      %p69 = scmp.ne.s32.totalorder %s54, %s68
      %p70 = scmp.eq.s32.totalorder %s23, 0
      %p71 = por %p69, %p70
      %s73 = sadd.s32 %s72, 1
      %p76 = scmp.eq.s32.totalorder %s17, 1
      %p77 = scmp.ne.s32.totalorder %s72, %s74
      %p78 = scmp.eq.s32.totalorder %s17, 0
      %p79 = por %p77, %p78
      %p80 = scmp.ne.s32.totalorder %s72, %s74
      %p81 = scmp.eq.s32.totalorder %s22, 1
      %p82 = por %p80, %p81
      %p83 = scmp.ne.s32.totalorder %s74, %s75
      %p84 = scmp.eq.s32.totalorder %s22, 0
      %p85 = por %p83, %p84
      %p86 = scmp.ne.s32.totalorder %s74, %s75
      %p87 = scmp.eq.s32.totalorder %s23, 1
      %p88 = por %p86, %p87
      %p90 = scmp.ne.s32.totalorder %s75, %s89
      %p91 = scmp.eq.s32.totalorder %s23, 0
      %p92 = por %p90, %p91
      %s94 = sadd.s32 %s93, 1
      %p97 = scmp.eq.s32.totalorder %s17, 1
      %p98 = scmp.ne.s32.totalorder %s93, %s95
      %p99 = scmp.eq.s32.totalorder %s17, 0
      %p100 = por %p98, %p99
      %p101 = scmp.ne.s32.totalorder %s93, %s95
      %p102 = scmp.eq.s32.totalorder %s22, 1
      %p103 = por %p101, %p102
      %p104 = scmp.ne.s32.totalorder %s95, %s96
      %p105 = scmp.eq.s32.totalorder %s22, 0
      %p106 = por %p104, %p105
      %p107 = scmp.ne.s32.totalorder %s95, %s96
      %p108 = scmp.eq.s32.totalorder %s23, 1
      %p109 = por %p107, %p108
      %p111 = scmp.ne.s32.totalorder %s96, %s110
      %p112 = scmp.eq.s32.totalorder %s23, 0
      %p113 = por %p111, %p112
      %s115 = sadd.s32 %s114, 1
      %p118 = scmp.eq.s32.totalorder %s17, 1
      %p119 = scmp.ne.s32.totalorder %s114, %s116
      %p120 = scmp.eq.s32.totalorder %s17, 0
      %p121 = por %p119, %p120
      %p122 = scmp.ne.s32.totalorder %s114, %s116
      %p123 = scmp.eq.s32.totalorder %s22, 1
      %p124 = por %p122, %p123
      %p125 = scmp.ne.s32.totalorder %s116, %s117
      %p126 = scmp.eq.s32.totalorder %s22, 0
      %p127 = por %p125, %p126
      %p128 = scmp.ne.s32.totalorder %s116, %s117
      %p129 = scmp.eq.s32.totalorder %s23, 1
      %p130 = por %p128, %p129
      %p132 = scmp.ne.s32.totalorder %s117, %s131
      %p133 = scmp.eq.s32.totalorder %s23, 0
      %p134 = por %p132, %p133
      %s136 = sadd.s32 %s135, 1
      %p139 = scmp.eq.s32.totalorder %s17, 1
      %p140 = scmp.ne.s32.totalorder %s135, %s137
      %p141 = scmp.eq.s32.totalorder %s17, 0
      %p142 = por %p140, %p141
      %p143 = scmp.ne.s32.totalorder %s135, %s137
      %p144 = scmp.eq.s32.totalorder %s22, 1
      %p145 = por %p143, %p144
      %p146 = scmp.ne.s32.totalorder %s137, %s138
      %p147 = scmp.eq.s32.totalorder %s22, 0
      %p148 = por %p146, %p147
      %p149 = scmp.ne.s32.totalorder %s137, %s138
      %p150 = scmp.eq.s32.totalorder %s23, 1
      %p151 = por %p149, %p150
      %p153 = scmp.ne.s32.totalorder %s138, %s152
      %p154 = scmp.eq.s32.totalorder %s23, 0
      %p155 = por %p153, %p154
      %s157 = sadd.s32 %s156, 1
      %p160 = scmp.eq.s32.totalorder %s17, 1
      %p161 = scmp.ne.s32.totalorder %s156, %s158
      %p162 = scmp.eq.s32.totalorder %s17, 0
      %p163 = por %p161, %p162
      %p164 = scmp.ne.s32.totalorder %s156, %s158
      %p165 = scmp.eq.s32.totalorder %s22, 1
      %p166 = por %p164, %p165
      %p167 = scmp.ne.s32.totalorder %s158, %s159
      %p168 = scmp.eq.s32.totalorder %s22, 0
      %p169 = por %p167, %p168
      %p170 = scmp.ne.s32.totalorder %s158, %s159
      %p171 = scmp.eq.s32.totalorder %s23, 1
      %p172 = por %p170, %p171
      %p174 = scmp.ne.s32.totalorder %s159, %s173
      %p175 = scmp.eq.s32.totalorder %s23, 0
      %p176 = por %p174, %p175
      %s177 = ssub.s32 %s17, %s24
      %p178 = scmp.eq.s32.totalorder %s177, 0
      %s180 = sadd.s32 %s179, 1
      %s181 = scalar_select %p178, %s179, %s180
      %p184 = pneg %p178
      %p185 = scmp.eq.s32.totalorder %s17, 1
      %p186 = por %p184, %p185
      %p187 = scmp.ne.s32.totalorder %s179, %s182
      %p188 = scmp.eq.s32.totalorder %s17, 0
      %p189 = por %p187, %p188
      %p190 = scmp.ne.s32.totalorder %s179, %s182
      %p191 = scmp.eq.s32.totalorder %s22, 1
      %p192 = por %p190, %p191
      %p193 = scmp.ne.s32.totalorder %s182, %s183
      %p194 = scmp.eq.s32.totalorder %s22, 0
      %p195 = por %p193, %p194
      %p196 = scmp.ne.s32.totalorder %s182, %s183
      %p197 = scmp.eq.s32.totalorder %s23, 1
      %p198 = por %p196, %p197
      %p200 = scmp.ne.s32.totalorder %s183, %s199
      %p201 = scmp.eq.s32.totalorder %s23, 0
      %p202 = por %p200, %p201
      %p203 = scmp.le.s32.totalorder 1, %s17
      %p204 = scmp.lt.s32.totalorder %s17, 3
      %p205 = pnand %p203, %p204
      %p206 = pneg %p205
      // Predicated region
      $region9: #{tpu_custom_call.1} parent=5 // pred_check
        _
      $region10: #{tpu_custom_call.1} parent=5 // pred_check_branch
        %208 = sbr.rel (%p205) target = $region12
      $region11: #{tpu_custom_call.1} parent=5 // pred_region
        %s209 = ssub.s32 %s17, 1
        // Predicated region
        $region13: #{tpu_custom_call.1} parent=11 // pred_check
          %p210 = pneg %p64
        $region14: #{tpu_custom_call.1} parent=11 // pred_check_branch
          %212 = sbr.rel (%p210) target = $region16
        $region15: #{tpu_custom_call.1} parent=11 // pred_region
          _
        $region16: #{tpu_custom_call.1} parent=11 // pred_fallthru
          _
        // Predicated region
        $region17: #{tpu_custom_call.1} parent=11 // pred_check
          %p213 = pneg %p85
        $region18: #{tpu_custom_call.1} parent=11 // pred_check_branch
          %215 = sbr.rel (%p213) target = $region20
        $region19: #{tpu_custom_call.1} parent=11 // pred_region
          _
        $region20: #{tpu_custom_call.1} parent=11 // pred_fallthru
          _
        // Predicated region
        $region21: #{tpu_custom_call.1} parent=11 // pred_check
          %p216 = pneg %p106
        $region22: #{tpu_custom_call.1} parent=11 // pred_check_branch
          %218 = sbr.rel (%p216) target = $region24
        $region23: #{tpu_custom_call.1} parent=11 // pred_region
          %s220 = ssub.s32 9216, 9216
          %221 = vsyncadd [#allocation5], %s220
          %s222 = sshll.u32 [#allocation4], 4
          %s223 = int_to_ptr.vmem [resolvable:$true] %s222
          %228 = dma.hbm_to_vmem [thread:$0]  %s3, 9216, %s223, [#allocation5], 64, 64, 4
        $region24: #{tpu_custom_call.1} parent=11 // pred_fallthru
          _
        // Predicated region
        $region25: #{tpu_custom_call.1} parent=11 // pred_check
          %p229 = pneg %p127
        $region26: #{tpu_custom_call.1} parent=11 // pred_check_branch
          %231 = sbr.rel (%p229) target = $region28
        $region27: #{tpu_custom_call.1} parent=11 // pred_region
          _
        $region28: #{tpu_custom_call.1} parent=11 // pred_fallthru
          _
        // Predicated region
        $region29: #{tpu_custom_call.1} parent=11 // pred_check
          %p232 = pneg %p148
        $region30: #{tpu_custom_call.1} parent=11 // pred_check_branch
          %234 = sbr.rel (%p232) target = $region32
        $region31: #{tpu_custom_call.1} parent=11 // pred_region
          _
        $region32: #{tpu_custom_call.1} parent=11 // pred_fallthru
          _
        // Predicated region
        $region33: #{tpu_custom_call.1} parent=11 // pred_check
          %p235 = pneg %p169
        $region34: #{tpu_custom_call.1} parent=11 // pred_check_branch
          %237 = sbr.rel (%p235) target = $region36
        $region35: #{tpu_custom_call.1} parent=11 // pred_region
          _
        $region36: #{tpu_custom_call.1} parent=11 // pred_fallthru
          _
      $region12: #{tpu_custom_call.1} parent=5 // pred_fallthru
        _
      %p238 = scmp.lt.s32.totalorder %s17, 2
      // Predicated region
      $region37: #{tpu_custom_call.1} parent=5 // pred_check
        %p239 = pneg %p238
      $region38: #{tpu_custom_call.1} parent=5 // pred_check_branch
        %241 = sbr.rel (%p239) target = $region40
      $region39: #{tpu_custom_call.1} parent=5 // pred_region
        // Predicated region
        $region41: #{tpu_custom_call.1} parent=39 // pred_check
          %p242 = pneg %p37
        $region42: #{tpu_custom_call.1} parent=39 // pred_check_branch
          %244 = sbr.rel (%p242) target = $region44
        $region43: #{tpu_custom_call.1} parent=39 // pred_region
          %s245 = smul.u32 4, %s17
          %p246 = scmp.lt.s32.totalorder %s245, 7
          %s247 = scalar_select %p246, %s245, 7
          %s248 = smul.addr %s247, 18
          %s249 = smul.addr %s248, 4
          %s250 = scalar_lea.vmem %s0, %s249
          %s251 = smul.u32 4, %s17
        $region44: #{tpu_custom_call.1} parent=39 // pred_fallthru
          _
      $region40: #{tpu_custom_call.1} parent=5 // pred_fallthru
        _
      %p252 = scmp.le.s32.totalorder 1, %s17
      %p253 = scmp.lt.s32.totalorder %s17, 3
      %p254 = pnand %p252, %p253
      %p255 = pneg %p254
      // Predicated region
      $region45: #{tpu_custom_call.1} parent=5 // pred_check
        _
      $region46: #{tpu_custom_call.1} parent=5 // pred_check_branch
        %257 = sbr.rel (%p254) target = $region48
      $region47: #{tpu_custom_call.1} parent=5 // pred_region
        %s258 = ssub.s32 %s17, 1
        // Predicated region
        $region49: #{tpu_custom_call.1} parent=47 // pred_check
          %p259 = pneg %p106
        $region50: #{tpu_custom_call.1} parent=47 // pred_check_branch
          %261 = sbr.rel (%p259) target = $region52
        $region51: #{tpu_custom_call.1} parent=47 // pred_region
          %262 = dma.done [#allocation5], 9216
        $region52: #{tpu_custom_call.1} parent=47 // pred_fallthru
          _
        %s263 = smul.u32 4, %s22
        %p264 = scmp.lt.s32.totalorder %s263, 7
        %s265 = scalar_select %p264, %s263, 7
        %s266 = smul.addr %s265, 18
        %s267 = smul.addr %s266, 4
        %s268 = scalar_lea.vmem %s0, %s267
        %p269 = pneg %p43
        %p270 = pneg %p40
        %p271 = pneg %p64
        %p272 = pneg %p61
        %p273 = pneg %p85
        %p274 = pneg %p82
        %p275 = pneg %p106
        %p276 = pneg %p103
        %p277 = pneg %p127
        %p278 = pneg %p124
        %p279 = pneg %p148
        %p280 = pneg %p145
        %p281 = pneg %p169
        %p282 = pneg %p166
        %p283 = pneg %p195
        %p284 = pneg %p192
        %s285 = sand.u32 %s182, 1
        %s286 = scalar_lea.sflag [#allocation6], %s285
        %s287 = sand.u32 %s182, 1
        %s288 = smul.addr %s287, 64
        %s289 = scalar_lea.vmem [#allocation7], %s288
        %s290 = smul.u32 4, %s22
        %p291 = scmp.lt.s32.totalorder %s290, 7
        %s292 = scalar_select %p291, %s290, 7
        %s293 = smul.addr %s292, 18
        %s294 = smul.addr %s293, 4
        %s295 = scalar_lea.vmem %s0, %s294
        %s296 = smul.u32 4, %s22
        %v298 = vld [vmem:[%s295] sm:$0xf]
        %v299 = vld [vmem:[%s295 + $0x8] sm:$0xf]
        %v300 = vld [vmem:[%s295 + $0x10] sm:$0xf]
        %v301 = vld [vmem:[%s295 + $0x18] sm:$0xf]
        %v302 = vld [vmem:[%s295 + $0x20] sm:$0xf]
        %v303 = vld [vmem:[%s295 + $0x28] sm:$0xf]
        %v304 = vld [vmem:[%s295 + $0x30] sm:$0xf]
        %v305 = vld [vmem:[%s295 + $0x38] sm:$0xf]
        %v306 = vunpack.c.l.bf16 %v298
        %v307 = vunpack.c.l.bf16 %v299
        %v308 = vunpack.c.l.bf16 %v300
        %v309 = vunpack.c.l.bf16 %v301
        %v310 = vunpack.c.l.bf16 %v302
        %v311 = vunpack.c.l.bf16 %v303
        %v312 = vunpack.c.l.bf16 %v304
        %v313 = vunpack.c.l.bf16 %v305
        %v314 = vpack.c.bf16 %v307, %v306
        %v315 = vpack.c.bf16 %v309, %v308
        %v316 = vpack.c.bf16 %v311, %v310
        %v317 = vpack.c.bf16 %v313, %v312
        %v318 = vld [vmem:[%s1] sm:$0xf]
        %v319 = vld [vmem:[%s1 + $0x4] sm:$0xf]
        %v320 = vld [vmem:[%s1 + $0x8] sm:$0xf]
        %v321 = vld [vmem:[%s1 + $0xc] sm:$0xf]
        %v322 = vld [vmem:[%s1 + $0x10] sm:$0xf]
        %v323 = vld [vmem:[%s1 + $0x14] sm:$0xf]
        %v324 = vld [vmem:[%s1 + $0x18] sm:$0xf]
        %v325 = vld [vmem:[%s1 + $0x1c] sm:$0xf]
        %v326 = vld [vmem:[%s1 + $0x20] sm:$0xf]
        %v327 = vld [vmem:[%s1 + $0x24] sm:$0xf]
        %v328 = vld [vmem:[%s1 + $0x28] sm:$0xf]
        %v329 = vld [vmem:[%s1 + $0x2c] sm:$0xf]
        %v330 = vld [vmem:[%s1 + $0x30] sm:$0xf]
        %v331 = vld [vmem:[%s1 + $0x34] sm:$0xf]
        %v332 = vld [vmem:[%s1 + $0x38] sm:$0xf]
        %v333 = vld [vmem:[%s1 + $0x3c] sm:$0xf]
        %v350 = vunpack.c.l.b16 %v318
        %v351 = vunpack.c.l.b16 %v319
        %v352 = vunpack.c.l.b16 %v320
        %v353 = vunpack.c.l.b16 %v321
        %v354 = vunpack.c.l.b16 %v322
        %v355 = vunpack.c.l.b16 %v323
        %v356 = vunpack.c.l.b16 %v324
        %v357 = vunpack.c.l.b16 %v325
        %v358 = vunpack.c.l.b16 %v326
        %v359 = vunpack.c.l.b16 %v327
        %v360 = vunpack.c.l.b16 %v328
        %v361 = vunpack.c.l.b16 %v329
        %v362 = vunpack.c.l.b16 %v330
        %v363 = vunpack.c.l.b16 %v331
        %v364 = vunpack.c.l.b16 %v332
        %v365 = vunpack.c.l.b16 %v333
        %v366 = vpack.c.b16 %v351, %v350
        %v367 = vpack.c.b16 %v353, %v352
        %v368 = vpack.c.b16 %v355, %v354
        %v369 = vpack.c.b16 %v357, %v356
        %v370 = vpack.c.b16 %v359, %v358
        %v371 = vpack.c.b16 %v361, %v360
        %v372 = vpack.c.b16 %v363, %v362
        %v373 = vpack.c.b16 %v365, %v364
        %382 = vmatprep.subr.bf16.mxu0 0
        %383 = vmatpush1.bf16.msra.mxu0 %v366
        %384 = vmatprep.subr.bf16.mxu0 0
        %385 = vmatpush1.bf16.msra.mxu0 %v367
        %386 = vmatprep.subr.bf16.mxu0 0
        %387 = vmatpush1.bf16.msra.mxu0 %v368
        %388 = vmatprep.subr.bf16.mxu0 0
        %389 = vmatpush1.bf16.msra.mxu0 %v369
        %390 = vmatprep.subr.bf16.mxu0 0
        %391 = vmatpush1.bf16.msra.mxu0 %v370
        %392 = vmatprep.subr.bf16.mxu0 0
        %393 = vmatpush1.bf16.msra.mxu0 %v371
        %394 = vmatprep.subr.bf16.mxu0 0
        %395 = vmatpush1.bf16.msra.mxu0 %v372
        %396 = vmatprep.subr.bf16.mxu0 0
        %397 = vmatpush1.bf16.msra.mxu0 %v373
        %398 = vmatprep.subr.bf16.mxu0 0
        %399 = vmatpush1.bf16.msra.mxu0 0
        %400 = vmatprep.subr.bf16.mxu0 0
        %401 = vmatpush1.bf16.msra.mxu0 0
        %402 = vmatprep.subr.bf16.mxu0 0
        %403 = vmatpush1.bf16.msra.mxu0 0
        %404 = vmatprep.subr.bf16.mxu0 0
        %405 = vmatpush1.bf16.msra.mxu0 0
        %406 = vmatprep.subr.bf16.mxu0 0
        %407 = vmatpush1.bf16.msra.mxu0 0
        %408 = vmatprep.subr.bf16.mxu0 0
        %409 = vmatpush1.bf16.msra.mxu0 0
        %410 = vmatprep.subr.bf16.mxu0 0
        %411 = vmatpush1.bf16.msra.mxu0 0
        %412 = vmatprep.subr.bf16.mxu0 0
        %413 = vmatpush1.bf16.msra.mxu0 0
        %414 = vmatprep.mubr.bf16.mxu0 0
        %415 = vmatmul.mubr.bf16.gmra.mrb[0].mxu0 %v314
        %v416 = vpop.f32.mrb[0].mxu0
        %v417 = vadd.f32 0.0, %v416
        %v418 = vpop.f32.mrb[0].mxu0
        %v419 = vpop.f32.mrb[0].mxu0
        %v420 = vadd.f32 0.0, %v419
        %v421 = vpop.f32.mrb[0].mxu0
        %422 = vmatprep.mubr.bf16.mxu0 0
        %423 = vmatmul.mubr.bf16.gmra.mrb[0].mxu0 %v315
        %v424 = vpop.f32.mrb[0].mxu0
        %v425 = vadd.f32 0.0, %v424
        %v426 = vpop.f32.mrb[0].mxu0
        %v427 = vpop.f32.mrb[0].mxu0
        %v428 = vadd.f32 0.0, %v427
        %v429 = vpop.f32.mrb[0].mxu0
        %430 = vmatprep.mubr.bf16.mxu0 0
        %431 = vmatmul.mubr.bf16.gmra.mrb[0].mxu0 %v316
        %v432 = vpop.f32.mrb[0].mxu0
        %v433 = vadd.f32 0.0, %v432
        %v434 = vpop.f32.mrb[0].mxu0
        %v435 = vpop.f32.mrb[0].mxu0
        %v436 = vadd.f32 0.0, %v435
        %v437 = vpop.f32.mrb[0].mxu0
        %438 = vmatprep.mubr.bf16.mxu0 0
        %439 = vmatmul.mubr.bf16.gmra.mrb[0].mxu0 %v317
        %v440 = vpop.f32.mrb[0].mxu0
        %v441 = vadd.f32 0.0, %v440
        %v442 = vpop.f32.mrb[0].mxu0
        %v443 = vpop.f32.mrb[0].mxu0
        %v444 = vadd.f32 0.0, %v443
        %v445 = vpop.f32.mrb[0].mxu0
        %446 = vdwg.mxu0
        %447 = vst [vmem:[#allocation2] sm:$0xff] %v417
        %448 = vst [vmem:[#allocation2 + $0x8] sm:$0xff] %v420
        %449 = vst [vmem:[#allocation2 + $0x10] sm:$0xff] %v425
        %450 = vst [vmem:[#allocation2 + $0x18] sm:$0xff] %v428
        %451 = vst [vmem:[#allocation2 + $0x20] sm:$0xff] %v433
        %452 = vst [vmem:[#allocation2 + $0x28] sm:$0xff] %v436
        %453 = vst [vmem:[#allocation2 + $0x30] sm:$0xff] %v441
        %454 = vst [vmem:[#allocation2 + $0x38] sm:$0xff] %v444
        %s455 = scalar_lea.vmem %s295, 72
        %v456 = vld [vmem:[%s455] sm:$0xf]
        %v457 = vld [vmem:[%s455 + $0x8] sm:$0xf]
        %v458 = vld [vmem:[%s455 + $0x10] sm:$0xf]
        %v459 = vld [vmem:[%s455 + $0x18] sm:$0xf]
        %v460 = vld [vmem:[%s455 + $0x20] sm:$0xf]
        %v461 = vld [vmem:[%s455 + $0x28] sm:$0xf]
        %v462 = vld [vmem:[%s455 + $0x30] sm:$0xf]
        %v463 = vld [vmem:[%s455 + $0x38] sm:$0xf]
        %v464 = vunpack.c.l.bf16 %v456
        %v465 = vunpack.c.l.bf16 %v457
        %v466 = vunpack.c.l.bf16 %v458
        %v467 = vunpack.c.l.bf16 %v459
        %v468 = vunpack.c.l.bf16 %v460
        %v469 = vunpack.c.l.bf16 %v461
        %v470 = vunpack.c.l.bf16 %v462
        %v471 = vunpack.c.l.bf16 %v463
        %v472 = vpack.c.bf16 %v465, %v464
        %v473 = vpack.c.bf16 %v467, %v466
        %v474 = vpack.c.bf16 %v469, %v468
        %v475 = vpack.c.bf16 %v471, %v470
        %s476 = scalar_lea.vmem %s1, 64
        %v477 = vld [vmem:[%s476] sm:$0xf]
        %v478 = vld [vmem:[%s476 + $0x4] sm:$0xf]
        %v479 = vld [vmem:[%s476 + $0x8] sm:$0xf]
        %v480 = vld [vmem:[%s476 + $0xc] sm:$0xf]
        %v481 = vld [vmem:[%s476 + $0x10] sm:$0xf]
        %v482 = vld [vmem:[%s476 + $0x14] sm:$0xf]
        %v483 = vld [vmem:[%s476 + $0x18] sm:$0xf]
        %v484 = vld [vmem:[%s476 + $0x1c] sm:$0xf]
        %v485 = vld [vmem:[%s476 + $0x20] sm:$0xf]
        %v486 = vld [vmem:[%s476 + $0x24] sm:$0xf]
        %v487 = vld [vmem:[%s476 + $0x28] sm:$0xf]
        %v488 = vld [vmem:[%s476 + $0x2c] sm:$0xf]
        %v489 = vld [vmem:[%s476 + $0x30] sm:$0xf]
        %v490 = vld [vmem:[%s476 + $0x34] sm:$0xf]
        %v491 = vld [vmem:[%s476 + $0x38] sm:$0xf]
        %v492 = vld [vmem:[%s476 + $0x3c] sm:$0xf]
        %v509 = vunpack.c.l.b16 %v477
        %v510 = vunpack.c.l.b16 %v478
        %v511 = vunpack.c.l.b16 %v479
        %v512 = vunpack.c.l.b16 %v480
        %v513 = vunpack.c.l.b16 %v481
        %v514 = vunpack.c.l.b16 %v482
        %v515 = vunpack.c.l.b16 %v483
        %v516 = vunpack.c.l.b16 %v484
        %v517 = vunpack.c.l.b16 %v485
        %v518 = vunpack.c.l.b16 %v486
        %v519 = vunpack.c.l.b16 %v487
        %v520 = vunpack.c.l.b16 %v488
        %v521 = vunpack.c.l.b16 %v489
        %v522 = vunpack.c.l.b16 %v490
        %v523 = vunpack.c.l.b16 %v491
        %v524 = vunpack.c.l.b16 %v492
        %v525 = vpack.c.b16 %v510, %v509
        %v526 = vpack.c.b16 %v512, %v511
        %v527 = vpack.c.b16 %v514, %v513
        %v528 = vpack.c.b16 %v516, %v515
        %v529 = vpack.c.b16 %v518, %v517
        %v530 = vpack.c.b16 %v520, %v519
        %v531 = vpack.c.b16 %v522, %v521
        %v532 = vpack.c.b16 %v524, %v523
        %541 = vmatprep.subr.bf16.mxu0 0
        %542 = vmatpush1.bf16.msra.mxu0 %v525
        %543 = vmatprep.subr.bf16.mxu0 0
        %544 = vmatpush1.bf16.msra.mxu0 %v526
        %545 = vmatprep.subr.bf16.mxu0 0
        %546 = vmatpush1.bf16.msra.mxu0 %v527
        %547 = vmatprep.subr.bf16.mxu0 0
        %548 = vmatpush1.bf16.msra.mxu0 %v528
        %549 = vmatprep.subr.bf16.mxu0 0
        %550 = vmatpush1.bf16.msra.mxu0 %v529
        %551 = vmatprep.subr.bf16.mxu0 0
        %552 = vmatpush1.bf16.msra.mxu0 %v530
        %553 = vmatprep.subr.bf16.mxu0 0
        %554 = vmatpush1.bf16.msra.mxu0 %v531
        %555 = vmatprep.subr.bf16.mxu0 0
        %556 = vmatpush1.bf16.msra.mxu0 %v532
        %557 = vmatprep.subr.bf16.mxu0 0
        %558 = vmatpush1.bf16.msra.mxu0 0
        %559 = vmatprep.subr.bf16.mxu0 0
        %560 = vmatpush1.bf16.msra.mxu0 0
        %561 = vmatprep.subr.bf16.mxu0 0
        %562 = vmatpush1.bf16.msra.mxu0 0
        %563 = vmatprep.subr.bf16.mxu0 0
        %564 = vmatpush1.bf16.msra.mxu0 0
        %565 = vmatprep.subr.bf16.mxu0 0
        %566 = vmatpush1.bf16.msra.mxu0 0
        %567 = vmatprep.subr.bf16.mxu0 0
        %568 = vmatpush1.bf16.msra.mxu0 0
        %569 = vmatprep.subr.bf16.mxu0 0
        %570 = vmatpush1.bf16.msra.mxu0 0
        %571 = vmatprep.subr.bf16.mxu0 0
        %572 = vmatpush1.bf16.msra.mxu0 0
        %573 = vmatprep.mubr.bf16.mxu0 0
        %574 = vmatmul.mubr.bf16.gmra.mrb[0].mxu0 %v472
        %v575 = vpop.f32.mrb[0].mxu0
        %v576 = vadd.f32 0.0, %v575
        %v577 = vpop.f32.mrb[0].mxu0
        %v578 = vpop.f32.mrb[0].mxu0
        %v579 = vadd.f32 0.0, %v578
        %v580 = vpop.f32.mrb[0].mxu0
        %581 = vmatprep.mubr.bf16.mxu0 0
        %582 = vmatmul.mubr.bf16.gmra.mrb[0].mxu0 %v473
        %v583 = vpop.f32.mrb[0].mxu0
        %v584 = vadd.f32 0.0, %v583
        %v585 = vpop.f32.mrb[0].mxu0
        %v586 = vpop.f32.mrb[0].mxu0
        %v587 = vadd.f32 0.0, %v586
        %v588 = vpop.f32.mrb[0].mxu0
        %589 = vmatprep.mubr.bf16.mxu0 0
        %590 = vmatmul.mubr.bf16.gmra.mrb[0].mxu0 %v474
        %v591 = vpop.f32.mrb[0].mxu0
        %v592 = vadd.f32 0.0, %v591
        %v593 = vpop.f32.mrb[0].mxu0
        %v594 = vpop.f32.mrb[0].mxu0
        %v595 = vadd.f32 0.0, %v594
        %v596 = vpop.f32.mrb[0].mxu0
        %597 = vmatprep.mubr.bf16.mxu0 0
        %598 = vmatmul.mubr.bf16.gmra.mrb[0].mxu0 %v475
        %v599 = vpop.f32.mrb[0].mxu0
        %v600 = vadd.f32 0.0, %v599
        %v601 = vpop.f32.mrb[0].mxu0
        %v602 = vpop.f32.mrb[0].mxu0
        %v603 = vadd.f32 0.0, %v602
        %v604 = vpop.f32.mrb[0].mxu0
        %605 = vdwg.mxu0
        %v606 = vld [vmem:[#allocation2] sm:$0xff]
        %v607 = vld [vmem:[#allocation2 + $0x8] sm:$0xff]
        %v608 = vld [vmem:[#allocation2 + $0x10] sm:$0xff]
        %v609 = vld [vmem:[#allocation2 + $0x18] sm:$0xff]
        %v610 = vld [vmem:[#allocation2 + $0x20] sm:$0xff]
        %v611 = vld [vmem:[#allocation2 + $0x28] sm:$0xff]
        %v612 = vld [vmem:[#allocation2 + $0x30] sm:$0xff]
        %v613 = vld [vmem:[#allocation2 + $0x38] sm:$0xff]
        %v614 = vadd.f32 %v606, %v576
        %v615 = vadd.f32 %v607, %v579
        %v616 = vadd.f32 %v608, %v584
        %v617 = vadd.f32 %v609, %v587
        %v618 = vadd.f32 %v610, %v592
        %v619 = vadd.f32 %v611, %v595
        %v620 = vadd.f32 %v612, %v600
        %v621 = vadd.f32 %v613, %v603
        %622 = vst [vmem:[#allocation2] sm:$0xff] %v614
        %623 = vst [vmem:[#allocation2 + $0x8] sm:$0xff] %v615
        %624 = vst [vmem:[#allocation2 + $0x10] sm:$0xff] %v616
        %625 = vst [vmem:[#allocation2 + $0x18] sm:$0xff] %v617
        %626 = vst [vmem:[#allocation2 + $0x20] sm:$0xff] %v618
        %627 = vst [vmem:[#allocation2 + $0x28] sm:$0xff] %v619
        %628 = vst [vmem:[#allocation2 + $0x30] sm:$0xff] %v620
        %629 = vst [vmem:[#allocation2 + $0x38] sm:$0xff] %v621
        %v630 = vld [vmem:[%s295] sm:$0xf]
        %v631 = vld [vmem:[%s295 + $0x4] sm:$0x1]
        %v632 = vld [vmem:[%s295 + $0x8] sm:$0xf]
        %v633 = vld [vmem:[%s295 + $0xc] sm:$0x1]
        %v634 = vld [vmem:[%s295 + $0x10] sm:$0xf]
        %v635 = vld [vmem:[%s295 + $0x14] sm:$0x1]
        %v636 = vld [vmem:[%s295 + $0x18] sm:$0xf]
        %v637 = vld [vmem:[%s295 + $0x1c] sm:$0x1]
        %v638 = vld [vmem:[%s295 + $0x20] sm:$0xf]
        %v639 = vld [vmem:[%s295 + $0x24] sm:$0x1]
        %v640 = vld [vmem:[%s295 + $0x28] sm:$0xf]
        %v641 = vld [vmem:[%s295 + $0x2c] sm:$0x1]
        %v642 = vld [vmem:[%s295 + $0x30] sm:$0xf]
        %v643 = vld [vmem:[%s295 + $0x34] sm:$0x1]
        %v644 = vld [vmem:[%s295 + $0x38] sm:$0xf]
        %v645 = vld [vmem:[%s295 + $0x3c] sm:$0x1]
        %v646 = vunpack.c.l.bf16 %v630
        %v647 = vunpack.c.l.bf16 %v631
        %v648 = vunpack.c.l.bf16 %v632
        %v649 = vunpack.c.l.bf16 %v633
        %v650 = vunpack.c.l.bf16 %v634
        %v651 = vunpack.c.l.bf16 %v635
        %v652 = vunpack.c.l.bf16 %v636
        %v653 = vunpack.c.l.bf16 %v637
        %v654 = vunpack.c.l.bf16 %v638
        %v655 = vunpack.c.l.bf16 %v639
        %v656 = vunpack.c.l.bf16 %v640
        %v657 = vunpack.c.l.bf16 %v641
        %v658 = vunpack.c.l.bf16 %v642
        %v659 = vunpack.c.l.bf16 %v643
        %v660 = vunpack.c.l.bf16 %v644
        %v661 = vunpack.c.l.bf16 %v645
        %vm678 = vcmask 1046528
        %v679 = vrot.slane %v646, 1
        %v680 = vrot.slane %v647, 1
        %v681 = vsel %vm678, %v679, %v680
        %v682 = vrot.slane %v648, 1
        %v683 = vrot.slane %v649, 1
        %v684 = vsel %vm678, %v682, %v683
        %v685 = vrot.slane %v650, 1
        %v686 = vrot.slane %v651, 1
        %v687 = vsel %vm678, %v685, %v686
        %v688 = vrot.slane %v652, 1
        %v689 = vrot.slane %v653, 1
        %v690 = vsel %vm678, %v688, %v689
        %v691 = vrot.slane %v654, 1
        %v692 = vrot.slane %v655, 1
        %v693 = vsel %vm678, %v691, %v692
        %v694 = vrot.slane %v656, 1
        %v695 = vrot.slane %v657, 1
        %v696 = vsel %vm678, %v694, %v695
        %v697 = vrot.slane %v658, 1
        %v698 = vrot.slane %v659, 1
        %v699 = vsel %vm678, %v697, %v698
        %v700 = vrot.slane %v660, 1
        %v701 = vrot.slane %v661, 1
        %v702 = vsel %vm678, %v700, %v701
        %v711 = vpack.c.bf16 %v684, %v681
        %v712 = vpack.c.bf16 %v690, %v687
        %v713 = vpack.c.bf16 %v696, %v693
        %v714 = vpack.c.bf16 %v702, %v699
        %s715 = scalar_lea.vmem %s1, 128
        %v716 = vld [vmem:[%s715] sm:$0xf]
        %v717 = vld [vmem:[%s715 + $0x4] sm:$0xf]
        %v718 = vld [vmem:[%s715 + $0x8] sm:$0xf]
        %v719 = vld [vmem:[%s715 + $0xc] sm:$0xf]
        %v720 = vld [vmem:[%s715 + $0x10] sm:$0xf]
        %v721 = vld [vmem:[%s715 + $0x14] sm:$0xf]
        %v722 = vld [vmem:[%s715 + $0x18] sm:$0xf]
        %v723 = vld [vmem:[%s715 + $0x1c] sm:$0xf]
        %v724 = vld [vmem:[%s715 + $0x20] sm:$0xf]
        %v725 = vld [vmem:[%s715 + $0x24] sm:$0xf]
        %v726 = vld [vmem:[%s715 + $0x28] sm:$0xf]
        %v727 = vld [vmem:[%s715 + $0x2c] sm:$0xf]
        %v728 = vld [vmem:[%s715 + $0x30] sm:$0xf]
        %v729 = vld [vmem:[%s715 + $0x34] sm:$0xf]
        %v730 = vld [vmem:[%s715 + $0x38] sm:$0xf]
        %v731 = vld [vmem:[%s715 + $0x3c] sm:$0xf]
        %v748 = vunpack.c.l.b16 %v716
        %v749 = vunpack.c.l.b16 %v717
        %v750 = vunpack.c.l.b16 %v718
        %v751 = vunpack.c.l.b16 %v719
        %v752 = vunpack.c.l.b16 %v720
        %v753 = vunpack.c.l.b16 %v721
        %v754 = vunpack.c.l.b16 %v722
        %v755 = vunpack.c.l.b16 %v723
        %v756 = vunpack.c.l.b16 %v724
        %v757 = vunpack.c.l.b16 %v725
        %v758 = vunpack.c.l.b16 %v726
        %v759 = vunpack.c.l.b16 %v727
        %v760 = vunpack.c.l.b16 %v728
        %v761 = vunpack.c.l.b16 %v729
        %v762 = vunpack.c.l.b16 %v730
        %v763 = vunpack.c.l.b16 %v731
        %v764 = vpack.c.b16 %v749, %v748
        %v765 = vpack.c.b16 %v751, %v750
        %v766 = vpack.c.b16 %v753, %v752
        %v767 = vpack.c.b16 %v755, %v754
        %v768 = vpack.c.b16 %v757, %v756
        %v769 = vpack.c.b16 %v759, %v758
        %v770 = vpack.c.b16 %v761, %v760
        %v771 = vpack.c.b16 %v763, %v762
        %780 = vmatprep.subr.bf16.mxu0 0
        %781 = vmatpush1.bf16.msra.mxu0 %v764
        %782 = vmatprep.subr.bf16.mxu0 0
        %783 = vmatpush1.bf16.msra.mxu0 %v765
        %784 = vmatprep.subr.bf16.mxu0 0
        %785 = vmatpush1.bf16.msra.mxu0 %v766
        %786 = vmatprep.subr.bf16.mxu0 0
        %787 = vmatpush1.bf16.msra.mxu0 %v767
        %788 = vmatprep.subr.bf16.mxu0 0
        %789 = vmatpush1.bf16.msra.mxu0 %v768
        %790 = vmatprep.subr.bf16.mxu0 0
        %791 = vmatpush1.bf16.msra.mxu0 %v769
        %792 = vmatprep.subr.bf16.mxu0 0
        %793 = vmatpush1.bf16.msra.mxu0 %v770
        %794 = vmatprep.subr.bf16.mxu0 0
        %795 = vmatpush1.bf16.msra.mxu0 %v771
        %796 = vmatprep.subr.bf16.mxu0 0
        %797 = vmatpush1.bf16.msra.mxu0 0
        %798 = vmatprep.subr.bf16.mxu0 0
        %799 = vmatpush1.bf16.msra.mxu0 0
        %800 = vmatprep.subr.bf16.mxu0 0
        %801 = vmatpush1.bf16.msra.mxu0 0
        %802 = vmatprep.subr.bf16.mxu0 0
        %803 = vmatpush1.bf16.msra.mxu0 0
        %804 = vmatprep.subr.bf16.mxu0 0
        %805 = vmatpush1.bf16.msra.mxu0 0
        %806 = vmatprep.subr.bf16.mxu0 0
        %807 = vmatpush1.bf16.msra.mxu0 0
        %808 = vmatprep.subr.bf16.mxu0 0
        %809 = vmatpush1.bf16.msra.mxu0 0
        %810 = vmatprep.subr.bf16.mxu0 0
        %811 = vmatpush1.bf16.msra.mxu0 0
        %812 = vmatprep.mubr.bf16.mxu0 0
        %813 = vmatmul.mubr.bf16.gmra.mrb[0].mxu0 %v711
        %v814 = vpop.f32.mrb[0].mxu0
        %v815 = vadd.f32 0.0, %v814
        %v816 = vpop.f32.mrb[0].mxu0
        %v817 = vpop.f32.mrb[0].mxu0
        %v818 = vadd.f32 0.0, %v817
        %v819 = vpop.f32.mrb[0].mxu0
        %820 = vmatprep.mubr.bf16.mxu0 0
        %821 = vmatmul.mubr.bf16.gmra.mrb[0].mxu0 %v712
        %v822 = vpop.f32.mrb[0].mxu0
        %v823 = vadd.f32 0.0, %v822
        %v824 = vpop.f32.mrb[0].mxu0
        %v825 = vpop.f32.mrb[0].mxu0
        %v826 = vadd.f32 0.0, %v825
        %v827 = vpop.f32.mrb[0].mxu0
        %828 = vmatprep.mubr.bf16.mxu0 0
        %829 = vmatmul.mubr.bf16.gmra.mrb[0].mxu0 %v713
        %v830 = vpop.f32.mrb[0].mxu0
        %v831 = vadd.f32 0.0, %v830
        %v832 = vpop.f32.mrb[0].mxu0
        %v833 = vpop.f32.mrb[0].mxu0
        %v834 = vadd.f32 0.0, %v833
        %v835 = vpop.f32.mrb[0].mxu0
        %836 = vmatprep.mubr.bf16.mxu0 0
        %837 = vmatmul.mubr.bf16.gmra.mrb[0].mxu0 %v714
        %v838 = vpop.f32.mrb[0].mxu0
        %v839 = vadd.f32 0.0, %v838
        %v840 = vpop.f32.mrb[0].mxu0
        %v841 = vpop.f32.mrb[0].mxu0
        %v842 = vadd.f32 0.0, %v841
        %v843 = vpop.f32.mrb[0].mxu0
        %844 = vdwg.mxu0
        %v845 = vld [vmem:[#allocation2] sm:$0xff]
        %v846 = vld [vmem:[#allocation2 + $0x8] sm:$0xff]
        %v847 = vld [vmem:[#allocation2 + $0x10] sm:$0xff]
        %v848 = vld [vmem:[#allocation2 + $0x18] sm:$0xff]
        %v849 = vld [vmem:[#allocation2 + $0x20] sm:$0xff]
        %v850 = vld [vmem:[#allocation2 + $0x28] sm:$0xff]
        %v851 = vld [vmem:[#allocation2 + $0x30] sm:$0xff]
        %v852 = vld [vmem:[#allocation2 + $0x38] sm:$0xff]
        %v853 = vadd.f32 %v845, %v815
        %v854 = vadd.f32 %v846, %v818
        %v855 = vadd.f32 %v847, %v823
        %v856 = vadd.f32 %v848, %v826
        %v857 = vadd.f32 %v849, %v831
        %v858 = vadd.f32 %v850, %v834
        %v859 = vadd.f32 %v851, %v839
        %v860 = vadd.f32 %v852, %v842
        %861 = vst [vmem:[#allocation2] sm:$0xff] %v853
        %862 = vst [vmem:[#allocation2 + $0x8] sm:$0xff] %v854
        %863 = vst [vmem:[#allocation2 + $0x10] sm:$0xff] %v855
        %864 = vst [vmem:[#allocation2 + $0x18] sm:$0xff] %v856
        %865 = vst [vmem:[#allocation2 + $0x20] sm:$0xff] %v857
        %866 = vst [vmem:[#allocation2 + $0x28] sm:$0xff] %v858
        %867 = vst [vmem:[#allocation2 + $0x30] sm:$0xff] %v859
        %868 = vst [vmem:[#allocation2 + $0x38] sm:$0xff] %v860
        %s869 = scalar_lea.vmem %s295, 144
        %v870 = vld [vmem:[%s869] sm:$0xf]
        %v871 = vld [vmem:[%s869 + $0x8] sm:$0xf]
        %v872 = vld [vmem:[%s869 + $0x10] sm:$0xf]
        %v873 = vld [vmem:[%s869 + $0x18] sm:$0xf]
        %v874 = vld [vmem:[%s869 + $0x20] sm:$0xf]
        %v875 = vld [vmem:[%s869 + $0x28] sm:$0xf]
        %v876 = vld [vmem:[%s869 + $0x30] sm:$0xf]
        %v877 = vld [vmem:[%s869 + $0x38] sm:$0xf]
        %v878 = vunpack.c.l.bf16 %v870
        %v879 = vunpack.c.l.bf16 %v871
        %v880 = vunpack.c.l.bf16 %v872
        %v881 = vunpack.c.l.bf16 %v873
        %v882 = vunpack.c.l.bf16 %v874
        %v883 = vunpack.c.l.bf16 %v875
        %v884 = vunpack.c.l.bf16 %v876
        %v885 = vunpack.c.l.bf16 %v877
        %v886 = vpack.c.bf16 %v879, %v878
        %v887 = vpack.c.bf16 %v881, %v880
        %v888 = vpack.c.bf16 %v883, %v882
        %v889 = vpack.c.bf16 %v885, %v884
        %s890 = scalar_lea.vmem %s1, 192
        %v891 = vld [vmem:[%s890] sm:$0xf]
        %v892 = vld [vmem:[%s890 + $0x4] sm:$0xf]
        %v893 = vld [vmem:[%s890 + $0x8] sm:$0xf]
        %v894 = vld [vmem:[%s890 + $0xc] sm:$0xf]
        %v895 = vld [vmem:[%s890 + $0x10] sm:$0xf]
        %v896 = vld [vmem:[%s890 + $0x14] sm:$0xf]
        %v897 = vld [vmem:[%s890 + $0x18] sm:$0xf]
        %v898 = vld [vmem:[%s890 + $0x1c] sm:$0xf]
        %v899 = vld [vmem:[%s890 + $0x20] sm:$0xf]
        %v900 = vld [vmem:[%s890 + $0x24] sm:$0xf]
        %v901 = vld [vmem:[%s890 + $0x28] sm:$0xf]
        %v902 = vld [vmem:[%s890 + $0x2c] sm:$0xf]
        %v903 = vld [vmem:[%s890 + $0x30] sm:$0xf]
        %v904 = vld [vmem:[%s890 + $0x34] sm:$0xf]
        %v905 = vld [vmem:[%s890 + $0x38] sm:$0xf]
        %v906 = vld [vmem:[%s890 + $0x3c] sm:$0xf]
        %v923 = vunpack.c.l.b16 %v891
        %v924 = vunpack.c.l.b16 %v892
        %v925 = vunpack.c.l.b16 %v893
        %v926 = vunpack.c.l.b16 %v894
        %v927 = vunpack.c.l.b16 %v895
        %v928 = vunpack.c.l.b16 %v896
        %v929 = vunpack.c.l.b16 %v897
        %v930 = vunpack.c.l.b16 %v898
        %v931 = vunpack.c.l.b16 %v899
        %v932 = vunpack.c.l.b16 %v900
        %v933 = vunpack.c.l.b16 %v901
        %v934 = vunpack.c.l.b16 %v902
        %v935 = vunpack.c.l.b16 %v903
        %v936 = vunpack.c.l.b16 %v904
        %v937 = vunpack.c.l.b16 %v905
        %v938 = vunpack.c.l.b16 %v906
        %v939 = vpack.c.b16 %v924, %v923
        %v940 = vpack.c.b16 %v926, %v925
        %v941 = vpack.c.b16 %v928, %v927
        %v942 = vpack.c.b16 %v930, %v929
        %v943 = vpack.c.b16 %v932, %v931
        %v944 = vpack.c.b16 %v934, %v933
        %v945 = vpack.c.b16 %v936, %v935
        %v946 = vpack.c.b16 %v938, %v937
        %955 = vmatprep.subr.bf16.mxu0 0
        %956 = vmatpush1.bf16.msra.mxu0 %v939
        %957 = vmatprep.subr.bf16.mxu0 0
        %958 = vmatpush1.bf16.msra.mxu0 %v940
        %959 = vmatprep.subr.bf16.mxu0 0
        %960 = vmatpush1.bf16.msra.mxu0 %v941
        %961 = vmatprep.subr.bf16.mxu0 0
        %962 = vmatpush1.bf16.msra.mxu0 %v942
        %963 = vmatprep.subr.bf16.mxu0 0
        %964 = vmatpush1.bf16.msra.mxu0 %v943
        %965 = vmatprep.subr.bf16.mxu0 0
        %966 = vmatpush1.bf16.msra.mxu0 %v944
        %967 = vmatprep.subr.bf16.mxu0 0
        %968 = vmatpush1.bf16.msra.mxu0 %v945
        %969 = vmatprep.subr.bf16.mxu0 0
        %970 = vmatpush1.bf16.msra.mxu0 %v946
        %971 = vmatprep.subr.bf16.mxu0 0
        %972 = vmatpush1.bf16.msra.mxu0 0
        %973 = vmatprep.subr.bf16.mxu0 0
        %974 = vmatpush1.bf16.msra.mxu0 0
        %975 = vmatprep.subr.bf16.mxu0 0
        %976 = vmatpush1.bf16.msra.mxu0 0
        %977 = vmatprep.subr.bf16.mxu0 0
        %978 = vmatpush1.bf16.msra.mxu0 0
        %979 = vmatprep.subr.bf16.mxu0 0
        %980 = vmatpush1.bf16.msra.mxu0 0
        %981 = vmatprep.subr.bf16.mxu0 0
        %982 = vmatpush1.bf16.msra.mxu0 0
        %983 = vmatprep.subr.bf16.mxu0 0
        %984 = vmatpush1.bf16.msra.mxu0 0
        %985 = vmatprep.subr.bf16.mxu0 0
        %986 = vmatpush1.bf16.msra.mxu0 0
        %987 = vmatprep.mubr.bf16.mxu0 0
        %988 = vmatmul.mubr.bf16.gmra.mrb[0].mxu0 %v886
        %v989 = vpop.f32.mrb[0].mxu0
        %v990 = vadd.f32 0.0, %v989
        %v991 = vpop.f32.mrb[0].mxu0
        %v992 = vpop.f32.mrb[0].mxu0
        %v993 = vadd.f32 0.0, %v992
        %v994 = vpop.f32.mrb[0].mxu0
        %995 = vmatprep.mubr.bf16.mxu0 0
        %996 = vmatmul.mubr.bf16.gmra.mrb[0].mxu0 %v887
        %v997 = vpop.f32.mrb[0].mxu0
        %v998 = vadd.f32 0.0, %v997
        %v999 = vpop.f32.mrb[0].mxu0
        %v1000 = vpop.f32.mrb[0].mxu0
        %v1001 = vadd.f32 0.0, %v1000
        %v1002 = vpop.f32.mrb[0].mxu0
        %1003 = vmatprep.mubr.bf16.mxu0 0
        %1004 = vmatmul.mubr.bf16.gmra.mrb[0].mxu0 %v888
        %v1005 = vpop.f32.mrb[0].mxu0
        %v1006 = vadd.f32 0.0, %v1005
        %v1007 = vpop.f32.mrb[0].mxu0
        %v1008 = vpop.f32.mrb[0].mxu0
        %v1009 = vadd.f32 0.0, %v1008
        %v1010 = vpop.f32.mrb[0].mxu0
        %1011 = vmatprep.mubr.bf16.mxu0 0
        %1012 = vmatmul.mubr.bf16.gmra.mrb[0].mxu0 %v889
        %v1013 = vpop.f32.mrb[0].mxu0
        %v1014 = vadd.f32 0.0, %v1013
        %v1015 = vpop.f32.mrb[0].mxu0
        %v1016 = vpop.f32.mrb[0].mxu0
        %v1017 = vadd.f32 0.0, %v1016
        %v1018 = vpop.f32.mrb[0].mxu0
        %1019 = vdwg.mxu0
        %v1020 = vld [vmem:[#allocation2] sm:$0xff]
        %v1021 = vld [vmem:[#allocation2 + $0x8] sm:$0xff]
        %v1022 = vld [vmem:[#allocation2 + $0x10] sm:$0xff]
        %v1023 = vld [vmem:[#allocation2 + $0x18] sm:$0xff]
        %v1024 = vld [vmem:[#allocation2 + $0x20] sm:$0xff]
        %v1025 = vld [vmem:[#allocation2 + $0x28] sm:$0xff]
        %v1026 = vld [vmem:[#allocation2 + $0x30] sm:$0xff]
        %v1027 = vld [vmem:[#allocation2 + $0x38] sm:$0xff]
        %v1028 = vadd.f32 %v1020, %v990
        %v1029 = vadd.f32 %v1021, %v993
        %v1030 = vadd.f32 %v1022, %v998
        %v1031 = vadd.f32 %v1023, %v1001
        %v1032 = vadd.f32 %v1024, %v1006
        %v1033 = vadd.f32 %v1025, %v1009
        %v1034 = vadd.f32 %v1026, %v1014
        %v1035 = vadd.f32 %v1027, %v1017
        %1036 = vst [vmem:[#allocation2] sm:$0xff] %v1028
        %1037 = vst [vmem:[#allocation2 + $0x8] sm:$0xff] %v1029
        %1038 = vst [vmem:[#allocation2 + $0x10] sm:$0xff] %v1030
        %1039 = vst [vmem:[#allocation2 + $0x18] sm:$0xff] %v1031
        %1040 = vst [vmem:[#allocation2 + $0x20] sm:$0xff] %v1032
        %1041 = vst [vmem:[#allocation2 + $0x28] sm:$0xff] %v1033
        %1042 = vst [vmem:[#allocation2 + $0x30] sm:$0xff] %v1034
        %1043 = vst [vmem:[#allocation2 + $0x38] sm:$0xff] %v1035
        %s1044 = scalar_lea.vmem %s295, 216
        %v1045 = vld [vmem:[%s1044] sm:$0xf]
        %v1046 = vld [vmem:[%s1044 + $0x8] sm:$0xf]
        %v1047 = vld [vmem:[%s1044 + $0x10] sm:$0xf]
        %v1048 = vld [vmem:[%s1044 + $0x18] sm:$0xf]
        %v1049 = vld [vmem:[%s1044 + $0x20] sm:$0xf]
        %v1050 = vld [vmem:[%s1044 + $0x28] sm:$0xf]
        %v1051 = vld [vmem:[%s1044 + $0x30] sm:$0xf]
        %v1052 = vld [vmem:[%s1044 + $0x38] sm:$0xf]
        %v1053 = vunpack.c.l.bf16 %v1045
        %v1054 = vunpack.c.l.bf16 %v1046
        %v1055 = vunpack.c.l.bf16 %v1047
        %v1056 = vunpack.c.l.bf16 %v1048
        %v1057 = vunpack.c.l.bf16 %v1049
        %v1058 = vunpack.c.l.bf16 %v1050
        %v1059 = vunpack.c.l.bf16 %v1051
        %v1060 = vunpack.c.l.bf16 %v1052
        %v1061 = vpack.c.bf16 %v1054, %v1053
        %v1062 = vpack.c.bf16 %v1056, %v1055
        %v1063 = vpack.c.bf16 %v1058, %v1057
        %v1064 = vpack.c.bf16 %v1060, %v1059
        %s1065 = scalar_lea.vmem %s1, 256
        %v1066 = vld [vmem:[%s1065] sm:$0xf]
        %v1067 = vld [vmem:[%s1065 + $0x4] sm:$0xf]
        %v1068 = vld [vmem:[%s1065 + $0x8] sm:$0xf]
        %v1069 = vld [vmem:[%s1065 + $0xc] sm:$0xf]
        %v1070 = vld [vmem:[%s1065 + $0x10] sm:$0xf]
        %v1071 = vld [vmem:[%s1065 + $0x14] sm:$0xf]
        %v1072 = vld [vmem:[%s1065 + $0x18] sm:$0xf]
        %v1073 = vld [vmem:[%s1065 + $0x1c] sm:$0xf]
        %v1074 = vld [vmem:[%s1065 + $0x20] sm:$0xf]
        %v1075 = vld [vmem:[%s1065 + $0x24] sm:$0xf]
        %v1076 = vld [vmem:[%s1065 + $0x28] sm:$0xf]
        %v1077 = vld [vmem:[%s1065 + $0x2c] sm:$0xf]
        %v1078 = vld [vmem:[%s1065 + $0x30] sm:$0xf]
        %v1079 = vld [vmem:[%s1065 + $0x34] sm:$0xf]
        %v1080 = vld [vmem:[%s1065 + $0x38] sm:$0xf]
        %v1081 = vld [vmem:[%s1065 + $0x3c] sm:$0xf]
        %v1098 = vunpack.c.l.b16 %v1066
        %v1099 = vunpack.c.l.b16 %v1067
        %v1100 = vunpack.c.l.b16 %v1068
        %v1101 = vunpack.c.l.b16 %v1069
        %v1102 = vunpack.c.l.b16 %v1070
        %v1103 = vunpack.c.l.b16 %v1071
        %v1104 = vunpack.c.l.b16 %v1072
        %v1105 = vunpack.c.l.b16 %v1073
        %v1106 = vunpack.c.l.b16 %v1074
        %v1107 = vunpack.c.l.b16 %v1075
        %v1108 = vunpack.c.l.b16 %v1076
        %v1109 = vunpack.c.l.b16 %v1077
        %v1110 = vunpack.c.l.b16 %v1078
        %v1111 = vunpack.c.l.b16 %v1079
        %v1112 = vunpack.c.l.b16 %v1080
        %v1113 = vunpack.c.l.b16 %v1081
        %v1114 = vpack.c.b16 %v1099, %v1098
        %v1115 = vpack.c.b16 %v1101, %v1100
        %v1116 = vpack.c.b16 %v1103, %v1102
        %v1117 = vpack.c.b16 %v1105, %v1104
        %v1118 = vpack.c.b16 %v1107, %v1106
        %v1119 = vpack.c.b16 %v1109, %v1108
        %v1120 = vpack.c.b16 %v1111, %v1110
        %v1121 = vpack.c.b16 %v1113, %v1112
        %1130 = vmatprep.subr.bf16.mxu0 0
        %1131 = vmatpush1.bf16.msra.mxu0 %v1114
        %1132 = vmatprep.subr.bf16.mxu0 0
        %1133 = vmatpush1.bf16.msra.mxu0 %v1115
        %1134 = vmatprep.subr.bf16.mxu0 0
        %1135 = vmatpush1.bf16.msra.mxu0 %v1116
        %1136 = vmatprep.subr.bf16.mxu0 0
        %1137 = vmatpush1.bf16.msra.mxu0 %v1117
        %1138 = vmatprep.subr.bf16.mxu0 0
        %1139 = vmatpush1.bf16.msra.mxu0 %v1118
        %1140 = vmatprep.subr.bf16.mxu0 0
        %1141 = vmatpush1.bf16.msra.mxu0 %v1119
        %1142 = vmatprep.subr.bf16.mxu0 0
        %1143 = vmatpush1.bf16.msra.mxu0 %v1120
        %1144 = vmatprep.subr.bf16.mxu0 0
        %1145 = vmatpush1.bf16.msra.mxu0 %v1121
        %1146 = vmatprep.subr.bf16.mxu0 0
        %1147 = vmatpush1.bf16.msra.mxu0 0
        %1148 = vmatprep.subr.bf16.mxu0 0
        %1149 = vmatpush1.bf16.msra.mxu0 0
        %1150 = vmatprep.subr.bf16.mxu0 0
        %1151 = vmatpush1.bf16.msra.mxu0 0
        %1152 = vmatprep.subr.bf16.mxu0 0
        %1153 = vmatpush1.bf16.msra.mxu0 0
        %1154 = vmatprep.subr.bf16.mxu0 0
        %1155 = vmatpush1.bf16.msra.mxu0 0
        %1156 = vmatprep.subr.bf16.mxu0 0
        %1157 = vmatpush1.bf16.msra.mxu0 0
        %1158 = vmatprep.subr.bf16.mxu0 0
        %1159 = vmatpush1.bf16.msra.mxu0 0
        %1160 = vmatprep.subr.bf16.mxu0 0
        %1161 = vmatpush1.bf16.msra.mxu0 0
        %1162 = vmatprep.mubr.bf16.mxu0 0
        %1163 = vmatmul.mubr.bf16.gmra.mrb[0].mxu0 %v1061
        %v1164 = vpop.f32.mrb[0].mxu0
        %v1165 = vadd.f32 0.0, %v1164
        %v1166 = vpop.f32.mrb[0].mxu0
        %v1167 = vpop.f32.mrb[0].mxu0
        %v1168 = vadd.f32 0.0, %v1167
        %v1169 = vpop.f32.mrb[0].mxu0
        %1170 = vmatprep.mubr.bf16.mxu0 0
        %1171 = vmatmul.mubr.bf16.gmra.mrb[0].mxu0 %v1062
        %v1172 = vpop.f32.mrb[0].mxu0
        %v1173 = vadd.f32 0.0, %v1172
        %v1174 = vpop.f32.mrb[0].mxu0
        %v1175 = vpop.f32.mrb[0].mxu0
        %v1176 = vadd.f32 0.0, %v1175
        %v1177 = vpop.f32.mrb[0].mxu0
        %1178 = vmatprep.mubr.bf16.mxu0 0
        %1179 = vmatmul.mubr.bf16.gmra.mrb[0].mxu0 %v1063
        %v1180 = vpop.f32.mrb[0].mxu0
        %v1181 = vadd.f32 0.0, %v1180
        %v1182 = vpop.f32.mrb[0].mxu0
        %v1183 = vpop.f32.mrb[0].mxu0
        %v1184 = vadd.f32 0.0, %v1183
        %v1185 = vpop.f32.mrb[0].mxu0
        %1186 = vmatprep.mubr.bf16.mxu0 0
        %1187 = vmatmul.mubr.bf16.gmra.mrb[0].mxu0 %v1064
        %v1188 = vpop.f32.mrb[0].mxu0
        %v1189 = vadd.f32 0.0, %v1188
        %v1190 = vpop.f32.mrb[0].mxu0
        %v1191 = vpop.f32.mrb[0].mxu0
        %v1192 = vadd.f32 0.0, %v1191
        %v1193 = vpop.f32.mrb[0].mxu0
        %1194 = vdwg.mxu0
        %v1195 = vld [vmem:[#allocation2] sm:$0xff]
        %v1196 = vld [vmem:[#allocation2 + $0x8] sm:$0xff]
        %v1197 = vld [vmem:[#allocation2 + $0x10] sm:$0xff]
        %v1198 = vld [vmem:[#allocation2 + $0x18] sm:$0xff]
        %v1199 = vld [vmem:[#allocation2 + $0x20] sm:$0xff]
        %v1200 = vld [vmem:[#allocation2 + $0x28] sm:$0xff]
        %v1201 = vld [vmem:[#allocation2 + $0x30] sm:$0xff]
        %v1202 = vld [vmem:[#allocation2 + $0x38] sm:$0xff]
        %v1203 = vadd.f32 %v1195, %v1165
        %v1204 = vadd.f32 %v1196, %v1168
        %v1205 = vadd.f32 %v1197, %v1173
        %v1206 = vadd.f32 %v1198, %v1176
        %v1207 = vadd.f32 %v1199, %v1181
        %v1208 = vadd.f32 %v1200, %v1184
        %v1209 = vadd.f32 %v1201, %v1189
        %v1210 = vadd.f32 %v1202, %v1192
        %1211 = vst [vmem:[#allocation2] sm:$0xff] %v1203
        %1212 = vst [vmem:[#allocation2 + $0x8] sm:$0xff] %v1204
        %1213 = vst [vmem:[#allocation2 + $0x10] sm:$0xff] %v1205
        %1214 = vst [vmem:[#allocation2 + $0x18] sm:$0xff] %v1206
        %1215 = vst [vmem:[#allocation2 + $0x20] sm:$0xff] %v1207
        %1216 = vst [vmem:[#allocation2 + $0x28] sm:$0xff] %v1208
        %1217 = vst [vmem:[#allocation2 + $0x30] sm:$0xff] %v1209
        %1218 = vst [vmem:[#allocation2 + $0x38] sm:$0xff] %v1210
        %v1219 = vld [vmem:[%s869] sm:$0xf]
        %v1220 = vld [vmem:[%s869 + $0x4] sm:$0x1]
        %v1221 = vld [vmem:[%s869 + $0x8] sm:$0xf]
        %v1222 = vld [vmem:[%s869 + $0xc] sm:$0x1]
        %v1223 = vld [vmem:[%s869 + $0x10] sm:$0xf]
        %v1224 = vld [vmem:[%s869 + $0x14] sm:$0x1]
        %v1225 = vld [vmem:[%s869 + $0x18] sm:$0xf]
        %v1226 = vld [vmem:[%s869 + $0x1c] sm:$0x1]
        %v1227 = vld [vmem:[%s869 + $0x20] sm:$0xf]
        %v1228 = vld [vmem:[%s869 + $0x24] sm:$0x1]
        %v1229 = vld [vmem:[%s869 + $0x28] sm:$0xf]
        %v1230 = vld [vmem:[%s869 + $0x2c] sm:$0x1]
        %v1231 = vld [vmem:[%s869 + $0x30] sm:$0xf]
        %v1232 = vld [vmem:[%s869 + $0x34] sm:$0x1]
        %v1233 = vld [vmem:[%s869 + $0x38] sm:$0xf]
        %v1234 = vld [vmem:[%s869 + $0x3c] sm:$0x1]
        %v1235 = vunpack.c.l.bf16 %v1219
        %v1236 = vunpack.c.l.bf16 %v1220
        %v1237 = vunpack.c.l.bf16 %v1221
        %v1238 = vunpack.c.l.bf16 %v1222
        %v1239 = vunpack.c.l.bf16 %v1223
        %v1240 = vunpack.c.l.bf16 %v1224
        %v1241 = vunpack.c.l.bf16 %v1225
        %v1242 = vunpack.c.l.bf16 %v1226
        %v1243 = vunpack.c.l.bf16 %v1227
        %v1244 = vunpack.c.l.bf16 %v1228
        %v1245 = vunpack.c.l.bf16 %v1229
        %v1246 = vunpack.c.l.bf16 %v1230
        %v1247 = vunpack.c.l.bf16 %v1231
        %v1248 = vunpack.c.l.bf16 %v1232
        %v1249 = vunpack.c.l.bf16 %v1233
        %v1250 = vunpack.c.l.bf16 %v1234
        %v1267 = vrot.slane %v1235, 1
        %v1268 = vrot.slane %v1236, 1
        %v1269 = vsel %vm678, %v1267, %v1268
        %v1270 = vrot.slane %v1237, 1
        %v1271 = vrot.slane %v1238, 1
        %v1272 = vsel %vm678, %v1270, %v1271
        %v1273 = vrot.slane %v1239, 1
        %v1274 = vrot.slane %v1240, 1
        %v1275 = vsel %vm678, %v1273, %v1274
        %v1276 = vrot.slane %v1241, 1
        %v1277 = vrot.slane %v1242, 1
        %v1278 = vsel %vm678, %v1276, %v1277
        %v1279 = vrot.slane %v1243, 1
        %v1280 = vrot.slane %v1244, 1
        %v1281 = vsel %vm678, %v1279, %v1280
        %v1282 = vrot.slane %v1245, 1
        %v1283 = vrot.slane %v1246, 1
        %v1284 = vsel %vm678, %v1282, %v1283
        %v1285 = vrot.slane %v1247, 1
        %v1286 = vrot.slane %v1248, 1
        %v1287 = vsel %vm678, %v1285, %v1286
        %v1288 = vrot.slane %v1249, 1
        %v1289 = vrot.slane %v1250, 1
        %v1290 = vsel %vm678, %v1288, %v1289
        %v1299 = vpack.c.bf16 %v1272, %v1269
        %v1300 = vpack.c.bf16 %v1278, %v1275
        %v1301 = vpack.c.bf16 %v1284, %v1281
        %v1302 = vpack.c.bf16 %v1290, %v1287
        %s1303 = scalar_lea.vmem %s1, 320
        %v1304 = vld [vmem:[%s1303] sm:$0xf]
        %v1305 = vld [vmem:[%s1303 + $0x4] sm:$0xf]
        %v1306 = vld [vmem:[%s1303 + $0x8] sm:$0xf]
        %v1307 = vld [vmem:[%s1303 + $0xc] sm:$0xf]
        %v1308 = vld [vmem:[%s1303 + $0x10] sm:$0xf]
        %v1309 = vld [vmem:[%s1303 + $0x14] sm:$0xf]
        %v1310 = vld [vmem:[%s1303 + $0x18] sm:$0xf]
        %v1311 = vld [vmem:[%s1303 + $0x1c] sm:$0xf]
        %v1312 = vld [vmem:[%s1303 + $0x20] sm:$0xf]
        %v1313 = vld [vmem:[%s1303 + $0x24] sm:$0xf]
        %v1314 = vld [vmem:[%s1303 + $0x28] sm:$0xf]
        %v1315 = vld [vmem:[%s1303 + $0x2c] sm:$0xf]
        %v1316 = vld [vmem:[%s1303 + $0x30] sm:$0xf]
        %v1317 = vld [vmem:[%s1303 + $0x34] sm:$0xf]
        %v1318 = vld [vmem:[%s1303 + $0x38] sm:$0xf]
        %v1319 = vld [vmem:[%s1303 + $0x3c] sm:$0xf]
        %v1336 = vunpack.c.l.b16 %v1304
        %v1337 = vunpack.c.l.b16 %v1305
        %v1338 = vunpack.c.l.b16 %v1306
        %v1339 = vunpack.c.l.b16 %v1307
        %v1340 = vunpack.c.l.b16 %v1308
        %v1341 = vunpack.c.l.b16 %v1309
        %v1342 = vunpack.c.l.b16 %v1310
        %v1343 = vunpack.c.l.b16 %v1311
        %v1344 = vunpack.c.l.b16 %v1312
        %v1345 = vunpack.c.l.b16 %v1313
        %v1346 = vunpack.c.l.b16 %v1314
        %v1347 = vunpack.c.l.b16 %v1315
        %v1348 = vunpack.c.l.b16 %v1316
        %v1349 = vunpack.c.l.b16 %v1317
        %v1350 = vunpack.c.l.b16 %v1318
        %v1351 = vunpack.c.l.b16 %v1319
        %v1352 = vpack.c.b16 %v1337, %v1336
        %v1353 = vpack.c.b16 %v1339, %v1338
        %v1354 = vpack.c.b16 %v1341, %v1340
        %v1355 = vpack.c.b16 %v1343, %v1342
        %v1356 = vpack.c.b16 %v1345, %v1344
        %v1357 = vpack.c.b16 %v1347, %v1346
        %v1358 = vpack.c.b16 %v1349, %v1348
        %v1359 = vpack.c.b16 %v1351, %v1350
        %1368 = vmatprep.subr.bf16.mxu0 0
        %1369 = vmatpush1.bf16.msra.mxu0 %v1352
        %1370 = vmatprep.subr.bf16.mxu0 0
        %1371 = vmatpush1.bf16.msra.mxu0 %v1353
        %1372 = vmatprep.subr.bf16.mxu0 0
        %1373 = vmatpush1.bf16.msra.mxu0 %v1354
        %1374 = vmatprep.subr.bf16.mxu0 0
        %1375 = vmatpush1.bf16.msra.mxu0 %v1355
        %1376 = vmatprep.subr.bf16.mxu0 0
        %1377 = vmatpush1.bf16.msra.mxu0 %v1356
        %1378 = vmatprep.subr.bf16.mxu0 0
        %1379 = vmatpush1.bf16.msra.mxu0 %v1357
        %1380 = vmatprep.subr.bf16.mxu0 0
        %1381 = vmatpush1.bf16.msra.mxu0 %v1358
        %1382 = vmatprep.subr.bf16.mxu0 0
        %1383 = vmatpush1.bf16.msra.mxu0 %v1359
        %1384 = vmatprep.subr.bf16.mxu0 0
        %1385 = vmatpush1.bf16.msra.mxu0 0
        %1386 = vmatprep.subr.bf16.mxu0 0
        %1387 = vmatpush1.bf16.msra.mxu0 0
        %1388 = vmatprep.subr.bf16.mxu0 0
        %1389 = vmatpush1.bf16.msra.mxu0 0
        %1390 = vmatprep.subr.bf16.mxu0 0
        %1391 = vmatpush1.bf16.msra.mxu0 0
        %1392 = vmatprep.subr.bf16.mxu0 0
        %1393 = vmatpush1.bf16.msra.mxu0 0
        %1394 = vmatprep.subr.bf16.mxu0 0
        %1395 = vmatpush1.bf16.msra.mxu0 0
        %1396 = vmatprep.subr.bf16.mxu0 0
        %1397 = vmatpush1.bf16.msra.mxu0 0
        %1398 = vmatprep.subr.bf16.mxu0 0
        %1399 = vmatpush1.bf16.msra.mxu0 0
        %1400 = vmatprep.mubr.bf16.mxu0 0
        %1401 = vmatmul.mubr.bf16.gmra.mrb[0].mxu0 %v1299
        %v1402 = vpop.f32.mrb[0].mxu0
        %v1403 = vadd.f32 0.0, %v1402
        %v1404 = vpop.f32.mrb[0].mxu0
        %v1405 = vpop.f32.mrb[0].mxu0
        %v1406 = vadd.f32 0.0, %v1405
        %v1407 = vpop.f32.mrb[0].mxu0
        %1408 = vmatprep.mubr.bf16.mxu0 0
        %1409 = vmatmul.mubr.bf16.gmra.mrb[0].mxu0 %v1300
        %v1410 = vpop.f32.mrb[0].mxu0
        %v1411 = vadd.f32 0.0, %v1410
        %v1412 = vpop.f32.mrb[0].mxu0
        %v1413 = vpop.f32.mrb[0].mxu0
        %v1414 = vadd.f32 0.0, %v1413
        %v1415 = vpop.f32.mrb[0].mxu0
        %1416 = vmatprep.mubr.bf16.mxu0 0
        %1417 = vmatmul.mubr.bf16.gmra.mrb[0].mxu0 %v1301
        %v1418 = vpop.f32.mrb[0].mxu0
        %v1419 = vadd.f32 0.0, %v1418
        %v1420 = vpop.f32.mrb[0].mxu0
        %v1421 = vpop.f32.mrb[0].mxu0
        %v1422 = vadd.f32 0.0, %v1421
        %v1423 = vpop.f32.mrb[0].mxu0
        %1424 = vmatprep.mubr.bf16.mxu0 0
        %1425 = vmatmul.mubr.bf16.gmra.mrb[0].mxu0 %v1302
        %v1426 = vpop.f32.mrb[0].mxu0
        %v1427 = vadd.f32 0.0, %v1426
        %v1428 = vpop.f32.mrb[0].mxu0
        %v1429 = vpop.f32.mrb[0].mxu0
        %v1430 = vadd.f32 0.0, %v1429
        %v1431 = vpop.f32.mrb[0].mxu0
        %1432 = vdwg.mxu0
        %v1433 = vld [vmem:[#allocation2] sm:$0xff]
        %v1434 = vld [vmem:[#allocation2 + $0x8] sm:$0xff]
        %v1435 = vld [vmem:[#allocation2 + $0x10] sm:$0xff]
        %v1436 = vld [vmem:[#allocation2 + $0x18] sm:$0xff]
        %v1437 = vld [vmem:[#allocation2 + $0x20] sm:$0xff]
        %v1438 = vld [vmem:[#allocation2 + $0x28] sm:$0xff]
        %v1439 = vld [vmem:[#allocation2 + $0x30] sm:$0xff]
        %v1440 = vld [vmem:[#allocation2 + $0x38] sm:$0xff]
        %v1441 = vadd.f32 %v1433, %v1403
        %v1442 = vadd.f32 %v1434, %v1406
        %v1443 = vadd.f32 %v1435, %v1411
        %v1444 = vadd.f32 %v1436, %v1414
        %v1445 = vadd.f32 %v1437, %v1419
        %v1446 = vadd.f32 %v1438, %v1422
        %v1447 = vadd.f32 %v1439, %v1427
        %v1448 = vadd.f32 %v1440, %v1430
        %1449 = vst [vmem:[#allocation2] sm:$0xff] %v1441
        %1450 = vst [vmem:[#allocation2 + $0x8] sm:$0xff] %v1442
        %1451 = vst [vmem:[#allocation2 + $0x10] sm:$0xff] %v1443
        %1452 = vst [vmem:[#allocation2 + $0x18] sm:$0xff] %v1444
        %1453 = vst [vmem:[#allocation2 + $0x20] sm:$0xff] %v1445
        %1454 = vst [vmem:[#allocation2 + $0x28] sm:$0xff] %v1446
        %1455 = vst [vmem:[#allocation2 + $0x30] sm:$0xff] %v1447
        %1456 = vst [vmem:[#allocation2 + $0x38] sm:$0xff] %v1448
        %s1457 = scalar_lea.vmem %s295, 8
        %v1458 = vld [vmem:[%s1457] sm:$0xf]
        %v1459 = vld [vmem:[%s1457 + $0x8] sm:$0xf]
        %v1460 = vld [vmem:[%s1457 + $0x10] sm:$0xf]
        %v1461 = vld [vmem:[%s1457 + $0x18] sm:$0xf]
        %v1462 = vld [vmem:[%s1457 + $0x20] sm:$0xf]
        %v1463 = vld [vmem:[%s1457 + $0x28] sm:$0xf]
        %v1464 = vld [vmem:[%s1457 + $0x30] sm:$0xf]
        %v1465 = vld [vmem:[%s1457 + $0x38] sm:$0xf]
        %v1466 = vunpack.c.l.bf16 %v1458
        %v1467 = vunpack.c.l.bf16 %v1459
        %v1468 = vunpack.c.l.bf16 %v1460
        %v1469 = vunpack.c.l.bf16 %v1461
        %v1470 = vunpack.c.l.bf16 %v1462
        %v1471 = vunpack.c.l.bf16 %v1463
        %v1472 = vunpack.c.l.bf16 %v1464
        %v1473 = vunpack.c.l.bf16 %v1465
        %v1474 = vpack.c.bf16 %v1467, %v1466
        %v1475 = vpack.c.bf16 %v1469, %v1468
        %v1476 = vpack.c.bf16 %v1471, %v1470
        %v1477 = vpack.c.bf16 %v1473, %v1472
        %s1478 = scalar_lea.vmem %s1, 384
        %v1479 = vld [vmem:[%s1478] sm:$0xf]
        %v1480 = vld [vmem:[%s1478 + $0x4] sm:$0xf]
        %v1481 = vld [vmem:[%s1478 + $0x8] sm:$0xf]
        %v1482 = vld [vmem:[%s1478 + $0xc] sm:$0xf]
        %v1483 = vld [vmem:[%s1478 + $0x10] sm:$0xf]
        %v1484 = vld [vmem:[%s1478 + $0x14] sm:$0xf]
        %v1485 = vld [vmem:[%s1478 + $0x18] sm:$0xf]
        %v1486 = vld [vmem:[%s1478 + $0x1c] sm:$0xf]
        %v1487 = vld [vmem:[%s1478 + $0x20] sm:$0xf]
        %v1488 = vld [vmem:[%s1478 + $0x24] sm:$0xf]
        %v1489 = vld [vmem:[%s1478 + $0x28] sm:$0xf]
        %v1490 = vld [vmem:[%s1478 + $0x2c] sm:$0xf]
        %v1491 = vld [vmem:[%s1478 + $0x30] sm:$0xf]
        %v1492 = vld [vmem:[%s1478 + $0x34] sm:$0xf]
        %v1493 = vld [vmem:[%s1478 + $0x38] sm:$0xf]
        %v1494 = vld [vmem:[%s1478 + $0x3c] sm:$0xf]
        %v1511 = vunpack.c.l.b16 %v1479
        %v1512 = vunpack.c.l.b16 %v1480
        %v1513 = vunpack.c.l.b16 %v1481
        %v1514 = vunpack.c.l.b16 %v1482
        %v1515 = vunpack.c.l.b16 %v1483
        %v1516 = vunpack.c.l.b16 %v1484
        %v1517 = vunpack.c.l.b16 %v1485
        %v1518 = vunpack.c.l.b16 %v1486
        %v1519 = vunpack.c.l.b16 %v1487
        %v1520 = vunpack.c.l.b16 %v1488
        %v1521 = vunpack.c.l.b16 %v1489
        %v1522 = vunpack.c.l.b16 %v1490
        %v1523 = vunpack.c.l.b16 %v1491
        %v1524 = vunpack.c.l.b16 %v1492
        %v1525 = vunpack.c.l.b16 %v1493
        %v1526 = vunpack.c.l.b16 %v1494
        %v1527 = vpack.c.b16 %v1512, %v1511
        %v1528 = vpack.c.b16 %v1514, %v1513
        %v1529 = vpack.c.b16 %v1516, %v1515
        %v1530 = vpack.c.b16 %v1518, %v1517
        %v1531 = vpack.c.b16 %v1520, %v1519
        %v1532 = vpack.c.b16 %v1522, %v1521
        %v1533 = vpack.c.b16 %v1524, %v1523
        %v1534 = vpack.c.b16 %v1526, %v1525
        %1543 = vmatprep.subr.bf16.mxu0 0
        %1544 = vmatpush1.bf16.msra.mxu0 %v1527
        %1545 = vmatprep.subr.bf16.mxu0 0
        %1546 = vmatpush1.bf16.msra.mxu0 %v1528
        %1547 = vmatprep.subr.bf16.mxu0 0
        %1548 = vmatpush1.bf16.msra.mxu0 %v1529
        %1549 = vmatprep.subr.bf16.mxu0 0
        %1550 = vmatpush1.bf16.msra.mxu0 %v1530
        %1551 = vmatprep.subr.bf16.mxu0 0
        %1552 = vmatpush1.bf16.msra.mxu0 %v1531
        %1553 = vmatprep.subr.bf16.mxu0 0
        %1554 = vmatpush1.bf16.msra.mxu0 %v1532
        %1555 = vmatprep.subr.bf16.mxu0 0
        %1556 = vmatpush1.bf16.msra.mxu0 %v1533
        %1557 = vmatprep.subr.bf16.mxu0 0
        %1558 = vmatpush1.bf16.msra.mxu0 %v1534
        %1559 = vmatprep.subr.bf16.mxu0 0
        %1560 = vmatpush1.bf16.msra.mxu0 0
        %1561 = vmatprep.subr.bf16.mxu0 0
        %1562 = vmatpush1.bf16.msra.mxu0 0
        %1563 = vmatprep.subr.bf16.mxu0 0
        %1564 = vmatpush1.bf16.msra.mxu0 0
        %1565 = vmatprep.subr.bf16.mxu0 0
        %1566 = vmatpush1.bf16.msra.mxu0 0
        %1567 = vmatprep.subr.bf16.mxu0 0
        %1568 = vmatpush1.bf16.msra.mxu0 0
        %1569 = vmatprep.subr.bf16.mxu0 0
        %1570 = vmatpush1.bf16.msra.mxu0 0
        %1571 = vmatprep.subr.bf16.mxu0 0
        %1572 = vmatpush1.bf16.msra.mxu0 0
        %1573 = vmatprep.subr.bf16.mxu0 0
        %1574 = vmatpush1.bf16.msra.mxu0 0
        %1575 = vmatprep.mubr.bf16.mxu0 0
        %1576 = vmatmul.mubr.bf16.gmra.mrb[0].mxu0 %v1474
        %v1577 = vpop.f32.mrb[0].mxu0
        %v1578 = vadd.f32 0.0, %v1577
        %v1579 = vpop.f32.mrb[0].mxu0
        %v1580 = vpop.f32.mrb[0].mxu0
        %v1581 = vadd.f32 0.0, %v1580
        %v1582 = vpop.f32.mrb[0].mxu0
        %1583 = vmatprep.mubr.bf16.mxu0 0
        %1584 = vmatmul.mubr.bf16.gmra.mrb[0].mxu0 %v1475
        %v1585 = vpop.f32.mrb[0].mxu0
        %v1586 = vadd.f32 0.0, %v1585
        %v1587 = vpop.f32.mrb[0].mxu0
        %v1588 = vpop.f32.mrb[0].mxu0
        %v1589 = vadd.f32 0.0, %v1588
        %v1590 = vpop.f32.mrb[0].mxu0
        %1591 = vmatprep.mubr.bf16.mxu0 0
        %1592 = vmatmul.mubr.bf16.gmra.mrb[0].mxu0 %v1476
        %v1593 = vpop.f32.mrb[0].mxu0
        %v1594 = vadd.f32 0.0, %v1593
        %v1595 = vpop.f32.mrb[0].mxu0
        %v1596 = vpop.f32.mrb[0].mxu0
        %v1597 = vadd.f32 0.0, %v1596
        %v1598 = vpop.f32.mrb[0].mxu0
        %1599 = vmatprep.mubr.bf16.mxu0 0
        %1600 = vmatmul.mubr.bf16.gmra.mrb[0].mxu0 %v1477
        %v1601 = vpop.f32.mrb[0].mxu0
        %v1602 = vadd.f32 0.0, %v1601
        %v1603 = vpop.f32.mrb[0].mxu0
        %v1604 = vpop.f32.mrb[0].mxu0
        %v1605 = vadd.f32 0.0, %v1604
        %v1606 = vpop.f32.mrb[0].mxu0
        %1607 = vdwg.mxu0
        %v1608 = vld [vmem:[#allocation2] sm:$0xff]
        %v1609 = vld [vmem:[#allocation2 + $0x8] sm:$0xff]
        %v1610 = vld [vmem:[#allocation2 + $0x10] sm:$0xff]
        %v1611 = vld [vmem:[#allocation2 + $0x18] sm:$0xff]
        %v1612 = vld [vmem:[#allocation2 + $0x20] sm:$0xff]
        %v1613 = vld [vmem:[#allocation2 + $0x28] sm:$0xff]
        %v1614 = vld [vmem:[#allocation2 + $0x30] sm:$0xff]
        %v1615 = vld [vmem:[#allocation2 + $0x38] sm:$0xff]
        %v1616 = vadd.f32 %v1608, %v1578
        %v1617 = vadd.f32 %v1609, %v1581
        %v1618 = vadd.f32 %v1610, %v1586
        %v1619 = vadd.f32 %v1611, %v1589
        %v1620 = vadd.f32 %v1612, %v1594
        %v1621 = vadd.f32 %v1613, %v1597
        %v1622 = vadd.f32 %v1614, %v1602
        %v1623 = vadd.f32 %v1615, %v1605
        %1624 = vst [vmem:[#allocation2] sm:$0xff] %v1616
        %1625 = vst [vmem:[#allocation2 + $0x8] sm:$0xff] %v1617
        %1626 = vst [vmem:[#allocation2 + $0x10] sm:$0xff] %v1618
        %1627 = vst [vmem:[#allocation2 + $0x18] sm:$0xff] %v1619
        %1628 = vst [vmem:[#allocation2 + $0x20] sm:$0xff] %v1620
        %1629 = vst [vmem:[#allocation2 + $0x28] sm:$0xff] %v1621
        %1630 = vst [vmem:[#allocation2 + $0x30] sm:$0xff] %v1622
        %1631 = vst [vmem:[#allocation2 + $0x38] sm:$0xff] %v1623
        %s1632 = scalar_lea.vmem %s295, 80
        %v1633 = vld [vmem:[%s1632] sm:$0xf]
        %v1634 = vld [vmem:[%s1632 + $0x8] sm:$0xf]
        %v1635 = vld [vmem:[%s1632 + $0x10] sm:$0xf]
        %v1636 = vld [vmem:[%s1632 + $0x18] sm:$0xf]
        %v1637 = vld [vmem:[%s1632 + $0x20] sm:$0xf]
        %v1638 = vld [vmem:[%s1632 + $0x28] sm:$0xf]
        %v1639 = vld [vmem:[%s1632 + $0x30] sm:$0xf]
        %v1640 = vld [vmem:[%s1632 + $0x38] sm:$0xf]
        %v1641 = vunpack.c.l.bf16 %v1633
        %v1642 = vunpack.c.l.bf16 %v1634
        %v1643 = vunpack.c.l.bf16 %v1635
        %v1644 = vunpack.c.l.bf16 %v1636
        %v1645 = vunpack.c.l.bf16 %v1637
        %v1646 = vunpack.c.l.bf16 %v1638
        %v1647 = vunpack.c.l.bf16 %v1639
        %v1648 = vunpack.c.l.bf16 %v1640
        %v1649 = vpack.c.bf16 %v1642, %v1641
        %v1650 = vpack.c.bf16 %v1644, %v1643
        %v1651 = vpack.c.bf16 %v1646, %v1645
        %v1652 = vpack.c.bf16 %v1648, %v1647
        %s1653 = scalar_lea.vmem %s1, 448
        %v1654 = vld [vmem:[%s1653] sm:$0xf]
        %v1655 = vld [vmem:[%s1653 + $0x4] sm:$0xf]
        %v1656 = vld [vmem:[%s1653 + $0x8] sm:$0xf]
        %v1657 = vld [vmem:[%s1653 + $0xc] sm:$0xf]
        %v1658 = vld [vmem:[%s1653 + $0x10] sm:$0xf]
        %v1659 = vld [vmem:[%s1653 + $0x14] sm:$0xf]
        %v1660 = vld [vmem:[%s1653 + $0x18] sm:$0xf]
        %v1661 = vld [vmem:[%s1653 + $0x1c] sm:$0xf]
        %v1662 = vld [vmem:[%s1653 + $0x20] sm:$0xf]
        %v1663 = vld [vmem:[%s1653 + $0x24] sm:$0xf]
        %v1664 = vld [vmem:[%s1653 + $0x28] sm:$0xf]
        %v1665 = vld [vmem:[%s1653 + $0x2c] sm:$0xf]
        %v1666 = vld [vmem:[%s1653 + $0x30] sm:$0xf]
        %v1667 = vld [vmem:[%s1653 + $0x34] sm:$0xf]
        %v1668 = vld [vmem:[%s1653 + $0x38] sm:$0xf]
        %v1669 = vld [vmem:[%s1653 + $0x3c] sm:$0xf]
        %v1686 = vunpack.c.l.b16 %v1654
        %v1687 = vunpack.c.l.b16 %v1655
        %v1688 = vunpack.c.l.b16 %v1656
        %v1689 = vunpack.c.l.b16 %v1657
        %v1690 = vunpack.c.l.b16 %v1658
        %v1691 = vunpack.c.l.b16 %v1659
        %v1692 = vunpack.c.l.b16 %v1660
        %v1693 = vunpack.c.l.b16 %v1661
        %v1694 = vunpack.c.l.b16 %v1662
        %v1695 = vunpack.c.l.b16 %v1663
        %v1696 = vunpack.c.l.b16 %v1664
        %v1697 = vunpack.c.l.b16 %v1665
        %v1698 = vunpack.c.l.b16 %v1666
        %v1699 = vunpack.c.l.b16 %v1667
        %v1700 = vunpack.c.l.b16 %v1668
        %v1701 = vunpack.c.l.b16 %v1669
        %v1702 = vpack.c.b16 %v1687, %v1686
        %v1703 = vpack.c.b16 %v1689, %v1688
        %v1704 = vpack.c.b16 %v1691, %v1690
        %v1705 = vpack.c.b16 %v1693, %v1692
        %v1706 = vpack.c.b16 %v1695, %v1694
        %v1707 = vpack.c.b16 %v1697, %v1696
        %v1708 = vpack.c.b16 %v1699, %v1698
        %v1709 = vpack.c.b16 %v1701, %v1700
        %1718 = vmatprep.subr.bf16.mxu0 0
        %1719 = vmatpush1.bf16.msra.mxu0 %v1702
        %1720 = vmatprep.subr.bf16.mxu0 0
        %1721 = vmatpush1.bf16.msra.mxu0 %v1703
        %1722 = vmatprep.subr.bf16.mxu0 0
        %1723 = vmatpush1.bf16.msra.mxu0 %v1704
        %1724 = vmatprep.subr.bf16.mxu0 0
        %1725 = vmatpush1.bf16.msra.mxu0 %v1705
        %1726 = vmatprep.subr.bf16.mxu0 0
        %1727 = vmatpush1.bf16.msra.mxu0 %v1706
        %1728 = vmatprep.subr.bf16.mxu0 0
        %1729 = vmatpush1.bf16.msra.mxu0 %v1707
        %1730 = vmatprep.subr.bf16.mxu0 0
        %1731 = vmatpush1.bf16.msra.mxu0 %v1708
        %1732 = vmatprep.subr.bf16.mxu0 0
        %1733 = vmatpush1.bf16.msra.mxu0 %v1709
        %1734 = vmatprep.subr.bf16.mxu0 0
        %1735 = vmatpush1.bf16.msra.mxu0 0
        %1736 = vmatprep.subr.bf16.mxu0 0
        %1737 = vmatpush1.bf16.msra.mxu0 0
        %1738 = vmatprep.subr.bf16.mxu0 0
        %1739 = vmatpush1.bf16.msra.mxu0 0
        %1740 = vmatprep.subr.bf16.mxu0 0
        %1741 = vmatpush1.bf16.msra.mxu0 0
        %1742 = vmatprep.subr.bf16.mxu0 0
        %1743 = vmatpush1.bf16.msra.mxu0 0
        %1744 = vmatprep.subr.bf16.mxu0 0
        %1745 = vmatpush1.bf16.msra.mxu0 0
        %1746 = vmatprep.subr.bf16.mxu0 0
        %1747 = vmatpush1.bf16.msra.mxu0 0
        %1748 = vmatprep.subr.bf16.mxu0 0
        %1749 = vmatpush1.bf16.msra.mxu0 0
        %1750 = vmatprep.mubr.bf16.mxu0 0
        %1751 = vmatmul.mubr.bf16.gmra.mrb[0].mxu0 %v1649
        %v1752 = vpop.f32.mrb[0].mxu0
        %v1753 = vadd.f32 0.0, %v1752
        %v1754 = vpop.f32.mrb[0].mxu0
        %v1755 = vpop.f32.mrb[0].mxu0
        %v1756 = vadd.f32 0.0, %v1755
        %v1757 = vpop.f32.mrb[0].mxu0
        %1758 = vmatprep.mubr.bf16.mxu0 0
        %1759 = vmatmul.mubr.bf16.gmra.mrb[0].mxu0 %v1650
        %v1760 = vpop.f32.mrb[0].mxu0
        %v1761 = vadd.f32 0.0, %v1760
        %v1762 = vpop.f32.mrb[0].mxu0
        %v1763 = vpop.f32.mrb[0].mxu0
        %v1764 = vadd.f32 0.0, %v1763
        %v1765 = vpop.f32.mrb[0].mxu0
        %1766 = vmatprep.mubr.bf16.mxu0 0
        %1767 = vmatmul.mubr.bf16.gmra.mrb[0].mxu0 %v1651
        %v1768 = vpop.f32.mrb[0].mxu0
        %v1769 = vadd.f32 0.0, %v1768
        %v1770 = vpop.f32.mrb[0].mxu0
        %v1771 = vpop.f32.mrb[0].mxu0
        %v1772 = vadd.f32 0.0, %v1771
        %v1773 = vpop.f32.mrb[0].mxu0
        %1774 = vmatprep.mubr.bf16.mxu0 0
        %1775 = vmatmul.mubr.bf16.gmra.mrb[0].mxu0 %v1652
        %v1776 = vpop.f32.mrb[0].mxu0
        %v1777 = vadd.f32 0.0, %v1776
        %v1778 = vpop.f32.mrb[0].mxu0
        %v1779 = vpop.f32.mrb[0].mxu0
        %v1780 = vadd.f32 0.0, %v1779
        %v1781 = vpop.f32.mrb[0].mxu0
        %1782 = vdwg.mxu0
        %v1783 = vld [vmem:[#allocation2] sm:$0xff]
        %v1784 = vld [vmem:[#allocation2 + $0x8] sm:$0xff]
        %v1785 = vld [vmem:[#allocation2 + $0x10] sm:$0xff]
        %v1786 = vld [vmem:[#allocation2 + $0x18] sm:$0xff]
        %v1787 = vld [vmem:[#allocation2 + $0x20] sm:$0xff]
        %v1788 = vld [vmem:[#allocation2 + $0x28] sm:$0xff]
        %v1789 = vld [vmem:[#allocation2 + $0x30] sm:$0xff]
        %v1790 = vld [vmem:[#allocation2 + $0x38] sm:$0xff]
        %v1791 = vadd.f32 %v1783, %v1753
        %v1792 = vadd.f32 %v1784, %v1756
        %v1793 = vadd.f32 %v1785, %v1761
        %v1794 = vadd.f32 %v1786, %v1764
        %v1795 = vadd.f32 %v1787, %v1769
        %v1796 = vadd.f32 %v1788, %v1772
        %v1797 = vadd.f32 %v1789, %v1777
        %v1798 = vadd.f32 %v1790, %v1780
        %1799 = vst [vmem:[#allocation2] sm:$0xff] %v1791
        %1800 = vst [vmem:[#allocation2 + $0x8] sm:$0xff] %v1792
        %1801 = vst [vmem:[#allocation2 + $0x10] sm:$0xff] %v1793
        %1802 = vst [vmem:[#allocation2 + $0x18] sm:$0xff] %v1794
        %1803 = vst [vmem:[#allocation2 + $0x20] sm:$0xff] %v1795
        %1804 = vst [vmem:[#allocation2 + $0x28] sm:$0xff] %v1796
        %1805 = vst [vmem:[#allocation2 + $0x30] sm:$0xff] %v1797
        %1806 = vst [vmem:[#allocation2 + $0x38] sm:$0xff] %v1798
        %v1807 = vld [vmem:[%s1457] sm:$0xf]
        %v1808 = vld [vmem:[%s1457 + $0x4] sm:$0x1]
        %v1809 = vld [vmem:[%s1457 + $0x8] sm:$0xf]
        %v1810 = vld [vmem:[%s1457 + $0xc] sm:$0x1]
        %v1811 = vld [vmem:[%s1457 + $0x10] sm:$0xf]
        %v1812 = vld [vmem:[%s1457 + $0x14] sm:$0x1]
        %v1813 = vld [vmem:[%s1457 + $0x18] sm:$0xf]
        %v1814 = vld [vmem:[%s1457 + $0x1c] sm:$0x1]
        %v1815 = vld [vmem:[%s1457 + $0x20] sm:$0xf]
        %v1816 = vld [vmem:[%s1457 + $0x24] sm:$0x1]
        %v1817 = vld [vmem:[%s1457 + $0x28] sm:$0xf]
        %v1818 = vld [vmem:[%s1457 + $0x2c] sm:$0x1]
        %v1819 = vld [vmem:[%s1457 + $0x30] sm:$0xf]
        %v1820 = vld [vmem:[%s1457 + $0x34] sm:$0x1]
        %v1821 = vld [vmem:[%s1457 + $0x38] sm:$0xf]
        %v1822 = vld [vmem:[%s1457 + $0x3c] sm:$0x1]
        %v1823 = vunpack.c.l.bf16 %v1807
        %v1824 = vunpack.c.l.bf16 %v1808
        %v1825 = vunpack.c.l.bf16 %v1809
        %v1826 = vunpack.c.l.bf16 %v1810
        %v1827 = vunpack.c.l.bf16 %v1811
        %v1828 = vunpack.c.l.bf16 %v1812
        %v1829 = vunpack.c.l.bf16 %v1813
        %v1830 = vunpack.c.l.bf16 %v1814
        %v1831 = vunpack.c.l.bf16 %v1815
        %v1832 = vunpack.c.l.bf16 %v1816
        %v1833 = vunpack.c.l.bf16 %v1817
        %v1834 = vunpack.c.l.bf16 %v1818
        %v1835 = vunpack.c.l.bf16 %v1819
        %v1836 = vunpack.c.l.bf16 %v1820
        %v1837 = vunpack.c.l.bf16 %v1821
        %v1838 = vunpack.c.l.bf16 %v1822
        %v1855 = vrot.slane %v1823, 1
        %v1856 = vrot.slane %v1824, 1
        %v1857 = vsel %vm678, %v1855, %v1856
        %v1858 = vrot.slane %v1825, 1
        %v1859 = vrot.slane %v1826, 1
        %v1860 = vsel %vm678, %v1858, %v1859
        %v1861 = vrot.slane %v1827, 1
        %v1862 = vrot.slane %v1828, 1
        %v1863 = vsel %vm678, %v1861, %v1862
        %v1864 = vrot.slane %v1829, 1
        %v1865 = vrot.slane %v1830, 1
        %v1866 = vsel %vm678, %v1864, %v1865
        %v1867 = vrot.slane %v1831, 1
        %v1868 = vrot.slane %v1832, 1
        %v1869 = vsel %vm678, %v1867, %v1868
        %v1870 = vrot.slane %v1833, 1
        %v1871 = vrot.slane %v1834, 1
        %v1872 = vsel %vm678, %v1870, %v1871
        %v1873 = vrot.slane %v1835, 1
        %v1874 = vrot.slane %v1836, 1
        %v1875 = vsel %vm678, %v1873, %v1874
        %v1876 = vrot.slane %v1837, 1
        %v1877 = vrot.slane %v1838, 1
        %v1878 = vsel %vm678, %v1876, %v1877
        %v1887 = vpack.c.bf16 %v1860, %v1857
        %v1888 = vpack.c.bf16 %v1866, %v1863
        %v1889 = vpack.c.bf16 %v1872, %v1869
        %v1890 = vpack.c.bf16 %v1878, %v1875
        %s1891 = scalar_lea.vmem %s1, 512
        %v1892 = vld [vmem:[%s1891] sm:$0xf]
        %v1893 = vld [vmem:[%s1891 + $0x4] sm:$0xf]
        %v1894 = vld [vmem:[%s1891 + $0x8] sm:$0xf]
        %v1895 = vld [vmem:[%s1891 + $0xc] sm:$0xf]
        %v1896 = vld [vmem:[%s1891 + $0x10] sm:$0xf]
        %v1897 = vld [vmem:[%s1891 + $0x14] sm:$0xf]
        %v1898 = vld [vmem:[%s1891 + $0x18] sm:$0xf]
        %v1899 = vld [vmem:[%s1891 + $0x1c] sm:$0xf]
        %v1900 = vld [vmem:[%s1891 + $0x20] sm:$0xf]
        %v1901 = vld [vmem:[%s1891 + $0x24] sm:$0xf]
        %v1902 = vld [vmem:[%s1891 + $0x28] sm:$0xf]
        %v1903 = vld [vmem:[%s1891 + $0x2c] sm:$0xf]
        %v1904 = vld [vmem:[%s1891 + $0x30] sm:$0xf]
        %v1905 = vld [vmem:[%s1891 + $0x34] sm:$0xf]
        %v1906 = vld [vmem:[%s1891 + $0x38] sm:$0xf]
        %v1907 = vld [vmem:[%s1891 + $0x3c] sm:$0xf]
        %v1924 = vunpack.c.l.b16 %v1892
        %v1925 = vunpack.c.l.b16 %v1893
        %v1926 = vunpack.c.l.b16 %v1894
        %v1927 = vunpack.c.l.b16 %v1895
        %v1928 = vunpack.c.l.b16 %v1896
        %v1929 = vunpack.c.l.b16 %v1897
        %v1930 = vunpack.c.l.b16 %v1898
        %v1931 = vunpack.c.l.b16 %v1899
        %v1932 = vunpack.c.l.b16 %v1900
        %v1933 = vunpack.c.l.b16 %v1901
        %v1934 = vunpack.c.l.b16 %v1902
        %v1935 = vunpack.c.l.b16 %v1903
        %v1936 = vunpack.c.l.b16 %v1904
        %v1937 = vunpack.c.l.b16 %v1905
        %v1938 = vunpack.c.l.b16 %v1906
        %v1939 = vunpack.c.l.b16 %v1907
        %v1940 = vpack.c.b16 %v1925, %v1924
        %v1941 = vpack.c.b16 %v1927, %v1926
        %v1942 = vpack.c.b16 %v1929, %v1928
        %v1943 = vpack.c.b16 %v1931, %v1930
        %v1944 = vpack.c.b16 %v1933, %v1932
        %v1945 = vpack.c.b16 %v1935, %v1934
        %v1946 = vpack.c.b16 %v1937, %v1936
        %v1947 = vpack.c.b16 %v1939, %v1938
        %1956 = vmatprep.subr.bf16.mxu0 0
        %1957 = vmatpush1.bf16.msra.mxu0 %v1940
        %1958 = vmatprep.subr.bf16.mxu0 0
        %1959 = vmatpush1.bf16.msra.mxu0 %v1941
        %1960 = vmatprep.subr.bf16.mxu0 0
        %1961 = vmatpush1.bf16.msra.mxu0 %v1942
        %1962 = vmatprep.subr.bf16.mxu0 0
        %1963 = vmatpush1.bf16.msra.mxu0 %v1943
        %1964 = vmatprep.subr.bf16.mxu0 0
        %1965 = vmatpush1.bf16.msra.mxu0 %v1944
        %1966 = vmatprep.subr.bf16.mxu0 0
        %1967 = vmatpush1.bf16.msra.mxu0 %v1945
        %1968 = vmatprep.subr.bf16.mxu0 0
        %1969 = vmatpush1.bf16.msra.mxu0 %v1946
        %1970 = vmatprep.subr.bf16.mxu0 0
        %1971 = vmatpush1.bf16.msra.mxu0 %v1947
        %1972 = vmatprep.subr.bf16.mxu0 0
        %1973 = vmatpush1.bf16.msra.mxu0 0
        %1974 = vmatprep.subr.bf16.mxu0 0
        %1975 = vmatpush1.bf16.msra.mxu0 0
        %1976 = vmatprep.subr.bf16.mxu0 0
        %1977 = vmatpush1.bf16.msra.mxu0 0
        %1978 = vmatprep.subr.bf16.mxu0 0
        %1979 = vmatpush1.bf16.msra.mxu0 0
        %1980 = vmatprep.subr.bf16.mxu0 0
        %1981 = vmatpush1.bf16.msra.mxu0 0
        %1982 = vmatprep.subr.bf16.mxu0 0
        %1983 = vmatpush1.bf16.msra.mxu0 0
        %1984 = vmatprep.subr.bf16.mxu0 0
        %1985 = vmatpush1.bf16.msra.mxu0 0
        %1986 = vmatprep.subr.bf16.mxu0 0
        %1987 = vmatpush1.bf16.msra.mxu0 0
        %1988 = vmatprep.mubr.bf16.mxu0 0
        %1989 = vmatmul.mubr.bf16.gmra.mrb[0].mxu0 %v1887
        %v1990 = vpop.f32.mrb[0].mxu0
        %v1991 = vadd.f32 0.0, %v1990
        %v1992 = vpop.f32.mrb[0].mxu0
        %v1993 = vpop.f32.mrb[0].mxu0
        %v1994 = vadd.f32 0.0, %v1993
        %v1995 = vpop.f32.mrb[0].mxu0
        %1996 = vmatprep.mubr.bf16.mxu0 0
        %1997 = vmatmul.mubr.bf16.gmra.mrb[0].mxu0 %v1888
        %v1998 = vpop.f32.mrb[0].mxu0
        %v1999 = vadd.f32 0.0, %v1998
        %v2000 = vpop.f32.mrb[0].mxu0
        %v2001 = vpop.f32.mrb[0].mxu0
        %v2002 = vadd.f32 0.0, %v2001
        %v2003 = vpop.f32.mrb[0].mxu0
        %2004 = vmatprep.mubr.bf16.mxu0 0
        %2005 = vmatmul.mubr.bf16.gmra.mrb[0].mxu0 %v1889
        %v2006 = vpop.f32.mrb[0].mxu0
        %v2007 = vadd.f32 0.0, %v2006
        %v2008 = vpop.f32.mrb[0].mxu0
        %v2009 = vpop.f32.mrb[0].mxu0
        %v2010 = vadd.f32 0.0, %v2009
        %v2011 = vpop.f32.mrb[0].mxu0
        %2012 = vmatprep.mubr.bf16.mxu0 0
        %2013 = vmatmul.mubr.bf16.gmra.mrb[0].mxu0 %v1890
        %v2014 = vpop.f32.mrb[0].mxu0
        %v2015 = vadd.f32 0.0, %v2014
        %v2016 = vpop.f32.mrb[0].mxu0
        %v2017 = vpop.f32.mrb[0].mxu0
        %v2018 = vadd.f32 0.0, %v2017
        %v2019 = vpop.f32.mrb[0].mxu0
        %2020 = vdwg.mxu0
        %v2021 = vld [vmem:[#allocation2] sm:$0xff]
        %v2022 = vld [vmem:[#allocation2 + $0x8] sm:$0xff]
        %v2023 = vld [vmem:[#allocation2 + $0x10] sm:$0xff]
        %v2024 = vld [vmem:[#allocation2 + $0x18] sm:$0xff]
        %v2025 = vld [vmem:[#allocation2 + $0x20] sm:$0xff]
        %v2026 = vld [vmem:[#allocation2 + $0x28] sm:$0xff]
        %v2027 = vld [vmem:[#allocation2 + $0x30] sm:$0xff]
        %v2028 = vld [vmem:[#allocation2 + $0x38] sm:$0xff]
        %v2029 = vadd.f32 %v2021, %v1991
        %v2030 = vadd.f32 %v2022, %v1994
        %v2031 = vadd.f32 %v2023, %v1999
        %v2032 = vadd.f32 %v2024, %v2002
        %v2033 = vadd.f32 %v2025, %v2007
        %v2034 = vadd.f32 %v2026, %v2010
        %v2035 = vadd.f32 %v2027, %v2015
        %v2036 = vadd.f32 %v2028, %v2018
        %2037 = vst [vmem:[#allocation2] sm:$0xff] %v2029
        %2038 = vst [vmem:[#allocation2 + $0x8] sm:$0xff] %v2030
        %2039 = vst [vmem:[#allocation2 + $0x10] sm:$0xff] %v2031
        %2040 = vst [vmem:[#allocation2 + $0x18] sm:$0xff] %v2032
        %2041 = vst [vmem:[#allocation2 + $0x20] sm:$0xff] %v2033
        %2042 = vst [vmem:[#allocation2 + $0x28] sm:$0xff] %v2034
        %2043 = vst [vmem:[#allocation2 + $0x30] sm:$0xff] %v2035
        %2044 = vst [vmem:[#allocation2 + $0x38] sm:$0xff] %v2036
        %v2045 = vld [vmem:[#allocation2] sm:$0xff]
        %v2046 = vld [vmem:[#allocation2 + $0x8] sm:$0xff]
        %v2047 = vld [vmem:[#allocation2 + $0x10] sm:$0xff]
        %v2048 = vld [vmem:[#allocation2 + $0x18] sm:$0xff]
        %v2049 = vld [vmem:[#allocation2 + $0x20] sm:$0xff]
        %v2050 = vld [vmem:[#allocation2 + $0x28] sm:$0xff]
        %v2051 = vld [vmem:[#allocation2 + $0x30] sm:$0xff]
        %v2052 = vld [vmem:[#allocation2 + $0x38] sm:$0xff]
        %v2053 = vld [vmem:[%s2] sm:$0x1]
        %v2055 = vlaneseq
        %v2056 = vshrl.u32 %v2055, 7
        %v2057 = vsub.s32 0, %v2056
        %v2058 = vrot.slane %v2053, %v2057
        %v2060 = vadd.f32 %v2045, %v2058
        %v2061 = vadd.f32 %v2046, %v2058
        %v2062 = vadd.f32 %v2047, %v2058
        %v2063 = vadd.f32 %v2048, %v2058
        %v2064 = vadd.f32 %v2049, %v2058
        %v2065 = vadd.f32 %v2050, %v2058
        %v2066 = vadd.f32 %v2051, %v2058
        %v2067 = vadd.f32 %v2052, %v2058
        %v2068 = vmax.f32 %v2060, 0.0
        %v2069 = vmax.f32 %v2061, 0.0
        %v2070 = vmax.f32 %v2062, 0.0
        %v2071 = vmax.f32 %v2063, 0.0
        %v2072 = vmax.f32 %v2064, 0.0
        %v2073 = vmax.f32 %v2065, 0.0
        %v2074 = vmax.f32 %v2066, 0.0
        %v2075 = vmax.f32 %v2067, 0.0
        %2076 = vst [vmem:[#allocation3] sm:$0xff] 0.0
        %2077 = vst [vmem:[#allocation3 + $0x8] sm:$0x3] 0.0
        %2078 = vst [vmem:[#allocation3 + $0x10] sm:$0xff] 0.0
        %2079 = vst [vmem:[#allocation3 + $0x18] sm:$0x3] 0.0
        %2080 = vst [vmem:[#allocation3 + $0x20] sm:$0xff] 0.0
        %2081 = vst [vmem:[#allocation3 + $0x28] sm:$0x3] 0.0
        %2082 = vst [vmem:[#allocation3 + $0x30] sm:$0xff] 0.0
        %2083 = vst [vmem:[#allocation3 + $0x38] sm:$0x3] 0.0
        %2084 = vst [vmem:[#allocation3 + $0x40] sm:$0xff] 0.0
        %2085 = vst [vmem:[#allocation3 + $0x48] sm:$0x3] 0.0
        %2086 = vst [vmem:[#allocation3 + $0x50] sm:$0xff] 0.0
        %2087 = vst [vmem:[#allocation3 + $0x58] sm:$0x3] 0.0
        %2088 = vst [vmem:[#allocation3 + $0x60] sm:$0xff] 0.0
        %2089 = vst [vmem:[#allocation3 + $0x68] sm:$0x3] 0.0
        %2090 = vst [vmem:[#allocation3 + $0x70] sm:$0xff] 0.0
        %2091 = vst [vmem:[#allocation3 + $0x78] sm:$0x3] 0.0
        %2092 = vst [vmem:[#allocation3 + $0x80] sm:$0xff] 0.0
        %2093 = vst [vmem:[#allocation3 + $0x88] sm:$0x3] 0.0
        %2094 = vst [vmem:[#allocation3 + $0x90] sm:$0xff] 0.0
        %2095 = vst [vmem:[#allocation3 + $0x98] sm:$0x3] 0.0
        %s2096 = scalar_lea.vmem [#allocation3], 16
        %2097 = vst [vmem:[%s2096 + $0x1] sm:$0xff] %v2068
        %2098 = vst [vmem:[%s2096 + $0x11] sm:$0xff] %v2069
        %2099 = vst [vmem:[%s2096 + $0x21] sm:$0xff] %v2070
        %2100 = vst [vmem:[%s2096 + $0x31] sm:$0xff] %v2071
        %2101 = vst [vmem:[%s2096 + $0x41] sm:$0xff] %v2072
        %2102 = vst [vmem:[%s2096 + $0x51] sm:$0xff] %v2073
        %2103 = vst [vmem:[%s2096 + $0x61] sm:$0xff] %v2074
        %2104 = vst [vmem:[%s2096 + $0x71] sm:$0xff] %v2075
        %v2105 = vld [vmem:[%s1044] sm:$0xf]
        %v2106 = vld [vmem:[%s1044 + $0x8] sm:$0xf]
        %v2107 = vld [vmem:[%s1044 + $0x10] sm:$0xf]
        %v2108 = vld [vmem:[%s1044 + $0x18] sm:$0xf]
        %v2109 = vld [vmem:[%s1044 + $0x20] sm:$0xf]
        %v2110 = vld [vmem:[%s1044 + $0x28] sm:$0xf]
        %v2111 = vld [vmem:[%s1044 + $0x30] sm:$0xf]
        %v2112 = vld [vmem:[%s1044 + $0x38] sm:$0xf]
        %v2113 = vunpack.c.l.bf16 %v2105
        %v2114 = vunpack.c.l.bf16 %v2106
        %v2115 = vunpack.c.l.bf16 %v2107
        %v2116 = vunpack.c.l.bf16 %v2108
        %v2117 = vunpack.c.l.bf16 %v2109
        %v2118 = vunpack.c.l.bf16 %v2110
        %v2119 = vunpack.c.l.bf16 %v2111
        %v2120 = vunpack.c.l.bf16 %v2112
        %v2121 = vpack.c.bf16 %v2114, %v2113
        %v2122 = vpack.c.bf16 %v2116, %v2115
        %v2123 = vpack.c.bf16 %v2118, %v2117
        %v2124 = vpack.c.bf16 %v2120, %v2119
        %v2125 = vld [vmem:[%s5] sm:$0xf]
        %v2126 = vld [vmem:[%s5 + $0x4] sm:$0xf]
        %v2127 = vld [vmem:[%s5 + $0x8] sm:$0xf]
        %v2128 = vld [vmem:[%s5 + $0xc] sm:$0xf]
        %v2129 = vld [vmem:[%s5 + $0x10] sm:$0xf]
        %v2130 = vld [vmem:[%s5 + $0x14] sm:$0xf]
        %v2131 = vld [vmem:[%s5 + $0x18] sm:$0xf]
        %v2132 = vld [vmem:[%s5 + $0x1c] sm:$0xf]
        %v2133 = vld [vmem:[%s5 + $0x20] sm:$0xf]
        %v2134 = vld [vmem:[%s5 + $0x24] sm:$0xf]
        %v2135 = vld [vmem:[%s5 + $0x28] sm:$0xf]
        %v2136 = vld [vmem:[%s5 + $0x2c] sm:$0xf]
        %v2137 = vld [vmem:[%s5 + $0x30] sm:$0xf]
        %v2138 = vld [vmem:[%s5 + $0x34] sm:$0xf]
        %v2139 = vld [vmem:[%s5 + $0x38] sm:$0xf]
        %v2140 = vld [vmem:[%s5 + $0x3c] sm:$0xf]
        %v2141 = vld [vmem:[%s6] sm:$0x1]
        %v2143 = vlaneseq
        %v2144 = vshrl.u32 %v2143, 7
        %v2145 = vsub.s32 0, %v2144
        %v2146 = vrot.slane %v2141, %v2145
        %v2164 = vunpack.c.l.b16 %v2125
        %v2165 = vunpack.c.l.b16 %v2126
        %v2166 = vunpack.c.l.b16 %v2127
        %v2167 = vunpack.c.l.b16 %v2128
        %v2168 = vunpack.c.l.b16 %v2129
        %v2169 = vunpack.c.l.b16 %v2130
        %v2170 = vunpack.c.l.b16 %v2131
        %v2171 = vunpack.c.l.b16 %v2132
        %v2172 = vunpack.c.l.b16 %v2133
        %v2173 = vunpack.c.l.b16 %v2134
        %v2174 = vunpack.c.l.b16 %v2135
        %v2175 = vunpack.c.l.b16 %v2136
        %v2176 = vunpack.c.l.b16 %v2137
        %v2177 = vunpack.c.l.b16 %v2138
        %v2178 = vunpack.c.l.b16 %v2139
        %v2179 = vunpack.c.l.b16 %v2140
        %v2180 = vpack.c.b16 %v2165, %v2164
        %v2181 = vpack.c.b16 %v2167, %v2166
        %v2182 = vpack.c.b16 %v2169, %v2168
        %v2183 = vpack.c.b16 %v2171, %v2170
        %v2184 = vpack.c.b16 %v2173, %v2172
        %v2185 = vpack.c.b16 %v2175, %v2174
        %v2186 = vpack.c.b16 %v2177, %v2176
        %v2187 = vpack.c.b16 %v2179, %v2178
        %2196 = vmatprep.subr.bf16.mxu0 0
        %2197 = vmatpush1.bf16.msra.mxu0 %v2180
        %2198 = vmatprep.subr.bf16.mxu0 0
        %2199 = vmatpush1.bf16.msra.mxu0 %v2181
        %2200 = vmatprep.subr.bf16.mxu0 0
        %2201 = vmatpush1.bf16.msra.mxu0 %v2182
        %2202 = vmatprep.subr.bf16.mxu0 0
        %2203 = vmatpush1.bf16.msra.mxu0 %v2183
        %2204 = vmatprep.subr.bf16.mxu0 0
        %2205 = vmatpush1.bf16.msra.mxu0 %v2184
        %2206 = vmatprep.subr.bf16.mxu0 0
        %2207 = vmatpush1.bf16.msra.mxu0 %v2185
        %2208 = vmatprep.subr.bf16.mxu0 0
        %2209 = vmatpush1.bf16.msra.mxu0 %v2186
        %2210 = vmatprep.subr.bf16.mxu0 0
        %2211 = vmatpush1.bf16.msra.mxu0 %v2187
        %2212 = vmatprep.subr.bf16.mxu0 0
        %2213 = vmatpush1.bf16.msra.mxu0 0
        %2214 = vmatprep.subr.bf16.mxu0 0
        %2215 = vmatpush1.bf16.msra.mxu0 0
        %2216 = vmatprep.subr.bf16.mxu0 0
        %2217 = vmatpush1.bf16.msra.mxu0 0
        %2218 = vmatprep.subr.bf16.mxu0 0
        %2219 = vmatpush1.bf16.msra.mxu0 0
        %2220 = vmatprep.subr.bf16.mxu0 0
        %2221 = vmatpush1.bf16.msra.mxu0 0
        %2222 = vmatprep.subr.bf16.mxu0 0
        %2223 = vmatpush1.bf16.msra.mxu0 0
        %2224 = vmatprep.subr.bf16.mxu0 0
        %2225 = vmatpush1.bf16.msra.mxu0 0
        %2226 = vmatprep.subr.bf16.mxu0 0
        %2227 = vmatpush1.bf16.msra.mxu0 0
        %2228 = vmatprep.mubr.bf16.mxu0 0
        %2229 = vmatmul.mubr.bf16.gmra.mrb[0].mxu0 %v2121
        %v2230 = vpop.f32.mrb[0].mxu0
        %v2231 = vadd.f32 %v2146, %v2230
        %v2232 = vpop.f32.mrb[0].mxu0
        %v2233 = vpop.f32.mrb[0].mxu0
        %v2234 = vadd.f32 %v2146, %v2233
        %v2235 = vpop.f32.mrb[0].mxu0
        %2236 = vmatprep.mubr.bf16.mxu0 0
        %2237 = vmatmul.mubr.bf16.gmra.mrb[0].mxu0 %v2122
        %v2238 = vpop.f32.mrb[0].mxu0
        %v2239 = vadd.f32 %v2146, %v2238
        %v2240 = vpop.f32.mrb[0].mxu0
        %v2241 = vpop.f32.mrb[0].mxu0
        %v2242 = vadd.f32 %v2146, %v2241
        %v2243 = vpop.f32.mrb[0].mxu0
        %2244 = vmatprep.mubr.bf16.mxu0 0
        %2245 = vmatmul.mubr.bf16.gmra.mrb[0].mxu0 %v2123
        %v2246 = vpop.f32.mrb[0].mxu0
        %v2247 = vadd.f32 %v2146, %v2246
        %v2248 = vpop.f32.mrb[0].mxu0
        %v2249 = vpop.f32.mrb[0].mxu0
        %v2250 = vadd.f32 %v2146, %v2249
        %v2251 = vpop.f32.mrb[0].mxu0
        %2252 = vmatprep.mubr.bf16.mxu0 0
        %2253 = vmatmul.mubr.bf16.gmra.mrb[0].mxu0 %v2124
        %v2254 = vpop.f32.mrb[0].mxu0
        %v2255 = vadd.f32 %v2146, %v2254
        %v2256 = vpop.f32.mrb[0].mxu0
        %v2257 = vpop.f32.mrb[0].mxu0
        %v2258 = vadd.f32 %v2146, %v2257
        %v2259 = vpop.f32.mrb[0].mxu0
        %2260 = vdwg.mxu0
        %2261 = vst [vmem:[#allocation2] sm:$0xff] %v2231
        %2262 = vst [vmem:[#allocation2 + $0x8] sm:$0xff] %v2234
        %2263 = vst [vmem:[#allocation2 + $0x10] sm:$0xff] %v2239
        %2264 = vst [vmem:[#allocation2 + $0x18] sm:$0xff] %v2242
        %2265 = vst [vmem:[#allocation2 + $0x20] sm:$0xff] %v2247
        %2266 = vst [vmem:[#allocation2 + $0x28] sm:$0xff] %v2250
        %2267 = vst [vmem:[#allocation2 + $0x30] sm:$0xff] %v2255
        %2268 = vst [vmem:[#allocation2 + $0x38] sm:$0xff] %v2258
        %v2269 = vld [vmem:[#allocation3] sm:$0xff]
        %v2270 = vld [vmem:[#allocation3 + $0x10] sm:$0xff]
        %v2271 = vld [vmem:[#allocation3 + $0x20] sm:$0xff]
        %v2272 = vld [vmem:[#allocation3 + $0x30] sm:$0xff]
        %v2273 = vld [vmem:[#allocation3 + $0x40] sm:$0xff]
        %v2274 = vld [vmem:[#allocation3 + $0x50] sm:$0xff]
        %v2275 = vld [vmem:[#allocation3 + $0x60] sm:$0xff]
        %v2276 = vld [vmem:[#allocation3 + $0x70] sm:$0xff]
        %v2277 = vld [vmem:[#allocation2] sm:$0xff]
        %v2278 = vld [vmem:[#allocation2 + $0x8] sm:$0xff]
        %v2279 = vld [vmem:[#allocation2 + $0x10] sm:$0xff]
        %v2280 = vld [vmem:[#allocation2 + $0x18] sm:$0xff]
        %v2281 = vld [vmem:[#allocation2 + $0x20] sm:$0xff]
        %v2282 = vld [vmem:[#allocation2 + $0x28] sm:$0xff]
        %v2283 = vld [vmem:[#allocation2 + $0x30] sm:$0xff]
        %v2284 = vld [vmem:[#allocation2 + $0x38] sm:$0xff]
        %v2285 = vpack.c.bf16 %v2270, %v2269
        %v2286 = vpack.c.bf16 %v2272, %v2271
        %v2287 = vpack.c.bf16 %v2274, %v2273
        %v2288 = vpack.c.bf16 %v2276, %v2275
        %v2289 = vld [vmem:[#allocation4] sm:$0xf]
        %v2290 = vld [vmem:[#allocation4 + $0x4] sm:$0xf]
        %v2291 = vld [vmem:[#allocation4 + $0x8] sm:$0xf]
        %v2292 = vld [vmem:[#allocation4 + $0xc] sm:$0xf]
        %v2293 = vld [vmem:[#allocation4 + $0x10] sm:$0xf]
        %v2294 = vld [vmem:[#allocation4 + $0x14] sm:$0xf]
        %v2295 = vld [vmem:[#allocation4 + $0x18] sm:$0xf]
        %v2296 = vld [vmem:[#allocation4 + $0x1c] sm:$0xf]
        %v2297 = vld [vmem:[#allocation4 + $0x20] sm:$0xf]
        %v2298 = vld [vmem:[#allocation4 + $0x24] sm:$0xf]
        %v2299 = vld [vmem:[#allocation4 + $0x28] sm:$0xf]
        %v2300 = vld [vmem:[#allocation4 + $0x2c] sm:$0xf]
        %v2301 = vld [vmem:[#allocation4 + $0x30] sm:$0xf]
        %v2302 = vld [vmem:[#allocation4 + $0x34] sm:$0xf]
        %v2303 = vld [vmem:[#allocation4 + $0x38] sm:$0xf]
        %v2304 = vld [vmem:[#allocation4 + $0x3c] sm:$0xf]
        %v2321 = vunpack.c.l.b16 %v2289
        %v2322 = vunpack.c.l.b16 %v2290
        %v2323 = vunpack.c.l.b16 %v2291
        %v2324 = vunpack.c.l.b16 %v2292
        %v2325 = vunpack.c.l.b16 %v2293
        %v2326 = vunpack.c.l.b16 %v2294
        %v2327 = vunpack.c.l.b16 %v2295
        %v2328 = vunpack.c.l.b16 %v2296
        %v2329 = vunpack.c.l.b16 %v2297
        %v2330 = vunpack.c.l.b16 %v2298
        %v2331 = vunpack.c.l.b16 %v2299
        %v2332 = vunpack.c.l.b16 %v2300
        %v2333 = vunpack.c.l.b16 %v2301
        %v2334 = vunpack.c.l.b16 %v2302
        %v2335 = vunpack.c.l.b16 %v2303
        %v2336 = vunpack.c.l.b16 %v2304
        %v2337 = vpack.c.b16 %v2322, %v2321
        %v2338 = vpack.c.b16 %v2324, %v2323
        %v2339 = vpack.c.b16 %v2326, %v2325
        %v2340 = vpack.c.b16 %v2328, %v2327
        %v2341 = vpack.c.b16 %v2330, %v2329
        %v2342 = vpack.c.b16 %v2332, %v2331
        %v2343 = vpack.c.b16 %v2334, %v2333
        %v2344 = vpack.c.b16 %v2336, %v2335
        %2353 = vmatprep.subr.bf16.mxu0 0
        %2354 = vmatpush1.bf16.msra.mxu0 %v2337
        %2355 = vmatprep.subr.bf16.mxu0 0
        %2356 = vmatpush1.bf16.msra.mxu0 %v2338
        %2357 = vmatprep.subr.bf16.mxu0 0
        %2358 = vmatpush1.bf16.msra.mxu0 %v2339
        %2359 = vmatprep.subr.bf16.mxu0 0
        %2360 = vmatpush1.bf16.msra.mxu0 %v2340
        %2361 = vmatprep.subr.bf16.mxu0 0
        %2362 = vmatpush1.bf16.msra.mxu0 %v2341
        %2363 = vmatprep.subr.bf16.mxu0 0
        %2364 = vmatpush1.bf16.msra.mxu0 %v2342
        %2365 = vmatprep.subr.bf16.mxu0 0
        %2366 = vmatpush1.bf16.msra.mxu0 %v2343
        %2367 = vmatprep.subr.bf16.mxu0 0
        %2368 = vmatpush1.bf16.msra.mxu0 %v2344
        %2369 = vmatprep.subr.bf16.mxu0 0
        %2370 = vmatpush1.bf16.msra.mxu0 0
        %2371 = vmatprep.subr.bf16.mxu0 0
        %2372 = vmatpush1.bf16.msra.mxu0 0
        %2373 = vmatprep.subr.bf16.mxu0 0
        %2374 = vmatpush1.bf16.msra.mxu0 0
        %2375 = vmatprep.subr.bf16.mxu0 0
        %2376 = vmatpush1.bf16.msra.mxu0 0
        %2377 = vmatprep.subr.bf16.mxu0 0
        %2378 = vmatpush1.bf16.msra.mxu0 0
        %2379 = vmatprep.subr.bf16.mxu0 0
        %2380 = vmatpush1.bf16.msra.mxu0 0
        %2381 = vmatprep.subr.bf16.mxu0 0
        %2382 = vmatpush1.bf16.msra.mxu0 0
        %2383 = vmatprep.subr.bf16.mxu0 0
        %2384 = vmatpush1.bf16.msra.mxu0 0
        %2385 = vmatprep.mubr.bf16.mxu0 0
        %2386 = vmatmul.mubr.bf16.gmra.mrb[0].mxu0 %v2285
        %v2387 = vpop.f32.mrb[0].mxu0
        %v2388 = vadd.f32 0.0, %v2387
        %v2389 = vpop.f32.mrb[0].mxu0
        %v2390 = vpop.f32.mrb[0].mxu0
        %v2391 = vadd.f32 0.0, %v2390
        %v2392 = vpop.f32.mrb[0].mxu0
        %2393 = vmatprep.mubr.bf16.mxu0 0
        %2394 = vmatmul.mubr.bf16.gmra.mrb[0].mxu0 %v2286
        %v2395 = vpop.f32.mrb[0].mxu0
        %v2396 = vadd.f32 0.0, %v2395
        %v2397 = vpop.f32.mrb[0].mxu0
        %v2398 = vpop.f32.mrb[0].mxu0
        %v2399 = vadd.f32 0.0, %v2398
        %v2400 = vpop.f32.mrb[0].mxu0
        %2401 = vmatprep.mubr.bf16.mxu0 0
        %2402 = vmatmul.mubr.bf16.gmra.mrb[0].mxu0 %v2287
        %v2403 = vpop.f32.mrb[0].mxu0
        %v2404 = vadd.f32 0.0, %v2403
        %v2405 = vpop.f32.mrb[0].mxu0
        %v2406 = vpop.f32.mrb[0].mxu0
        %v2407 = vadd.f32 0.0, %v2406
        %v2408 = vpop.f32.mrb[0].mxu0
        %2409 = vmatprep.mubr.bf16.mxu0 0
        %2410 = vmatmul.mubr.bf16.gmra.mrb[0].mxu0 %v2288
        %v2411 = vpop.f32.mrb[0].mxu0
        %v2412 = vadd.f32 0.0, %v2411
        %v2413 = vpop.f32.mrb[0].mxu0
        %v2414 = vpop.f32.mrb[0].mxu0
        %v2415 = vadd.f32 0.0, %v2414
        %v2416 = vpop.f32.mrb[0].mxu0
        %2417 = vdwg.mxu0
        %v2418 = vadd.f32 %v2277, %v2388
        %v2419 = vadd.f32 %v2278, %v2391
        %v2420 = vadd.f32 %v2279, %v2396
        %v2421 = vadd.f32 %v2280, %v2399
        %v2422 = vadd.f32 %v2281, %v2404
        %v2423 = vadd.f32 %v2282, %v2407
        %v2424 = vadd.f32 %v2283, %v2412
        %v2425 = vadd.f32 %v2284, %v2415
        %2426 = vst [vmem:[#allocation2] sm:$0xff] %v2418
        %2427 = vst [vmem:[#allocation2 + $0x8] sm:$0xff] %v2419
        %2428 = vst [vmem:[#allocation2 + $0x10] sm:$0xff] %v2420
        %2429 = vst [vmem:[#allocation2 + $0x18] sm:$0xff] %v2421
        %2430 = vst [vmem:[#allocation2 + $0x20] sm:$0xff] %v2422
        %2431 = vst [vmem:[#allocation2 + $0x28] sm:$0xff] %v2423
        %2432 = vst [vmem:[#allocation2 + $0x30] sm:$0xff] %v2424
        %2433 = vst [vmem:[#allocation2 + $0x38] sm:$0xff] %v2425
        %v2434 = vld [vmem:[#allocation3 + $0x1] sm:$0xff]
        %v2435 = vld [vmem:[#allocation3 + $0x11] sm:$0xff]
        %v2436 = vld [vmem:[#allocation3 + $0x21] sm:$0xff]
        %v2437 = vld [vmem:[#allocation3 + $0x31] sm:$0xff]
        %v2438 = vld [vmem:[#allocation3 + $0x41] sm:$0xff]
        %v2439 = vld [vmem:[#allocation3 + $0x51] sm:$0xff]
        %v2440 = vld [vmem:[#allocation3 + $0x61] sm:$0xff]
        %v2441 = vld [vmem:[#allocation3 + $0x71] sm:$0xff]
        %v2442 = vld [vmem:[#allocation2] sm:$0xff]
        %v2443 = vld [vmem:[#allocation2 + $0x8] sm:$0xff]
        %v2444 = vld [vmem:[#allocation2 + $0x10] sm:$0xff]
        %v2445 = vld [vmem:[#allocation2 + $0x18] sm:$0xff]
        %v2446 = vld [vmem:[#allocation2 + $0x20] sm:$0xff]
        %v2447 = vld [vmem:[#allocation2 + $0x28] sm:$0xff]
        %v2448 = vld [vmem:[#allocation2 + $0x30] sm:$0xff]
        %v2449 = vld [vmem:[#allocation2 + $0x38] sm:$0xff]
        %v2450 = vpack.c.bf16 %v2435, %v2434
        %v2451 = vpack.c.bf16 %v2437, %v2436
        %v2452 = vpack.c.bf16 %v2439, %v2438
        %v2453 = vpack.c.bf16 %v2441, %v2440
        %s2454 = scalar_lea.vmem [#allocation4], 64
        %v2455 = vld [vmem:[%s2454] sm:$0xf]
        %v2456 = vld [vmem:[%s2454 + $0x4] sm:$0xf]
        %v2457 = vld [vmem:[%s2454 + $0x8] sm:$0xf]
        %v2458 = vld [vmem:[%s2454 + $0xc] sm:$0xf]
        %v2459 = vld [vmem:[%s2454 + $0x10] sm:$0xf]
        %v2460 = vld [vmem:[%s2454 + $0x14] sm:$0xf]
        %v2461 = vld [vmem:[%s2454 + $0x18] sm:$0xf]
        %v2462 = vld [vmem:[%s2454 + $0x1c] sm:$0xf]
        %v2463 = vld [vmem:[%s2454 + $0x20] sm:$0xf]
        %v2464 = vld [vmem:[%s2454 + $0x24] sm:$0xf]
        %v2465 = vld [vmem:[%s2454 + $0x28] sm:$0xf]
        %v2466 = vld [vmem:[%s2454 + $0x2c] sm:$0xf]
        %v2467 = vld [vmem:[%s2454 + $0x30] sm:$0xf]
        %v2468 = vld [vmem:[%s2454 + $0x34] sm:$0xf]
        %v2469 = vld [vmem:[%s2454 + $0x38] sm:$0xf]
        %v2470 = vld [vmem:[%s2454 + $0x3c] sm:$0xf]
        %v2487 = vunpack.c.l.b16 %v2455
        %v2488 = vunpack.c.l.b16 %v2456
        %v2489 = vunpack.c.l.b16 %v2457
        %v2490 = vunpack.c.l.b16 %v2458
        %v2491 = vunpack.c.l.b16 %v2459
        %v2492 = vunpack.c.l.b16 %v2460
        %v2493 = vunpack.c.l.b16 %v2461
        %v2494 = vunpack.c.l.b16 %v2462
        %v2495 = vunpack.c.l.b16 %v2463
        %v2496 = vunpack.c.l.b16 %v2464
        %v2497 = vunpack.c.l.b16 %v2465
        %v2498 = vunpack.c.l.b16 %v2466
        %v2499 = vunpack.c.l.b16 %v2467
        %v2500 = vunpack.c.l.b16 %v2468
        %v2501 = vunpack.c.l.b16 %v2469
        %v2502 = vunpack.c.l.b16 %v2470
        %v2503 = vpack.c.b16 %v2488, %v2487
        %v2504 = vpack.c.b16 %v2490, %v2489
        %v2505 = vpack.c.b16 %v2492, %v2491
        %v2506 = vpack.c.b16 %v2494, %v2493
        %v2507 = vpack.c.b16 %v2496, %v2495
        %v2508 = vpack.c.b16 %v2498, %v2497
        %v2509 = vpack.c.b16 %v2500, %v2499
        %v2510 = vpack.c.b16 %v2502, %v2501
        %2519 = vmatprep.subr.bf16.mxu0 0
        %2520 = vmatpush1.bf16.msra.mxu0 %v2503
        %2521 = vmatprep.subr.bf16.mxu0 0
        %2522 = vmatpush1.bf16.msra.mxu0 %v2504
        %2523 = vmatprep.subr.bf16.mxu0 0
        %2524 = vmatpush1.bf16.msra.mxu0 %v2505
        %2525 = vmatprep.subr.bf16.mxu0 0
        %2526 = vmatpush1.bf16.msra.mxu0 %v2506
        %2527 = vmatprep.subr.bf16.mxu0 0
        %2528 = vmatpush1.bf16.msra.mxu0 %v2507
        %2529 = vmatprep.subr.bf16.mxu0 0
        %2530 = vmatpush1.bf16.msra.mxu0 %v2508
        %2531 = vmatprep.subr.bf16.mxu0 0
        %2532 = vmatpush1.bf16.msra.mxu0 %v2509
        %2533 = vmatprep.subr.bf16.mxu0 0
        %2534 = vmatpush1.bf16.msra.mxu0 %v2510
        %2535 = vmatprep.subr.bf16.mxu0 0
        %2536 = vmatpush1.bf16.msra.mxu0 0
        %2537 = vmatprep.subr.bf16.mxu0 0
        %2538 = vmatpush1.bf16.msra.mxu0 0
        %2539 = vmatprep.subr.bf16.mxu0 0
        %2540 = vmatpush1.bf16.msra.mxu0 0
        %2541 = vmatprep.subr.bf16.mxu0 0
        %2542 = vmatpush1.bf16.msra.mxu0 0
        %2543 = vmatprep.subr.bf16.mxu0 0
        %2544 = vmatpush1.bf16.msra.mxu0 0
        %2545 = vmatprep.subr.bf16.mxu0 0
        %2546 = vmatpush1.bf16.msra.mxu0 0
        %2547 = vmatprep.subr.bf16.mxu0 0
        %2548 = vmatpush1.bf16.msra.mxu0 0
        %2549 = vmatprep.subr.bf16.mxu0 0
        %2550 = vmatpush1.bf16.msra.mxu0 0
        %2551 = vmatprep.mubr.bf16.mxu0 0
        %2552 = vmatmul.mubr.bf16.gmra.mrb[0].mxu0 %v2450
        %v2553 = vpop.f32.mrb[0].mxu0
        %v2554 = vadd.f32 0.0, %v2553
        %v2555 = vpop.f32.mrb[0].mxu0
        %v2556 = vpop.f32.mrb[0].mxu0
        %v2557 = vadd.f32 0.0, %v2556
        %v2558 = vpop.f32.mrb[0].mxu0
        %2559 = vmatprep.mubr.bf16.mxu0 0
        %2560 = vmatmul.mubr.bf16.gmra.mrb[0].mxu0 %v2451
        %v2561 = vpop.f32.mrb[0].mxu0
        %v2562 = vadd.f32 0.0, %v2561
        %v2563 = vpop.f32.mrb[0].mxu0
        %v2564 = vpop.f32.mrb[0].mxu0
        %v2565 = vadd.f32 0.0, %v2564
        %v2566 = vpop.f32.mrb[0].mxu0
        %2567 = vmatprep.mubr.bf16.mxu0 0
        %2568 = vmatmul.mubr.bf16.gmra.mrb[0].mxu0 %v2452
        %v2569 = vpop.f32.mrb[0].mxu0
        %v2570 = vadd.f32 0.0, %v2569
        %v2571 = vpop.f32.mrb[0].mxu0
        %v2572 = vpop.f32.mrb[0].mxu0
        %v2573 = vadd.f32 0.0, %v2572
        %v2574 = vpop.f32.mrb[0].mxu0
        %2575 = vmatprep.mubr.bf16.mxu0 0
        %2576 = vmatmul.mubr.bf16.gmra.mrb[0].mxu0 %v2453
        %v2577 = vpop.f32.mrb[0].mxu0
        %v2578 = vadd.f32 0.0, %v2577
        %v2579 = vpop.f32.mrb[0].mxu0
        %v2580 = vpop.f32.mrb[0].mxu0
        %v2581 = vadd.f32 0.0, %v2580
        %v2582 = vpop.f32.mrb[0].mxu0
        %2583 = vdwg.mxu0
        %v2584 = vadd.f32 %v2442, %v2554
        %v2585 = vadd.f32 %v2443, %v2557
        %v2586 = vadd.f32 %v2444, %v2562
        %v2587 = vadd.f32 %v2445, %v2565
        %v2588 = vadd.f32 %v2446, %v2570
        %v2589 = vadd.f32 %v2447, %v2573
        %v2590 = vadd.f32 %v2448, %v2578
        %v2591 = vadd.f32 %v2449, %v2581
        %2592 = vst [vmem:[#allocation2] sm:$0xff] %v2584
        %2593 = vst [vmem:[#allocation2 + $0x8] sm:$0xff] %v2585
        %2594 = vst [vmem:[#allocation2 + $0x10] sm:$0xff] %v2586
        %2595 = vst [vmem:[#allocation2 + $0x18] sm:$0xff] %v2587
        %2596 = vst [vmem:[#allocation2 + $0x20] sm:$0xff] %v2588
        %2597 = vst [vmem:[#allocation2 + $0x28] sm:$0xff] %v2589
        %2598 = vst [vmem:[#allocation2 + $0x30] sm:$0xff] %v2590
        %2599 = vst [vmem:[#allocation2 + $0x38] sm:$0xff] %v2591
        %v2600 = vld [vmem:[#allocation3 + $0x2] sm:$0xff]
        %v2601 = vld [vmem:[#allocation3 + $0x12] sm:$0xff]
        %v2602 = vld [vmem:[#allocation3 + $0x22] sm:$0xff]
        %v2603 = vld [vmem:[#allocation3 + $0x32] sm:$0xff]
        %v2604 = vld [vmem:[#allocation3 + $0x42] sm:$0xff]
        %v2605 = vld [vmem:[#allocation3 + $0x52] sm:$0xff]
        %v2606 = vld [vmem:[#allocation3 + $0x62] sm:$0xff]
        %v2607 = vld [vmem:[#allocation3 + $0x72] sm:$0xff]
        %v2608 = vld [vmem:[#allocation2] sm:$0xff]
        %v2609 = vld [vmem:[#allocation2 + $0x8] sm:$0xff]
        %v2610 = vld [vmem:[#allocation2 + $0x10] sm:$0xff]
        %v2611 = vld [vmem:[#allocation2 + $0x18] sm:$0xff]
        %v2612 = vld [vmem:[#allocation2 + $0x20] sm:$0xff]
        %v2613 = vld [vmem:[#allocation2 + $0x28] sm:$0xff]
        %v2614 = vld [vmem:[#allocation2 + $0x30] sm:$0xff]
        %v2615 = vld [vmem:[#allocation2 + $0x38] sm:$0xff]
        %v2616 = vpack.c.bf16 %v2601, %v2600
        %v2617 = vpack.c.bf16 %v2603, %v2602
        %v2618 = vpack.c.bf16 %v2605, %v2604
        %v2619 = vpack.c.bf16 %v2607, %v2606
        %s2620 = scalar_lea.vmem [#allocation4], 128
        %v2621 = vld [vmem:[%s2620] sm:$0xf]
        %v2622 = vld [vmem:[%s2620 + $0x4] sm:$0xf]
        %v2623 = vld [vmem:[%s2620 + $0x8] sm:$0xf]
        %v2624 = vld [vmem:[%s2620 + $0xc] sm:$0xf]
        %v2625 = vld [vmem:[%s2620 + $0x10] sm:$0xf]
        %v2626 = vld [vmem:[%s2620 + $0x14] sm:$0xf]
        %v2627 = vld [vmem:[%s2620 + $0x18] sm:$0xf]
        %v2628 = vld [vmem:[%s2620 + $0x1c] sm:$0xf]
        %v2629 = vld [vmem:[%s2620 + $0x20] sm:$0xf]
        %v2630 = vld [vmem:[%s2620 + $0x24] sm:$0xf]
        %v2631 = vld [vmem:[%s2620 + $0x28] sm:$0xf]
        %v2632 = vld [vmem:[%s2620 + $0x2c] sm:$0xf]
        %v2633 = vld [vmem:[%s2620 + $0x30] sm:$0xf]
        %v2634 = vld [vmem:[%s2620 + $0x34] sm:$0xf]
        %v2635 = vld [vmem:[%s2620 + $0x38] sm:$0xf]
        %v2636 = vld [vmem:[%s2620 + $0x3c] sm:$0xf]
        %v2653 = vunpack.c.l.b16 %v2621
        %v2654 = vunpack.c.l.b16 %v2622
        %v2655 = vunpack.c.l.b16 %v2623
        %v2656 = vunpack.c.l.b16 %v2624
        %v2657 = vunpack.c.l.b16 %v2625
        %v2658 = vunpack.c.l.b16 %v2626
        %v2659 = vunpack.c.l.b16 %v2627
        %v2660 = vunpack.c.l.b16 %v2628
        %v2661 = vunpack.c.l.b16 %v2629
        %v2662 = vunpack.c.l.b16 %v2630
        %v2663 = vunpack.c.l.b16 %v2631
        %v2664 = vunpack.c.l.b16 %v2632
        %v2665 = vunpack.c.l.b16 %v2633
        %v2666 = vunpack.c.l.b16 %v2634
        %v2667 = vunpack.c.l.b16 %v2635
        %v2668 = vunpack.c.l.b16 %v2636
        %v2669 = vpack.c.b16 %v2654, %v2653
        %v2670 = vpack.c.b16 %v2656, %v2655
        %v2671 = vpack.c.b16 %v2658, %v2657
        %v2672 = vpack.c.b16 %v2660, %v2659
        %v2673 = vpack.c.b16 %v2662, %v2661
        %v2674 = vpack.c.b16 %v2664, %v2663
        %v2675 = vpack.c.b16 %v2666, %v2665
        %v2676 = vpack.c.b16 %v2668, %v2667
        %2685 = vmatprep.subr.bf16.mxu0 0
        %2686 = vmatpush1.bf16.msra.mxu0 %v2669
        %2687 = vmatprep.subr.bf16.mxu0 0
        %2688 = vmatpush1.bf16.msra.mxu0 %v2670
        %2689 = vmatprep.subr.bf16.mxu0 0
        %2690 = vmatpush1.bf16.msra.mxu0 %v2671
        %2691 = vmatprep.subr.bf16.mxu0 0
        %2692 = vmatpush1.bf16.msra.mxu0 %v2672
        %2693 = vmatprep.subr.bf16.mxu0 0
        %2694 = vmatpush1.bf16.msra.mxu0 %v2673
        %2695 = vmatprep.subr.bf16.mxu0 0
        %2696 = vmatpush1.bf16.msra.mxu0 %v2674
        %2697 = vmatprep.subr.bf16.mxu0 0
        %2698 = vmatpush1.bf16.msra.mxu0 %v2675
        %2699 = vmatprep.subr.bf16.mxu0 0
        %2700 = vmatpush1.bf16.msra.mxu0 %v2676
        %2701 = vmatprep.subr.bf16.mxu0 0
        %2702 = vmatpush1.bf16.msra.mxu0 0
        %2703 = vmatprep.subr.bf16.mxu0 0
        %2704 = vmatpush1.bf16.msra.mxu0 0
        %2705 = vmatprep.subr.bf16.mxu0 0
        %2706 = vmatpush1.bf16.msra.mxu0 0
        %2707 = vmatprep.subr.bf16.mxu0 0
        %2708 = vmatpush1.bf16.msra.mxu0 0
        %2709 = vmatprep.subr.bf16.mxu0 0
        %2710 = vmatpush1.bf16.msra.mxu0 0
        %2711 = vmatprep.subr.bf16.mxu0 0
        %2712 = vmatpush1.bf16.msra.mxu0 0
        %2713 = vmatprep.subr.bf16.mxu0 0
        %2714 = vmatpush1.bf16.msra.mxu0 0
        %2715 = vmatprep.subr.bf16.mxu0 0
        %2716 = vmatpush1.bf16.msra.mxu0 0
        %2717 = vmatprep.mubr.bf16.mxu0 0
        %2718 = vmatmul.mubr.bf16.gmra.mrb[0].mxu0 %v2616
        %v2719 = vpop.f32.mrb[0].mxu0
        %v2720 = vadd.f32 0.0, %v2719
        %v2721 = vpop.f32.mrb[0].mxu0
        %v2722 = vpop.f32.mrb[0].mxu0
        %v2723 = vadd.f32 0.0, %v2722
        %v2724 = vpop.f32.mrb[0].mxu0
        %2725 = vmatprep.mubr.bf16.mxu0 0
        %2726 = vmatmul.mubr.bf16.gmra.mrb[0].mxu0 %v2617
        %v2727 = vpop.f32.mrb[0].mxu0
        %v2728 = vadd.f32 0.0, %v2727
        %v2729 = vpop.f32.mrb[0].mxu0
        %v2730 = vpop.f32.mrb[0].mxu0
        %v2731 = vadd.f32 0.0, %v2730
        %v2732 = vpop.f32.mrb[0].mxu0
        %2733 = vmatprep.mubr.bf16.mxu0 0
        %2734 = vmatmul.mubr.bf16.gmra.mrb[0].mxu0 %v2618
        %v2735 = vpop.f32.mrb[0].mxu0
        %v2736 = vadd.f32 0.0, %v2735
        %v2737 = vpop.f32.mrb[0].mxu0
        %v2738 = vpop.f32.mrb[0].mxu0
        %v2739 = vadd.f32 0.0, %v2738
        %v2740 = vpop.f32.mrb[0].mxu0
        %2741 = vmatprep.mubr.bf16.mxu0 0
        %2742 = vmatmul.mubr.bf16.gmra.mrb[0].mxu0 %v2619
        %v2743 = vpop.f32.mrb[0].mxu0
        %v2744 = vadd.f32 0.0, %v2743
        %v2745 = vpop.f32.mrb[0].mxu0
        %v2746 = vpop.f32.mrb[0].mxu0
        %v2747 = vadd.f32 0.0, %v2746
        %v2748 = vpop.f32.mrb[0].mxu0
        %2749 = vdwg.mxu0
        %v2750 = vadd.f32 %v2608, %v2720
        %v2751 = vadd.f32 %v2609, %v2723
        %v2752 = vadd.f32 %v2610, %v2728
        %v2753 = vadd.f32 %v2611, %v2731
        %v2754 = vadd.f32 %v2612, %v2736
        %v2755 = vadd.f32 %v2613, %v2739
        %v2756 = vadd.f32 %v2614, %v2744
        %v2757 = vadd.f32 %v2615, %v2747
        %2758 = vst [vmem:[#allocation2] sm:$0xff] %v2750
        %2759 = vst [vmem:[#allocation2 + $0x8] sm:$0xff] %v2751
        %2760 = vst [vmem:[#allocation2 + $0x10] sm:$0xff] %v2752
        %2761 = vst [vmem:[#allocation2 + $0x18] sm:$0xff] %v2753
        %2762 = vst [vmem:[#allocation2 + $0x20] sm:$0xff] %v2754
        %2763 = vst [vmem:[#allocation2 + $0x28] sm:$0xff] %v2755
        %2764 = vst [vmem:[#allocation2 + $0x30] sm:$0xff] %v2756
        %2765 = vst [vmem:[#allocation2 + $0x38] sm:$0xff] %v2757
        %v2766 = vld [vmem:[%s2096] sm:$0xff]
        %v2767 = vld [vmem:[%s2096 + $0x10] sm:$0xff]
        %v2768 = vld [vmem:[%s2096 + $0x20] sm:$0xff]
        %v2769 = vld [vmem:[%s2096 + $0x30] sm:$0xff]
        %v2770 = vld [vmem:[%s2096 + $0x40] sm:$0xff]
        %v2771 = vld [vmem:[%s2096 + $0x50] sm:$0xff]
        %v2772 = vld [vmem:[%s2096 + $0x60] sm:$0xff]
        %v2773 = vld [vmem:[%s2096 + $0x70] sm:$0xff]
        %v2774 = vld [vmem:[#allocation2] sm:$0xff]
        %v2775 = vld [vmem:[#allocation2 + $0x8] sm:$0xff]
        %v2776 = vld [vmem:[#allocation2 + $0x10] sm:$0xff]
        %v2777 = vld [vmem:[#allocation2 + $0x18] sm:$0xff]
        %v2778 = vld [vmem:[#allocation2 + $0x20] sm:$0xff]
        %v2779 = vld [vmem:[#allocation2 + $0x28] sm:$0xff]
        %v2780 = vld [vmem:[#allocation2 + $0x30] sm:$0xff]
        %v2781 = vld [vmem:[#allocation2 + $0x38] sm:$0xff]
        %v2782 = vpack.c.bf16 %v2767, %v2766
        %v2783 = vpack.c.bf16 %v2769, %v2768
        %v2784 = vpack.c.bf16 %v2771, %v2770
        %v2785 = vpack.c.bf16 %v2773, %v2772
        %s2786 = scalar_lea.vmem [#allocation4], 192
        %v2787 = vld [vmem:[%s2786] sm:$0xf]
        %v2788 = vld [vmem:[%s2786 + $0x4] sm:$0xf]
        %v2789 = vld [vmem:[%s2786 + $0x8] sm:$0xf]
        %v2790 = vld [vmem:[%s2786 + $0xc] sm:$0xf]
        %v2791 = vld [vmem:[%s2786 + $0x10] sm:$0xf]
        %v2792 = vld [vmem:[%s2786 + $0x14] sm:$0xf]
        %v2793 = vld [vmem:[%s2786 + $0x18] sm:$0xf]
        %v2794 = vld [vmem:[%s2786 + $0x1c] sm:$0xf]
        %v2795 = vld [vmem:[%s2786 + $0x20] sm:$0xf]
        %v2796 = vld [vmem:[%s2786 + $0x24] sm:$0xf]
        %v2797 = vld [vmem:[%s2786 + $0x28] sm:$0xf]
        %v2798 = vld [vmem:[%s2786 + $0x2c] sm:$0xf]
        %v2799 = vld [vmem:[%s2786 + $0x30] sm:$0xf]
        %v2800 = vld [vmem:[%s2786 + $0x34] sm:$0xf]
        %v2801 = vld [vmem:[%s2786 + $0x38] sm:$0xf]
        %v2802 = vld [vmem:[%s2786 + $0x3c] sm:$0xf]
        %v2819 = vunpack.c.l.b16 %v2787
        %v2820 = vunpack.c.l.b16 %v2788
        %v2821 = vunpack.c.l.b16 %v2789
        %v2822 = vunpack.c.l.b16 %v2790
        %v2823 = vunpack.c.l.b16 %v2791
        %v2824 = vunpack.c.l.b16 %v2792
        %v2825 = vunpack.c.l.b16 %v2793
        %v2826 = vunpack.c.l.b16 %v2794
        %v2827 = vunpack.c.l.b16 %v2795
        %v2828 = vunpack.c.l.b16 %v2796
        %v2829 = vunpack.c.l.b16 %v2797
        %v2830 = vunpack.c.l.b16 %v2798
        %v2831 = vunpack.c.l.b16 %v2799
        %v2832 = vunpack.c.l.b16 %v2800
        %v2833 = vunpack.c.l.b16 %v2801
        %v2834 = vunpack.c.l.b16 %v2802
        %v2835 = vpack.c.b16 %v2820, %v2819
        %v2836 = vpack.c.b16 %v2822, %v2821
        %v2837 = vpack.c.b16 %v2824, %v2823
        %v2838 = vpack.c.b16 %v2826, %v2825
        %v2839 = vpack.c.b16 %v2828, %v2827
        %v2840 = vpack.c.b16 %v2830, %v2829
        %v2841 = vpack.c.b16 %v2832, %v2831
        %v2842 = vpack.c.b16 %v2834, %v2833
        %2851 = vmatprep.subr.bf16.mxu0 0
        %2852 = vmatpush1.bf16.msra.mxu0 %v2835
        %2853 = vmatprep.subr.bf16.mxu0 0
        %2854 = vmatpush1.bf16.msra.mxu0 %v2836
        %2855 = vmatprep.subr.bf16.mxu0 0
        %2856 = vmatpush1.bf16.msra.mxu0 %v2837
        %2857 = vmatprep.subr.bf16.mxu0 0
        %2858 = vmatpush1.bf16.msra.mxu0 %v2838
        %2859 = vmatprep.subr.bf16.mxu0 0
        %2860 = vmatpush1.bf16.msra.mxu0 %v2839
        %2861 = vmatprep.subr.bf16.mxu0 0
        %2862 = vmatpush1.bf16.msra.mxu0 %v2840
        %2863 = vmatprep.subr.bf16.mxu0 0
        %2864 = vmatpush1.bf16.msra.mxu0 %v2841
        %2865 = vmatprep.subr.bf16.mxu0 0
        %2866 = vmatpush1.bf16.msra.mxu0 %v2842
        %2867 = vmatprep.subr.bf16.mxu0 0
        %2868 = vmatpush1.bf16.msra.mxu0 0
        %2869 = vmatprep.subr.bf16.mxu0 0
        %2870 = vmatpush1.bf16.msra.mxu0 0
        %2871 = vmatprep.subr.bf16.mxu0 0
        %2872 = vmatpush1.bf16.msra.mxu0 0
        %2873 = vmatprep.subr.bf16.mxu0 0
        %2874 = vmatpush1.bf16.msra.mxu0 0
        %2875 = vmatprep.subr.bf16.mxu0 0
        %2876 = vmatpush1.bf16.msra.mxu0 0
        %2877 = vmatprep.subr.bf16.mxu0 0
        %2878 = vmatpush1.bf16.msra.mxu0 0
        %2879 = vmatprep.subr.bf16.mxu0 0
        %2880 = vmatpush1.bf16.msra.mxu0 0
        %2881 = vmatprep.subr.bf16.mxu0 0
        %2882 = vmatpush1.bf16.msra.mxu0 0
        %2883 = vmatprep.mubr.bf16.mxu0 0
        %2884 = vmatmul.mubr.bf16.gmra.mrb[0].mxu0 %v2782
        %v2885 = vpop.f32.mrb[0].mxu0
        %v2886 = vadd.f32 0.0, %v2885
        %v2887 = vpop.f32.mrb[0].mxu0
        %v2888 = vpop.f32.mrb[0].mxu0
        %v2889 = vadd.f32 0.0, %v2888
        %v2890 = vpop.f32.mrb[0].mxu0
        %2891 = vmatprep.mubr.bf16.mxu0 0
        %2892 = vmatmul.mubr.bf16.gmra.mrb[0].mxu0 %v2783
        %v2893 = vpop.f32.mrb[0].mxu0
        %v2894 = vadd.f32 0.0, %v2893
        %v2895 = vpop.f32.mrb[0].mxu0
        %v2896 = vpop.f32.mrb[0].mxu0
        %v2897 = vadd.f32 0.0, %v2896
        %v2898 = vpop.f32.mrb[0].mxu0
        %2899 = vmatprep.mubr.bf16.mxu0 0
        %2900 = vmatmul.mubr.bf16.gmra.mrb[0].mxu0 %v2784
        %v2901 = vpop.f32.mrb[0].mxu0
        %v2902 = vadd.f32 0.0, %v2901
        %v2903 = vpop.f32.mrb[0].mxu0
        %v2904 = vpop.f32.mrb[0].mxu0
        %v2905 = vadd.f32 0.0, %v2904
        %v2906 = vpop.f32.mrb[0].mxu0
        %2907 = vmatprep.mubr.bf16.mxu0 0
        %2908 = vmatmul.mubr.bf16.gmra.mrb[0].mxu0 %v2785
        %v2909 = vpop.f32.mrb[0].mxu0
        %v2910 = vadd.f32 0.0, %v2909
        %v2911 = vpop.f32.mrb[0].mxu0
        %v2912 = vpop.f32.mrb[0].mxu0
        %v2913 = vadd.f32 0.0, %v2912
        %v2914 = vpop.f32.mrb[0].mxu0
        %2915 = vdwg.mxu0
        %v2916 = vadd.f32 %v2774, %v2886
        %v2917 = vadd.f32 %v2775, %v2889
        %v2918 = vadd.f32 %v2776, %v2894
        %v2919 = vadd.f32 %v2777, %v2897
        %v2920 = vadd.f32 %v2778, %v2902
        %v2921 = vadd.f32 %v2779, %v2905
        %v2922 = vadd.f32 %v2780, %v2910
        %v2923 = vadd.f32 %v2781, %v2913
        %2924 = vst [vmem:[#allocation2] sm:$0xff] %v2916
        %2925 = vst [vmem:[#allocation2 + $0x8] sm:$0xff] %v2917
        %2926 = vst [vmem:[#allocation2 + $0x10] sm:$0xff] %v2918
        %2927 = vst [vmem:[#allocation2 + $0x18] sm:$0xff] %v2919
        %2928 = vst [vmem:[#allocation2 + $0x20] sm:$0xff] %v2920
        %2929 = vst [vmem:[#allocation2 + $0x28] sm:$0xff] %v2921
        %2930 = vst [vmem:[#allocation2 + $0x30] sm:$0xff] %v2922
        %2931 = vst [vmem:[#allocation2 + $0x38] sm:$0xff] %v2923
        %v2932 = vld [vmem:[%s2096 + $0x1] sm:$0xff]
        %v2933 = vld [vmem:[%s2096 + $0x11] sm:$0xff]
        %v2934 = vld [vmem:[%s2096 + $0x21] sm:$0xff]
        %v2935 = vld [vmem:[%s2096 + $0x31] sm:$0xff]
        %v2936 = vld [vmem:[%s2096 + $0x41] sm:$0xff]
        %v2937 = vld [vmem:[%s2096 + $0x51] sm:$0xff]
        %v2938 = vld [vmem:[%s2096 + $0x61] sm:$0xff]
        %v2939 = vld [vmem:[%s2096 + $0x71] sm:$0xff]
        %v2940 = vld [vmem:[#allocation2] sm:$0xff]
        %v2941 = vld [vmem:[#allocation2 + $0x8] sm:$0xff]
        %v2942 = vld [vmem:[#allocation2 + $0x10] sm:$0xff]
        %v2943 = vld [vmem:[#allocation2 + $0x18] sm:$0xff]
        %v2944 = vld [vmem:[#allocation2 + $0x20] sm:$0xff]
        %v2945 = vld [vmem:[#allocation2 + $0x28] sm:$0xff]
        %v2946 = vld [vmem:[#allocation2 + $0x30] sm:$0xff]
        %v2947 = vld [vmem:[#allocation2 + $0x38] sm:$0xff]
        %v2948 = vpack.c.bf16 %v2933, %v2932
        %v2949 = vpack.c.bf16 %v2935, %v2934
        %v2950 = vpack.c.bf16 %v2937, %v2936
        %v2951 = vpack.c.bf16 %v2939, %v2938
        %s2952 = scalar_lea.vmem [#allocation4], 256
        %v2953 = vld [vmem:[%s2952] sm:$0xf]
        %v2954 = vld [vmem:[%s2952 + $0x4] sm:$0xf]
        %v2955 = vld [vmem:[%s2952 + $0x8] sm:$0xf]
        %v2956 = vld [vmem:[%s2952 + $0xc] sm:$0xf]
        %v2957 = vld [vmem:[%s2952 + $0x10] sm:$0xf]
        %v2958 = vld [vmem:[%s2952 + $0x14] sm:$0xf]
        %v2959 = vld [vmem:[%s2952 + $0x18] sm:$0xf]
        %v2960 = vld [vmem:[%s2952 + $0x1c] sm:$0xf]
        %v2961 = vld [vmem:[%s2952 + $0x20] sm:$0xf]
        %v2962 = vld [vmem:[%s2952 + $0x24] sm:$0xf]
        %v2963 = vld [vmem:[%s2952 + $0x28] sm:$0xf]
        %v2964 = vld [vmem:[%s2952 + $0x2c] sm:$0xf]
        %v2965 = vld [vmem:[%s2952 + $0x30] sm:$0xf]
        %v2966 = vld [vmem:[%s2952 + $0x34] sm:$0xf]
        %v2967 = vld [vmem:[%s2952 + $0x38] sm:$0xf]
        %v2968 = vld [vmem:[%s2952 + $0x3c] sm:$0xf]
        %v2985 = vunpack.c.l.b16 %v2953
        %v2986 = vunpack.c.l.b16 %v2954
        %v2987 = vunpack.c.l.b16 %v2955
        %v2988 = vunpack.c.l.b16 %v2956
        %v2989 = vunpack.c.l.b16 %v2957
        %v2990 = vunpack.c.l.b16 %v2958
        %v2991 = vunpack.c.l.b16 %v2959
        %v2992 = vunpack.c.l.b16 %v2960
        %v2993 = vunpack.c.l.b16 %v2961
        %v2994 = vunpack.c.l.b16 %v2962
        %v2995 = vunpack.c.l.b16 %v2963
        %v2996 = vunpack.c.l.b16 %v2964
        %v2997 = vunpack.c.l.b16 %v2965
        %v2998 = vunpack.c.l.b16 %v2966
        %v2999 = vunpack.c.l.b16 %v2967
        %v3000 = vunpack.c.l.b16 %v2968
        %v3001 = vpack.c.b16 %v2986, %v2985
        %v3002 = vpack.c.b16 %v2988, %v2987
        %v3003 = vpack.c.b16 %v2990, %v2989
        %v3004 = vpack.c.b16 %v2992, %v2991
        %v3005 = vpack.c.b16 %v2994, %v2993
        %v3006 = vpack.c.b16 %v2996, %v2995
        %v3007 = vpack.c.b16 %v2998, %v2997
        %v3008 = vpack.c.b16 %v3000, %v2999
        %3017 = vmatprep.subr.bf16.mxu0 0
        %3018 = vmatpush1.bf16.msra.mxu0 %v3001
        %3019 = vmatprep.subr.bf16.mxu0 0
        %3020 = vmatpush1.bf16.msra.mxu0 %v3002
        %3021 = vmatprep.subr.bf16.mxu0 0
        %3022 = vmatpush1.bf16.msra.mxu0 %v3003
        %3023 = vmatprep.subr.bf16.mxu0 0
        %3024 = vmatpush1.bf16.msra.mxu0 %v3004
        %3025 = vmatprep.subr.bf16.mxu0 0
        %3026 = vmatpush1.bf16.msra.mxu0 %v3005
        %3027 = vmatprep.subr.bf16.mxu0 0
        %3028 = vmatpush1.bf16.msra.mxu0 %v3006
        %3029 = vmatprep.subr.bf16.mxu0 0
        %3030 = vmatpush1.bf16.msra.mxu0 %v3007
        %3031 = vmatprep.subr.bf16.mxu0 0
        %3032 = vmatpush1.bf16.msra.mxu0 %v3008
        %3033 = vmatprep.subr.bf16.mxu0 0
        %3034 = vmatpush1.bf16.msra.mxu0 0
        %3035 = vmatprep.subr.bf16.mxu0 0
        %3036 = vmatpush1.bf16.msra.mxu0 0
        %3037 = vmatprep.subr.bf16.mxu0 0
        %3038 = vmatpush1.bf16.msra.mxu0 0
        %3039 = vmatprep.subr.bf16.mxu0 0
        %3040 = vmatpush1.bf16.msra.mxu0 0
        %3041 = vmatprep.subr.bf16.mxu0 0
        %3042 = vmatpush1.bf16.msra.mxu0 0
        %3043 = vmatprep.subr.bf16.mxu0 0
        %3044 = vmatpush1.bf16.msra.mxu0 0
        %3045 = vmatprep.subr.bf16.mxu0 0
        %3046 = vmatpush1.bf16.msra.mxu0 0
        %3047 = vmatprep.subr.bf16.mxu0 0
        %3048 = vmatpush1.bf16.msra.mxu0 0
        %3049 = vmatprep.mubr.bf16.mxu0 0
        %3050 = vmatmul.mubr.bf16.gmra.mrb[0].mxu0 %v2948
        %v3051 = vpop.f32.mrb[0].mxu0
        %v3052 = vadd.f32 0.0, %v3051
        %v3053 = vpop.f32.mrb[0].mxu0
        %v3054 = vpop.f32.mrb[0].mxu0
        %v3055 = vadd.f32 0.0, %v3054
        %v3056 = vpop.f32.mrb[0].mxu0
        %3057 = vmatprep.mubr.bf16.mxu0 0
        %3058 = vmatmul.mubr.bf16.gmra.mrb[0].mxu0 %v2949
        %v3059 = vpop.f32.mrb[0].mxu0
        %v3060 = vadd.f32 0.0, %v3059
        %v3061 = vpop.f32.mrb[0].mxu0
        %v3062 = vpop.f32.mrb[0].mxu0
        %v3063 = vadd.f32 0.0, %v3062
        %v3064 = vpop.f32.mrb[0].mxu0
        %3065 = vmatprep.mubr.bf16.mxu0 0
        %3066 = vmatmul.mubr.bf16.gmra.mrb[0].mxu0 %v2950
        %v3067 = vpop.f32.mrb[0].mxu0
        %v3068 = vadd.f32 0.0, %v3067
        %v3069 = vpop.f32.mrb[0].mxu0
        %v3070 = vpop.f32.mrb[0].mxu0
        %v3071 = vadd.f32 0.0, %v3070
        %v3072 = vpop.f32.mrb[0].mxu0
        %3073 = vmatprep.mubr.bf16.mxu0 0
        %3074 = vmatmul.mubr.bf16.gmra.mrb[0].mxu0 %v2951
        %v3075 = vpop.f32.mrb[0].mxu0
        %v3076 = vadd.f32 0.0, %v3075
        %v3077 = vpop.f32.mrb[0].mxu0
        %v3078 = vpop.f32.mrb[0].mxu0
        %v3079 = vadd.f32 0.0, %v3078
        %v3080 = vpop.f32.mrb[0].mxu0
        %3081 = vdwg.mxu0
        %v3082 = vadd.f32 %v2940, %v3052
        %v3083 = vadd.f32 %v2941, %v3055
        %v3084 = vadd.f32 %v2942, %v3060
        %v3085 = vadd.f32 %v2943, %v3063
        %v3086 = vadd.f32 %v2944, %v3068
        %v3087 = vadd.f32 %v2945, %v3071
        %v3088 = vadd.f32 %v2946, %v3076
        %v3089 = vadd.f32 %v2947, %v3079
        %3090 = vst [vmem:[#allocation2] sm:$0xff] %v3082
        %3091 = vst [vmem:[#allocation2 + $0x8] sm:$0xff] %v3083
        %3092 = vst [vmem:[#allocation2 + $0x10] sm:$0xff] %v3084
        %3093 = vst [vmem:[#allocation2 + $0x18] sm:$0xff] %v3085
        %3094 = vst [vmem:[#allocation2 + $0x20] sm:$0xff] %v3086
        %3095 = vst [vmem:[#allocation2 + $0x28] sm:$0xff] %v3087
        %3096 = vst [vmem:[#allocation2 + $0x30] sm:$0xff] %v3088
        %3097 = vst [vmem:[#allocation2 + $0x38] sm:$0xff] %v3089
        %v3098 = vld [vmem:[%s2096 + $0x2] sm:$0xff]
        %v3099 = vld [vmem:[%s2096 + $0x12] sm:$0xff]
        %v3100 = vld [vmem:[%s2096 + $0x22] sm:$0xff]
        %v3101 = vld [vmem:[%s2096 + $0x32] sm:$0xff]
        %v3102 = vld [vmem:[%s2096 + $0x42] sm:$0xff]
        %v3103 = vld [vmem:[%s2096 + $0x52] sm:$0xff]
        %v3104 = vld [vmem:[%s2096 + $0x62] sm:$0xff]
        %v3105 = vld [vmem:[%s2096 + $0x72] sm:$0xff]
        %v3106 = vld [vmem:[#allocation2] sm:$0xff]
        %v3107 = vld [vmem:[#allocation2 + $0x8] sm:$0xff]
        %v3108 = vld [vmem:[#allocation2 + $0x10] sm:$0xff]
        %v3109 = vld [vmem:[#allocation2 + $0x18] sm:$0xff]
        %v3110 = vld [vmem:[#allocation2 + $0x20] sm:$0xff]
        %v3111 = vld [vmem:[#allocation2 + $0x28] sm:$0xff]
        %v3112 = vld [vmem:[#allocation2 + $0x30] sm:$0xff]
        %v3113 = vld [vmem:[#allocation2 + $0x38] sm:$0xff]
        %v3114 = vpack.c.bf16 %v3099, %v3098
        %v3115 = vpack.c.bf16 %v3101, %v3100
        %v3116 = vpack.c.bf16 %v3103, %v3102
        %v3117 = vpack.c.bf16 %v3105, %v3104
        %s3118 = scalar_lea.vmem [#allocation4], 320
        %v3119 = vld [vmem:[%s3118] sm:$0xf]
        %v3120 = vld [vmem:[%s3118 + $0x4] sm:$0xf]
        %v3121 = vld [vmem:[%s3118 + $0x8] sm:$0xf]
        %v3122 = vld [vmem:[%s3118 + $0xc] sm:$0xf]
        %v3123 = vld [vmem:[%s3118 + $0x10] sm:$0xf]
        %v3124 = vld [vmem:[%s3118 + $0x14] sm:$0xf]
        %v3125 = vld [vmem:[%s3118 + $0x18] sm:$0xf]
        %v3126 = vld [vmem:[%s3118 + $0x1c] sm:$0xf]
        %v3127 = vld [vmem:[%s3118 + $0x20] sm:$0xf]
        %v3128 = vld [vmem:[%s3118 + $0x24] sm:$0xf]
        %v3129 = vld [vmem:[%s3118 + $0x28] sm:$0xf]
        %v3130 = vld [vmem:[%s3118 + $0x2c] sm:$0xf]
        %v3131 = vld [vmem:[%s3118 + $0x30] sm:$0xf]
        %v3132 = vld [vmem:[%s3118 + $0x34] sm:$0xf]
        %v3133 = vld [vmem:[%s3118 + $0x38] sm:$0xf]
        %v3134 = vld [vmem:[%s3118 + $0x3c] sm:$0xf]
        %v3151 = vunpack.c.l.b16 %v3119
        %v3152 = vunpack.c.l.b16 %v3120
        %v3153 = vunpack.c.l.b16 %v3121
        %v3154 = vunpack.c.l.b16 %v3122
        %v3155 = vunpack.c.l.b16 %v3123
        %v3156 = vunpack.c.l.b16 %v3124
        %v3157 = vunpack.c.l.b16 %v3125
        %v3158 = vunpack.c.l.b16 %v3126
        %v3159 = vunpack.c.l.b16 %v3127
        %v3160 = vunpack.c.l.b16 %v3128
        %v3161 = vunpack.c.l.b16 %v3129
        %v3162 = vunpack.c.l.b16 %v3130
        %v3163 = vunpack.c.l.b16 %v3131
        %v3164 = vunpack.c.l.b16 %v3132
        %v3165 = vunpack.c.l.b16 %v3133
        %v3166 = vunpack.c.l.b16 %v3134
        %v3167 = vpack.c.b16 %v3152, %v3151
        %v3168 = vpack.c.b16 %v3154, %v3153
        %v3169 = vpack.c.b16 %v3156, %v3155
        %v3170 = vpack.c.b16 %v3158, %v3157
        %v3171 = vpack.c.b16 %v3160, %v3159
        %v3172 = vpack.c.b16 %v3162, %v3161
        %v3173 = vpack.c.b16 %v3164, %v3163
        %v3174 = vpack.c.b16 %v3166, %v3165
        %3183 = vmatprep.subr.bf16.mxu0 0
        %3184 = vmatpush1.bf16.msra.mxu0 %v3167
        %3185 = vmatprep.subr.bf16.mxu0 0
        %3186 = vmatpush1.bf16.msra.mxu0 %v3168
        %3187 = vmatprep.subr.bf16.mxu0 0
        %3188 = vmatpush1.bf16.msra.mxu0 %v3169
        %3189 = vmatprep.subr.bf16.mxu0 0
        %3190 = vmatpush1.bf16.msra.mxu0 %v3170
        %3191 = vmatprep.subr.bf16.mxu0 0
        %3192 = vmatpush1.bf16.msra.mxu0 %v3171
        %3193 = vmatprep.subr.bf16.mxu0 0
        %3194 = vmatpush1.bf16.msra.mxu0 %v3172
        %3195 = vmatprep.subr.bf16.mxu0 0
        %3196 = vmatpush1.bf16.msra.mxu0 %v3173
        %3197 = vmatprep.subr.bf16.mxu0 0
        %3198 = vmatpush1.bf16.msra.mxu0 %v3174
        %3199 = vmatprep.subr.bf16.mxu0 0
        %3200 = vmatpush1.bf16.msra.mxu0 0
        %3201 = vmatprep.subr.bf16.mxu0 0
        %3202 = vmatpush1.bf16.msra.mxu0 0
        %3203 = vmatprep.subr.bf16.mxu0 0
        %3204 = vmatpush1.bf16.msra.mxu0 0
        %3205 = vmatprep.subr.bf16.mxu0 0
        %3206 = vmatpush1.bf16.msra.mxu0 0
        %3207 = vmatprep.subr.bf16.mxu0 0
        %3208 = vmatpush1.bf16.msra.mxu0 0
        %3209 = vmatprep.subr.bf16.mxu0 0
        %3210 = vmatpush1.bf16.msra.mxu0 0
        %3211 = vmatprep.subr.bf16.mxu0 0
        %3212 = vmatpush1.bf16.msra.mxu0 0
        %3213 = vmatprep.subr.bf16.mxu0 0
        %3214 = vmatpush1.bf16.msra.mxu0 0
        %3215 = vmatprep.mubr.bf16.mxu0 0
        %3216 = vmatmul.mubr.bf16.gmra.mrb[0].mxu0 %v3114
        %v3217 = vpop.f32.mrb[0].mxu0
        %v3218 = vadd.f32 0.0, %v3217
        %v3219 = vpop.f32.mrb[0].mxu0
        %v3220 = vpop.f32.mrb[0].mxu0
        %v3221 = vadd.f32 0.0, %v3220
        %v3222 = vpop.f32.mrb[0].mxu0
        %3223 = vmatprep.mubr.bf16.mxu0 0
        %3224 = vmatmul.mubr.bf16.gmra.mrb[0].mxu0 %v3115
        %v3225 = vpop.f32.mrb[0].mxu0
        %v3226 = vadd.f32 0.0, %v3225
        %v3227 = vpop.f32.mrb[0].mxu0
        %v3228 = vpop.f32.mrb[0].mxu0
        %v3229 = vadd.f32 0.0, %v3228
        %v3230 = vpop.f32.mrb[0].mxu0
        %3231 = vmatprep.mubr.bf16.mxu0 0
        %3232 = vmatmul.mubr.bf16.gmra.mrb[0].mxu0 %v3116
        %v3233 = vpop.f32.mrb[0].mxu0
        %v3234 = vadd.f32 0.0, %v3233
        %v3235 = vpop.f32.mrb[0].mxu0
        %v3236 = vpop.f32.mrb[0].mxu0
        %v3237 = vadd.f32 0.0, %v3236
        %v3238 = vpop.f32.mrb[0].mxu0
        %3239 = vmatprep.mubr.bf16.mxu0 0
        %3240 = vmatmul.mubr.bf16.gmra.mrb[0].mxu0 %v3117
        %v3241 = vpop.f32.mrb[0].mxu0
        %v3242 = vadd.f32 0.0, %v3241
        %v3243 = vpop.f32.mrb[0].mxu0
        %v3244 = vpop.f32.mrb[0].mxu0
        %v3245 = vadd.f32 0.0, %v3244
        %v3246 = vpop.f32.mrb[0].mxu0
        %3247 = vdwg.mxu0
        %v3248 = vadd.f32 %v3106, %v3218
        %v3249 = vadd.f32 %v3107, %v3221
        %v3250 = vadd.f32 %v3108, %v3226
        %v3251 = vadd.f32 %v3109, %v3229
        %v3252 = vadd.f32 %v3110, %v3234
        %v3253 = vadd.f32 %v3111, %v3237
        %v3254 = vadd.f32 %v3112, %v3242
        %v3255 = vadd.f32 %v3113, %v3245
        %3256 = vst [vmem:[#allocation2] sm:$0xff] %v3248
        %3257 = vst [vmem:[#allocation2 + $0x8] sm:$0xff] %v3249
        %3258 = vst [vmem:[#allocation2 + $0x10] sm:$0xff] %v3250
        %3259 = vst [vmem:[#allocation2 + $0x18] sm:$0xff] %v3251
        %3260 = vst [vmem:[#allocation2 + $0x20] sm:$0xff] %v3252
        %3261 = vst [vmem:[#allocation2 + $0x28] sm:$0xff] %v3253
        %3262 = vst [vmem:[#allocation2 + $0x30] sm:$0xff] %v3254
        %3263 = vst [vmem:[#allocation2 + $0x38] sm:$0xff] %v3255
        %s3264 = scalar_lea.vmem [#allocation3], 32
        %v3265 = vld [vmem:[%s3264] sm:$0xff]
        %v3266 = vld [vmem:[%s3264 + $0x10] sm:$0xff]
        %v3267 = vld [vmem:[%s3264 + $0x20] sm:$0xff]
        %v3268 = vld [vmem:[%s3264 + $0x30] sm:$0xff]
        %v3269 = vld [vmem:[%s3264 + $0x40] sm:$0xff]
        %v3270 = vld [vmem:[%s3264 + $0x50] sm:$0xff]
        %v3271 = vld [vmem:[%s3264 + $0x60] sm:$0xff]
        %v3272 = vld [vmem:[%s3264 + $0x70] sm:$0xff]
        %v3273 = vld [vmem:[#allocation2] sm:$0xff]
        %v3274 = vld [vmem:[#allocation2 + $0x8] sm:$0xff]
        %v3275 = vld [vmem:[#allocation2 + $0x10] sm:$0xff]
        %v3276 = vld [vmem:[#allocation2 + $0x18] sm:$0xff]
        %v3277 = vld [vmem:[#allocation2 + $0x20] sm:$0xff]
        %v3278 = vld [vmem:[#allocation2 + $0x28] sm:$0xff]
        %v3279 = vld [vmem:[#allocation2 + $0x30] sm:$0xff]
        %v3280 = vld [vmem:[#allocation2 + $0x38] sm:$0xff]
        %v3281 = vpack.c.bf16 %v3266, %v3265
        %v3282 = vpack.c.bf16 %v3268, %v3267
        %v3283 = vpack.c.bf16 %v3270, %v3269
        %v3284 = vpack.c.bf16 %v3272, %v3271
        %s3285 = scalar_lea.vmem [#allocation4], 384
        %v3286 = vld [vmem:[%s3285] sm:$0xf]
        %v3287 = vld [vmem:[%s3285 + $0x4] sm:$0xf]
        %v3288 = vld [vmem:[%s3285 + $0x8] sm:$0xf]
        %v3289 = vld [vmem:[%s3285 + $0xc] sm:$0xf]
        %v3290 = vld [vmem:[%s3285 + $0x10] sm:$0xf]
        %v3291 = vld [vmem:[%s3285 + $0x14] sm:$0xf]
        %v3292 = vld [vmem:[%s3285 + $0x18] sm:$0xf]
        %v3293 = vld [vmem:[%s3285 + $0x1c] sm:$0xf]
        %v3294 = vld [vmem:[%s3285 + $0x20] sm:$0xf]
        %v3295 = vld [vmem:[%s3285 + $0x24] sm:$0xf]
        %v3296 = vld [vmem:[%s3285 + $0x28] sm:$0xf]
        %v3297 = vld [vmem:[%s3285 + $0x2c] sm:$0xf]
        %v3298 = vld [vmem:[%s3285 + $0x30] sm:$0xf]
        %v3299 = vld [vmem:[%s3285 + $0x34] sm:$0xf]
        %v3300 = vld [vmem:[%s3285 + $0x38] sm:$0xf]
        %v3301 = vld [vmem:[%s3285 + $0x3c] sm:$0xf]
        %v3318 = vunpack.c.l.b16 %v3286
        %v3319 = vunpack.c.l.b16 %v3287
        %v3320 = vunpack.c.l.b16 %v3288
        %v3321 = vunpack.c.l.b16 %v3289
        %v3322 = vunpack.c.l.b16 %v3290
        %v3323 = vunpack.c.l.b16 %v3291
        %v3324 = vunpack.c.l.b16 %v3292
        %v3325 = vunpack.c.l.b16 %v3293
        %v3326 = vunpack.c.l.b16 %v3294
        %v3327 = vunpack.c.l.b16 %v3295
        %v3328 = vunpack.c.l.b16 %v3296
        %v3329 = vunpack.c.l.b16 %v3297
        %v3330 = vunpack.c.l.b16 %v3298
        %v3331 = vunpack.c.l.b16 %v3299
        %v3332 = vunpack.c.l.b16 %v3300
        %v3333 = vunpack.c.l.b16 %v3301
        %v3334 = vpack.c.b16 %v3319, %v3318
        %v3335 = vpack.c.b16 %v3321, %v3320
        %v3336 = vpack.c.b16 %v3323, %v3322
        %v3337 = vpack.c.b16 %v3325, %v3324
        %v3338 = vpack.c.b16 %v3327, %v3326
        %v3339 = vpack.c.b16 %v3329, %v3328
        %v3340 = vpack.c.b16 %v3331, %v3330
        %v3341 = vpack.c.b16 %v3333, %v3332
        %3350 = vmatprep.subr.bf16.mxu0 0
        %3351 = vmatpush1.bf16.msra.mxu0 %v3334
        %3352 = vmatprep.subr.bf16.mxu0 0
        %3353 = vmatpush1.bf16.msra.mxu0 %v3335
        %3354 = vmatprep.subr.bf16.mxu0 0
        %3355 = vmatpush1.bf16.msra.mxu0 %v3336
        %3356 = vmatprep.subr.bf16.mxu0 0
        %3357 = vmatpush1.bf16.msra.mxu0 %v3337
        %3358 = vmatprep.subr.bf16.mxu0 0
        %3359 = vmatpush1.bf16.msra.mxu0 %v3338
        %3360 = vmatprep.subr.bf16.mxu0 0
        %3361 = vmatpush1.bf16.msra.mxu0 %v3339
        %3362 = vmatprep.subr.bf16.mxu0 0
        %3363 = vmatpush1.bf16.msra.mxu0 %v3340
        %3364 = vmatprep.subr.bf16.mxu0 0
        %3365 = vmatpush1.bf16.msra.mxu0 %v3341
        %3366 = vmatprep.subr.bf16.mxu0 0
        %3367 = vmatpush1.bf16.msra.mxu0 0
        %3368 = vmatprep.subr.bf16.mxu0 0
        %3369 = vmatpush1.bf16.msra.mxu0 0
        %3370 = vmatprep.subr.bf16.mxu0 0
        %3371 = vmatpush1.bf16.msra.mxu0 0
        %3372 = vmatprep.subr.bf16.mxu0 0
        %3373 = vmatpush1.bf16.msra.mxu0 0
        %3374 = vmatprep.subr.bf16.mxu0 0
        %3375 = vmatpush1.bf16.msra.mxu0 0
        %3376 = vmatprep.subr.bf16.mxu0 0
        %3377 = vmatpush1.bf16.msra.mxu0 0
        %3378 = vmatprep.subr.bf16.mxu0 0
        %3379 = vmatpush1.bf16.msra.mxu0 0
        %3380 = vmatprep.subr.bf16.mxu0 0
        %3381 = vmatpush1.bf16.msra.mxu0 0
        %3382 = vmatprep.mubr.bf16.mxu0 0
        %3383 = vmatmul.mubr.bf16.gmra.mrb[0].mxu0 %v3281
        %v3384 = vpop.f32.mrb[0].mxu0
        %v3385 = vadd.f32 0.0, %v3384
        %v3386 = vpop.f32.mrb[0].mxu0
        %v3387 = vpop.f32.mrb[0].mxu0
        %v3388 = vadd.f32 0.0, %v3387
        %v3389 = vpop.f32.mrb[0].mxu0
        %3390 = vmatprep.mubr.bf16.mxu0 0
        %3391 = vmatmul.mubr.bf16.gmra.mrb[0].mxu0 %v3282
        %v3392 = vpop.f32.mrb[0].mxu0
        %v3393 = vadd.f32 0.0, %v3392
        %v3394 = vpop.f32.mrb[0].mxu0
        %v3395 = vpop.f32.mrb[0].mxu0
        %v3396 = vadd.f32 0.0, %v3395
        %v3397 = vpop.f32.mrb[0].mxu0
        %3398 = vmatprep.mubr.bf16.mxu0 0
        %3399 = vmatmul.mubr.bf16.gmra.mrb[0].mxu0 %v3283
        %v3400 = vpop.f32.mrb[0].mxu0
        %v3401 = vadd.f32 0.0, %v3400
        %v3402 = vpop.f32.mrb[0].mxu0
        %v3403 = vpop.f32.mrb[0].mxu0
        %v3404 = vadd.f32 0.0, %v3403
        %v3405 = vpop.f32.mrb[0].mxu0
        %3406 = vmatprep.mubr.bf16.mxu0 0
        %3407 = vmatmul.mubr.bf16.gmra.mrb[0].mxu0 %v3284
        %v3408 = vpop.f32.mrb[0].mxu0
        %v3409 = vadd.f32 0.0, %v3408
        %v3410 = vpop.f32.mrb[0].mxu0
        %v3411 = vpop.f32.mrb[0].mxu0
        %v3412 = vadd.f32 0.0, %v3411
        %v3413 = vpop.f32.mrb[0].mxu0
        %3414 = vdwg.mxu0
        %v3415 = vadd.f32 %v3273, %v3385
        %v3416 = vadd.f32 %v3274, %v3388
        %v3417 = vadd.f32 %v3275, %v3393
        %v3418 = vadd.f32 %v3276, %v3396
        %v3419 = vadd.f32 %v3277, %v3401
        %v3420 = vadd.f32 %v3278, %v3404
        %v3421 = vadd.f32 %v3279, %v3409
        %v3422 = vadd.f32 %v3280, %v3412
        %3423 = vst [vmem:[#allocation2] sm:$0xff] %v3415
        %3424 = vst [vmem:[#allocation2 + $0x8] sm:$0xff] %v3416
        %3425 = vst [vmem:[#allocation2 + $0x10] sm:$0xff] %v3417
        %3426 = vst [vmem:[#allocation2 + $0x18] sm:$0xff] %v3418
        %3427 = vst [vmem:[#allocation2 + $0x20] sm:$0xff] %v3419
        %3428 = vst [vmem:[#allocation2 + $0x28] sm:$0xff] %v3420
        %3429 = vst [vmem:[#allocation2 + $0x30] sm:$0xff] %v3421
        %3430 = vst [vmem:[#allocation2 + $0x38] sm:$0xff] %v3422
        %v3431 = vld [vmem:[%s3264 + $0x1] sm:$0xff]
        %v3432 = vld [vmem:[%s3264 + $0x11] sm:$0xff]
        %v3433 = vld [vmem:[%s3264 + $0x21] sm:$0xff]
        %v3434 = vld [vmem:[%s3264 + $0x31] sm:$0xff]
        %v3435 = vld [vmem:[%s3264 + $0x41] sm:$0xff]
        %v3436 = vld [vmem:[%s3264 + $0x51] sm:$0xff]
        %v3437 = vld [vmem:[%s3264 + $0x61] sm:$0xff]
        %v3438 = vld [vmem:[%s3264 + $0x71] sm:$0xff]
        %v3439 = vld [vmem:[#allocation2] sm:$0xff]
        %v3440 = vld [vmem:[#allocation2 + $0x8] sm:$0xff]
        %v3441 = vld [vmem:[#allocation2 + $0x10] sm:$0xff]
        %v3442 = vld [vmem:[#allocation2 + $0x18] sm:$0xff]
        %v3443 = vld [vmem:[#allocation2 + $0x20] sm:$0xff]
        %v3444 = vld [vmem:[#allocation2 + $0x28] sm:$0xff]
        %v3445 = vld [vmem:[#allocation2 + $0x30] sm:$0xff]
        %v3446 = vld [vmem:[#allocation2 + $0x38] sm:$0xff]
        %v3447 = vpack.c.bf16 %v3432, %v3431
        %v3448 = vpack.c.bf16 %v3434, %v3433
        %v3449 = vpack.c.bf16 %v3436, %v3435
        %v3450 = vpack.c.bf16 %v3438, %v3437
        %s3451 = scalar_lea.vmem [#allocation4], 448
        %v3452 = vld [vmem:[%s3451] sm:$0xf]
        %v3453 = vld [vmem:[%s3451 + $0x4] sm:$0xf]
        %v3454 = vld [vmem:[%s3451 + $0x8] sm:$0xf]
        %v3455 = vld [vmem:[%s3451 + $0xc] sm:$0xf]
        %v3456 = vld [vmem:[%s3451 + $0x10] sm:$0xf]
        %v3457 = vld [vmem:[%s3451 + $0x14] sm:$0xf]
        %v3458 = vld [vmem:[%s3451 + $0x18] sm:$0xf]
        %v3459 = vld [vmem:[%s3451 + $0x1c] sm:$0xf]
        %v3460 = vld [vmem:[%s3451 + $0x20] sm:$0xf]
        %v3461 = vld [vmem:[%s3451 + $0x24] sm:$0xf]
        %v3462 = vld [vmem:[%s3451 + $0x28] sm:$0xf]
        %v3463 = vld [vmem:[%s3451 + $0x2c] sm:$0xf]
        %v3464 = vld [vmem:[%s3451 + $0x30] sm:$0xf]
        %v3465 = vld [vmem:[%s3451 + $0x34] sm:$0xf]
        %v3466 = vld [vmem:[%s3451 + $0x38] sm:$0xf]
        %v3467 = vld [vmem:[%s3451 + $0x3c] sm:$0xf]
        %v3484 = vunpack.c.l.b16 %v3452
        %v3485 = vunpack.c.l.b16 %v3453
        %v3486 = vunpack.c.l.b16 %v3454
        %v3487 = vunpack.c.l.b16 %v3455
        %v3488 = vunpack.c.l.b16 %v3456
        %v3489 = vunpack.c.l.b16 %v3457
        %v3490 = vunpack.c.l.b16 %v3458
        %v3491 = vunpack.c.l.b16 %v3459
        %v3492 = vunpack.c.l.b16 %v3460
        %v3493 = vunpack.c.l.b16 %v3461
        %v3494 = vunpack.c.l.b16 %v3462
        %v3495 = vunpack.c.l.b16 %v3463
        %v3496 = vunpack.c.l.b16 %v3464
        %v3497 = vunpack.c.l.b16 %v3465
        %v3498 = vunpack.c.l.b16 %v3466
        %v3499 = vunpack.c.l.b16 %v3467
        %v3500 = vpack.c.b16 %v3485, %v3484
        %v3501 = vpack.c.b16 %v3487, %v3486
        %v3502 = vpack.c.b16 %v3489, %v3488
        %v3503 = vpack.c.b16 %v3491, %v3490
        %v3504 = vpack.c.b16 %v3493, %v3492
        %v3505 = vpack.c.b16 %v3495, %v3494
        %v3506 = vpack.c.b16 %v3497, %v3496
        %v3507 = vpack.c.b16 %v3499, %v3498
        %3516 = vmatprep.subr.bf16.mxu0 0
        %3517 = vmatpush1.bf16.msra.mxu0 %v3500
        %3518 = vmatprep.subr.bf16.mxu0 0
        %3519 = vmatpush1.bf16.msra.mxu0 %v3501
        %3520 = vmatprep.subr.bf16.mxu0 0
        %3521 = vmatpush1.bf16.msra.mxu0 %v3502
        %3522 = vmatprep.subr.bf16.mxu0 0
        %3523 = vmatpush1.bf16.msra.mxu0 %v3503
        %3524 = vmatprep.subr.bf16.mxu0 0
        %3525 = vmatpush1.bf16.msra.mxu0 %v3504
        %3526 = vmatprep.subr.bf16.mxu0 0
        %3527 = vmatpush1.bf16.msra.mxu0 %v3505
        %3528 = vmatprep.subr.bf16.mxu0 0
        %3529 = vmatpush1.bf16.msra.mxu0 %v3506
        %3530 = vmatprep.subr.bf16.mxu0 0
        %3531 = vmatpush1.bf16.msra.mxu0 %v3507
        %3532 = vmatprep.subr.bf16.mxu0 0
        %3533 = vmatpush1.bf16.msra.mxu0 0
        %3534 = vmatprep.subr.bf16.mxu0 0
        %3535 = vmatpush1.bf16.msra.mxu0 0
        %3536 = vmatprep.subr.bf16.mxu0 0
        %3537 = vmatpush1.bf16.msra.mxu0 0
        %3538 = vmatprep.subr.bf16.mxu0 0
        %3539 = vmatpush1.bf16.msra.mxu0 0
        %3540 = vmatprep.subr.bf16.mxu0 0
        %3541 = vmatpush1.bf16.msra.mxu0 0
        %3542 = vmatprep.subr.bf16.mxu0 0
        %3543 = vmatpush1.bf16.msra.mxu0 0
        %3544 = vmatprep.subr.bf16.mxu0 0
        %3545 = vmatpush1.bf16.msra.mxu0 0
        %3546 = vmatprep.subr.bf16.mxu0 0
        %3547 = vmatpush1.bf16.msra.mxu0 0
        %3548 = vmatprep.mubr.bf16.mxu0 0
        %3549 = vmatmul.mubr.bf16.gmra.mrb[0].mxu0 %v3447
        %v3550 = vpop.f32.mrb[0].mxu0
        %v3551 = vadd.f32 0.0, %v3550
        %v3552 = vpop.f32.mrb[0].mxu0
        %v3553 = vpop.f32.mrb[0].mxu0
        %v3554 = vadd.f32 0.0, %v3553
        %v3555 = vpop.f32.mrb[0].mxu0
        %3556 = vmatprep.mubr.bf16.mxu0 0
        %3557 = vmatmul.mubr.bf16.gmra.mrb[0].mxu0 %v3448
        %v3558 = vpop.f32.mrb[0].mxu0
        %v3559 = vadd.f32 0.0, %v3558
        %v3560 = vpop.f32.mrb[0].mxu0
        %v3561 = vpop.f32.mrb[0].mxu0
        %v3562 = vadd.f32 0.0, %v3561
        %v3563 = vpop.f32.mrb[0].mxu0
        %3564 = vmatprep.mubr.bf16.mxu0 0
        %3565 = vmatmul.mubr.bf16.gmra.mrb[0].mxu0 %v3449
        %v3566 = vpop.f32.mrb[0].mxu0
        %v3567 = vadd.f32 0.0, %v3566
        %v3568 = vpop.f32.mrb[0].mxu0
        %v3569 = vpop.f32.mrb[0].mxu0
        %v3570 = vadd.f32 0.0, %v3569
        %v3571 = vpop.f32.mrb[0].mxu0
        %3572 = vmatprep.mubr.bf16.mxu0 0
        %3573 = vmatmul.mubr.bf16.gmra.mrb[0].mxu0 %v3450
        %v3574 = vpop.f32.mrb[0].mxu0
        %v3575 = vadd.f32 0.0, %v3574
        %v3576 = vpop.f32.mrb[0].mxu0
        %v3577 = vpop.f32.mrb[0].mxu0
        %v3578 = vadd.f32 0.0, %v3577
        %v3579 = vpop.f32.mrb[0].mxu0
        %3580 = vdwg.mxu0
        %v3581 = vadd.f32 %v3439, %v3551
        %v3582 = vadd.f32 %v3440, %v3554
        %v3583 = vadd.f32 %v3441, %v3559
        %v3584 = vadd.f32 %v3442, %v3562
        %v3585 = vadd.f32 %v3443, %v3567
        %v3586 = vadd.f32 %v3444, %v3570
        %v3587 = vadd.f32 %v3445, %v3575
        %v3588 = vadd.f32 %v3446, %v3578
        %3589 = vst [vmem:[#allocation2] sm:$0xff] %v3581
        %3590 = vst [vmem:[#allocation2 + $0x8] sm:$0xff] %v3582
        %3591 = vst [vmem:[#allocation2 + $0x10] sm:$0xff] %v3583
        %3592 = vst [vmem:[#allocation2 + $0x18] sm:$0xff] %v3584
        %3593 = vst [vmem:[#allocation2 + $0x20] sm:$0xff] %v3585
        %3594 = vst [vmem:[#allocation2 + $0x28] sm:$0xff] %v3586
        %3595 = vst [vmem:[#allocation2 + $0x30] sm:$0xff] %v3587
        %3596 = vst [vmem:[#allocation2 + $0x38] sm:$0xff] %v3588
        %v3597 = vld [vmem:[%s3264 + $0x2] sm:$0xff]
        %v3598 = vld [vmem:[%s3264 + $0x12] sm:$0xff]
        %v3599 = vld [vmem:[%s3264 + $0x22] sm:$0xff]
        %v3600 = vld [vmem:[%s3264 + $0x32] sm:$0xff]
        %v3601 = vld [vmem:[%s3264 + $0x42] sm:$0xff]
        %v3602 = vld [vmem:[%s3264 + $0x52] sm:$0xff]
        %v3603 = vld [vmem:[%s3264 + $0x62] sm:$0xff]
        %v3604 = vld [vmem:[%s3264 + $0x72] sm:$0xff]
        %v3605 = vld [vmem:[#allocation2] sm:$0xff]
        %v3606 = vld [vmem:[#allocation2 + $0x8] sm:$0xff]
        %v3607 = vld [vmem:[#allocation2 + $0x10] sm:$0xff]
        %v3608 = vld [vmem:[#allocation2 + $0x18] sm:$0xff]
        %v3609 = vld [vmem:[#allocation2 + $0x20] sm:$0xff]
        %v3610 = vld [vmem:[#allocation2 + $0x28] sm:$0xff]
        %v3611 = vld [vmem:[#allocation2 + $0x30] sm:$0xff]
        %v3612 = vld [vmem:[#allocation2 + $0x38] sm:$0xff]
        %v3613 = vpack.c.bf16 %v3598, %v3597
        %v3614 = vpack.c.bf16 %v3600, %v3599
        %v3615 = vpack.c.bf16 %v3602, %v3601
        %v3616 = vpack.c.bf16 %v3604, %v3603
        %s3617 = scalar_lea.vmem [#allocation4], 512
        %v3618 = vld [vmem:[%s3617] sm:$0xf]
        %v3619 = vld [vmem:[%s3617 + $0x4] sm:$0xf]
        %v3620 = vld [vmem:[%s3617 + $0x8] sm:$0xf]
        %v3621 = vld [vmem:[%s3617 + $0xc] sm:$0xf]
        %v3622 = vld [vmem:[%s3617 + $0x10] sm:$0xf]
        %v3623 = vld [vmem:[%s3617 + $0x14] sm:$0xf]
        %v3624 = vld [vmem:[%s3617 + $0x18] sm:$0xf]
        %v3625 = vld [vmem:[%s3617 + $0x1c] sm:$0xf]
        %v3626 = vld [vmem:[%s3617 + $0x20] sm:$0xf]
        %v3627 = vld [vmem:[%s3617 + $0x24] sm:$0xf]
        %v3628 = vld [vmem:[%s3617 + $0x28] sm:$0xf]
        %v3629 = vld [vmem:[%s3617 + $0x2c] sm:$0xf]
        %v3630 = vld [vmem:[%s3617 + $0x30] sm:$0xf]
        %v3631 = vld [vmem:[%s3617 + $0x34] sm:$0xf]
        %v3632 = vld [vmem:[%s3617 + $0x38] sm:$0xf]
        %v3633 = vld [vmem:[%s3617 + $0x3c] sm:$0xf]
        %v3650 = vunpack.c.l.b16 %v3618
        %v3651 = vunpack.c.l.b16 %v3619
        %v3652 = vunpack.c.l.b16 %v3620
        %v3653 = vunpack.c.l.b16 %v3621
        %v3654 = vunpack.c.l.b16 %v3622
        %v3655 = vunpack.c.l.b16 %v3623
        %v3656 = vunpack.c.l.b16 %v3624
        %v3657 = vunpack.c.l.b16 %v3625
        %v3658 = vunpack.c.l.b16 %v3626
        %v3659 = vunpack.c.l.b16 %v3627
        %v3660 = vunpack.c.l.b16 %v3628
        %v3661 = vunpack.c.l.b16 %v3629
        %v3662 = vunpack.c.l.b16 %v3630
        %v3663 = vunpack.c.l.b16 %v3631
        %v3664 = vunpack.c.l.b16 %v3632
        %v3665 = vunpack.c.l.b16 %v3633
        %v3666 = vpack.c.b16 %v3651, %v3650
        %v3667 = vpack.c.b16 %v3653, %v3652
        %v3668 = vpack.c.b16 %v3655, %v3654
        %v3669 = vpack.c.b16 %v3657, %v3656
        %v3670 = vpack.c.b16 %v3659, %v3658
        %v3671 = vpack.c.b16 %v3661, %v3660
        %v3672 = vpack.c.b16 %v3663, %v3662
        %v3673 = vpack.c.b16 %v3665, %v3664
        %3682 = vmatprep.subr.bf16.mxu0 0
        %3683 = vmatpush1.bf16.msra.mxu0 %v3666
        %3684 = vmatprep.subr.bf16.mxu0 0
        %3685 = vmatpush1.bf16.msra.mxu0 %v3667
        %3686 = vmatprep.subr.bf16.mxu0 0
        %3687 = vmatpush1.bf16.msra.mxu0 %v3668
        %3688 = vmatprep.subr.bf16.mxu0 0
        %3689 = vmatpush1.bf16.msra.mxu0 %v3669
        %3690 = vmatprep.subr.bf16.mxu0 0
        %3691 = vmatpush1.bf16.msra.mxu0 %v3670
        %3692 = vmatprep.subr.bf16.mxu0 0
        %3693 = vmatpush1.bf16.msra.mxu0 %v3671
        %3694 = vmatprep.subr.bf16.mxu0 0
        %3695 = vmatpush1.bf16.msra.mxu0 %v3672
        %3696 = vmatprep.subr.bf16.mxu0 0
        %3697 = vmatpush1.bf16.msra.mxu0 %v3673
        %3698 = vmatprep.subr.bf16.mxu0 0
        %3699 = vmatpush1.bf16.msra.mxu0 0
        %3700 = vmatprep.subr.bf16.mxu0 0
        %3701 = vmatpush1.bf16.msra.mxu0 0
        %3702 = vmatprep.subr.bf16.mxu0 0
        %3703 = vmatpush1.bf16.msra.mxu0 0
        %3704 = vmatprep.subr.bf16.mxu0 0
        %3705 = vmatpush1.bf16.msra.mxu0 0
        %3706 = vmatprep.subr.bf16.mxu0 0
        %3707 = vmatpush1.bf16.msra.mxu0 0
        %3708 = vmatprep.subr.bf16.mxu0 0
        %3709 = vmatpush1.bf16.msra.mxu0 0
        %3710 = vmatprep.subr.bf16.mxu0 0
        %3711 = vmatpush1.bf16.msra.mxu0 0
        %3712 = vmatprep.subr.bf16.mxu0 0
        %3713 = vmatpush1.bf16.msra.mxu0 0
        %3714 = vmatprep.mubr.bf16.mxu0 0
        %3715 = vmatmul.mubr.bf16.gmra.mrb[0].mxu0 %v3613
        %v3716 = vpop.f32.mrb[0].mxu0
        %v3717 = vadd.f32 0.0, %v3716
        %v3718 = vpop.f32.mrb[0].mxu0
        %v3719 = vpop.f32.mrb[0].mxu0
        %v3720 = vadd.f32 0.0, %v3719
        %v3721 = vpop.f32.mrb[0].mxu0
        %3722 = vmatprep.mubr.bf16.mxu0 0
        %3723 = vmatmul.mubr.bf16.gmra.mrb[0].mxu0 %v3614
        %v3724 = vpop.f32.mrb[0].mxu0
        %v3725 = vadd.f32 0.0, %v3724
        %v3726 = vpop.f32.mrb[0].mxu0
        %v3727 = vpop.f32.mrb[0].mxu0
        %v3728 = vadd.f32 0.0, %v3727
        %v3729 = vpop.f32.mrb[0].mxu0
        %3730 = vmatprep.mubr.bf16.mxu0 0
        %3731 = vmatmul.mubr.bf16.gmra.mrb[0].mxu0 %v3615
        %v3732 = vpop.f32.mrb[0].mxu0
        %v3733 = vadd.f32 0.0, %v3732
        %v3734 = vpop.f32.mrb[0].mxu0
        %v3735 = vpop.f32.mrb[0].mxu0
        %v3736 = vadd.f32 0.0, %v3735
        %v3737 = vpop.f32.mrb[0].mxu0
        %3738 = vmatprep.mubr.bf16.mxu0 0
        %3739 = vmatmul.mubr.bf16.gmra.mrb[0].mxu0 %v3616
        %v3740 = vpop.f32.mrb[0].mxu0
        %v3741 = vadd.f32 0.0, %v3740
        %v3742 = vpop.f32.mrb[0].mxu0
        %v3743 = vpop.f32.mrb[0].mxu0
        %v3744 = vadd.f32 0.0, %v3743
        %v3745 = vpop.f32.mrb[0].mxu0
        %3746 = vdwg.mxu0
        %v3747 = vadd.f32 %v3605, %v3717
        %v3748 = vadd.f32 %v3606, %v3720
        %v3749 = vadd.f32 %v3607, %v3725
        %v3750 = vadd.f32 %v3608, %v3728
        %v3751 = vadd.f32 %v3609, %v3733
        %v3752 = vadd.f32 %v3610, %v3736
        %v3753 = vadd.f32 %v3611, %v3741
        %v3754 = vadd.f32 %v3612, %v3744
        %3755 = vst [vmem:[#allocation2] sm:$0xff] %v3747
        %3756 = vst [vmem:[#allocation2 + $0x8] sm:$0xff] %v3748
        %3757 = vst [vmem:[#allocation2 + $0x10] sm:$0xff] %v3749
        %3758 = vst [vmem:[#allocation2 + $0x18] sm:$0xff] %v3750
        %3759 = vst [vmem:[#allocation2 + $0x20] sm:$0xff] %v3751
        %3760 = vst [vmem:[#allocation2 + $0x28] sm:$0xff] %v3752
        %3761 = vst [vmem:[#allocation2 + $0x30] sm:$0xff] %v3753
        %3762 = vst [vmem:[#allocation2 + $0x38] sm:$0xff] %v3754
        %v3763 = vld [vmem:[#allocation2] sm:$0xff]
        %v3764 = vld [vmem:[#allocation2 + $0x8] sm:$0xff]
        %v3765 = vld [vmem:[#allocation2 + $0x10] sm:$0xff]
        %v3766 = vld [vmem:[#allocation2 + $0x18] sm:$0xff]
        %v3767 = vld [vmem:[#allocation2 + $0x20] sm:$0xff]
        %v3768 = vld [vmem:[#allocation2 + $0x28] sm:$0xff]
        %v3769 = vld [vmem:[#allocation2 + $0x30] sm:$0xff]
        %v3770 = vld [vmem:[#allocation2 + $0x38] sm:$0xff]
        %v3771 = vld [vmem:[%s4] sm:$0x1]
        %v3773 = vlaneseq
        %v3774 = vshrl.u32 %v3773, 7
        %v3775 = vsub.s32 0, %v3774
        %v3776 = vrot.slane %v3771, %v3775
        %v3778 = vadd.f32 %v3763, %v3776
        %v3779 = vadd.f32 %v3764, %v3776
        %v3780 = vadd.f32 %v3765, %v3776
        %v3781 = vadd.f32 %v3766, %v3776
        %v3782 = vadd.f32 %v3767, %v3776
        %v3783 = vadd.f32 %v3768, %v3776
        %v3784 = vadd.f32 %v3769, %v3776
        %v3785 = vadd.f32 %v3770, %v3776
        %v3786 = vmax.f32 %v3778, 0.0
        %v3787 = vmax.f32 %v3779, 0.0
        %v3788 = vmax.f32 %v3780, 0.0
        %v3789 = vmax.f32 %v3781, 0.0
        %v3790 = vmax.f32 %v3782, 0.0
        %v3791 = vmax.f32 %v3783, 0.0
        %v3792 = vmax.f32 %v3784, 0.0
        %v3793 = vmax.f32 %v3785, 0.0
        %3794 = vst [vmem:[%s289] sm:$0xff] %v3786
        %3795 = vst [vmem:[%s289 + $0x8] sm:$0xff] %v3787
        %3796 = vst [vmem:[%s289 + $0x10] sm:$0xff] %v3788
        %3797 = vst [vmem:[%s289 + $0x18] sm:$0xff] %v3789
        %3798 = vst [vmem:[%s289 + $0x20] sm:$0xff] %v3790
        %3799 = vst [vmem:[%s289 + $0x28] sm:$0xff] %v3791
        %3800 = vst [vmem:[%s289 + $0x30] sm:$0xff] %v3792
        %3801 = vst [vmem:[%s289 + $0x38] sm:$0xff] %v3793
        %s3802 = sand.u32 %s182, 1
        %s3803 = scalar_lea.sflag [#allocation6], %s3802
        %s3804 = sand.u32 %s182, 1
        %s3805 = smul.addr %s3804, 64
        %s3806 = scalar_lea.vmem [#allocation7], %s3805
        // Predicated region
        $region53: #{tpu_custom_call.1} parent=47 // pred_check
          %p3807 = pneg %p192
        $region54: #{tpu_custom_call.1} parent=47 // pred_check_branch
          %3809 = sbr.rel (%p3807) target = $region56
        $region55: #{tpu_custom_call.1} parent=47 // pred_region
          %s3811 = ssub.s32 1024, 1024
          %3812 = vsyncadd %s3803, %s3811
          %s3813 = smul.addr %s22, 8
          %s3814 = smul.addr %s3813, 128
          %s3815 = scalar_lea.hbm %s7, %s3814
          %s3816 = sshll.u32 %s3806, 4
          %s3817 = int_to_ptr.vmem [resolvable:$true] %s3816
          %3822 = dma.vmem_to_hbm [thread:$0]  %s3817, 1024, %s3815, %s3803, 128, 128, 8
        $region56: #{tpu_custom_call.1} parent=47 // pred_fallthru
          _
      $region48: #{tpu_custom_call.1} parent=5 // pred_fallthru
        _
      %p3823 = scmp.le.s32.totalorder 2, %s17
      // Predicated region
      $region57: #{tpu_custom_call.1} parent=5 // pred_check
        %p3824 = pneg %p3823
      $region58: #{tpu_custom_call.1} parent=5 // pred_check_branch
        %3826 = sbr.rel (%p3824) target = $region60
      $region59: #{tpu_custom_call.1} parent=5 // pred_region
        %s3827 = ssub.s32 %s17, 2
        // Predicated region
        $region61: #{tpu_custom_call.1} parent=59 // pred_check
          %p3828 = pneg %p198
        $region62: #{tpu_custom_call.1} parent=59 // pred_check_branch
          %3830 = sbr.rel (%p3828) target = $region64
        $region63: #{tpu_custom_call.1} parent=59 // pred_region
          %s3831 = sand.u32 %s183, 1
          %s3832 = scalar_lea.sflag [#allocation6], %s3831
          %s3833 = sand.u32 %s183, 1
          %s3834 = smul.addr %s3833, 64
          %s3835 = scalar_lea.vmem [#allocation7], %s3834
          %3836 = dma.done %s3832, 1024
        $region64: #{tpu_custom_call.1} parent=59 // pred_fallthru
          _
      $region60: #{tpu_custom_call.1} parent=5 // pred_fallthru
        _
    $region6: #{tpu_custom_call.1} parent=1 // loop_footer
      %s21 = sadd.s32 1, %s17
    $region7: #{tpu_custom_call.1} parent=1 // loop_footer_branch
      %16 = sbr.rel target = $region3
    $region8: #{tpu_custom_call.1} parent=1 // loop_exit
      _
    %3837 = vsyncpa [#allocation5], 1
    %s3838 = scalar_lea.sflag [#allocation5], 1
    %3839 = vsyncpa %s3838, 1
    %3840 = vsyncpa [#allocation6], 1
    %s3841 = scalar_lea.sflag [#allocation6], 1
    %3842 = vsyncpa %s3841, 1

</llo_original>
